<compile_context>
chip_gen: v5e
topology: v5e:2x2
jax: 0.10.0
libtpu: 0.0.40
codegen_flags: <defaults>
</compile_context>

<pallas_src>
import math

import jax
import jax.numpy as jnp
from jax import lax
from jax.experimental import pallas as pl
from jax.experimental.pallas import tpu as pltpu

# ----------------------- small synthetic configuration -----------------------
B = 2              # batch
N_SYNTHS = 4       # polyphony (number of monophonic string models)
T = 8              # conditioning frames
FRAME = 16         # audio samples per frame
N = T * FRAME      # audio samples = 128 (exactly one lane row)
N_HARM = 16        # harmonics
N_NOISE = 8        # noise bands
N_INSTR = 4        # number of piano models (one-hot embeddings)
Z_DIM = 8
CTX_DIM = 16
HIDDEN = 32
MONO_OUT = 1 + N_HARM + N_NOISE   # 25
IR_LEN = 16
SR = 16000.0

_TWO_PI = 2.0 * math.pi
_LN2 = math.log(2.0)
_LOG10 = math.log(10.0)


def _exp_sigmoid(x, max_value=2.0, threshold=1e-7):
    """DDSP exp_sigmoid written with exp/log only (EUP-friendly, no pow)."""
    s = 1.0 / (1.0 + jnp.exp(-x))
    s = jnp.maximum(s, 1e-20)
    return max_value * jnp.exp(_LOG10 * jnp.log(s)) + threshold


# ------------------------------ fused kernel ----------------------------------
def _piano_kernel(
    pm_ref,          # scalar prefetch: (B,) int32 piano-model ids (SMEM)
    cond_t_ref,      # (1, 2*S, T)  rows = [pitch_s0, vel_s0, pitch_s1, ...]
    pedal_t_ref,     # (1, 4, T)
    pitch_ref,       # (1, S, T)
    vel_ref,         # (1, S, T)
    z_emb_ref,       # (N_INSTR, Z_DIM)
    inharm_emb_ref,  # (N_INSTR, 1)
    detune_emb_ref,  # (N_INSTR, 1)
    ir_table_ref,    # (N_INSTR, IR_LEN)
    u_ref,           # (T, N) hold-upsampling matrix
    bands_ref,       # (N_NOISE, N) fixed noise bands
    w1c_ref,         # (HIDDEN, 2*S)   context-net W1 (conditioning part, transposed)
    w1p_ref,         # (HIDDEN, 4)     context-net W1 (pedal part)
    w1z_ref,         # (HIDDEN, Z_DIM) context-net W1 (z part)
    cb1_ref,         # (HIDDEN, 1)
    cw2_ref,         # (CTX_DIM, HIDDEN)
    cb2_ref,         # (CTX_DIM, 1)
    mf_ref,          # (HIDDEN, 3)     mono W1 columns: [pitch, vel, ext_pitch/127]
    mcw_ref,         # (HIDDEN, CTX_DIM)
    mb1_ref,         # (HIDDEN, 1)
    mw2_ref,         # (MONO_OUT, HIDDEN)
    mb2_ref,         # (MONO_OUT, 1)
    scal_ref,        # (1, 4) f32: [inharm_slope, inharm_bias, detune_scale, 0]
    sig_ref,         # out (1, 1, N)       signal after reverb
    irout_ref,       # out (1, 1, IR_LEN)  reverb impulse response
    dry_ref,         # out (1, 1, N)       pre-reverb signal
):
    f32 = jnp.float32
    b = pl.program_id(0)
    pm = pm_ref[b]

    # ---- z_encoder / reverb_model: one-hot table lookups (no gather) ----
    oh_col = (lax.broadcasted_iota(jnp.int32, (N_INSTR, 1), 0) == pm).astype(f32)
    z_row = jnp.sum(z_emb_ref[...] * oh_col, axis=0, keepdims=True)          # (1, Z)
    g_inharm = jnp.sum(inharm_emb_ref[...] * oh_col, axis=0, keepdims=True)  # (1, 1)
    g_detune = jnp.sum(detune_emb_ref[...] * oh_col, axis=0, keepdims=True)  # (1, 1)
    ir_row = jnp.sum(ir_table_ref[...] * oh_col, axis=0, keepdims=True)      # (1, IR_LEN)

    sc = scal_ref[...]
    slope = sc[:, 0:1]       # (1, 1)
    bias = sc[:, 1:2]
    det_scale = sc[:, 2:3]

    # ---- context network (2-layer MLP, features x time layout) ----
    cond_t = cond_t_ref[0]   # (2S, T)
    ped_t = pedal_t_ref[0]   # (4, T)
    zterm = jnp.sum(w1z_ref[...] * z_row, axis=1, keepdims=True)             # (HIDDEN, 1)
    h1 = (jnp.dot(w1c_ref[...], cond_t, preferred_element_type=f32)
          + jnp.dot(w1p_ref[...], ped_t, preferred_element_type=f32)
          + zterm + cb1_ref[...])
    h1 = jnp.maximum(h1, 0.0)                                                # (HIDDEN, T)
    ctx_t = jnp.dot(cw2_ref[...], h1, preferred_element_type=f32) + cb2_ref[...]  # (CTX, T)
    # context contribution to the mono MLP hidden layer (shared by all strings)
    ctx_term = jnp.dot(mcw_ref[...], ctx_t, preferred_element_type=f32)      # (HIDDEN, T)

    # ---- shared constants ----
    pitch_all = pitch_ref[0]     # (S, T)
    vel_all = vel_ref[0]         # (S, T)
    u_hold = u_ref[...]          # (T, N)
    bands = bands_ref[...]       # (N_NOISE, N)
    mf = mf_ref[...]
    mb1 = mb1_ref[...]
    mw2 = mw2_ref[...]
    mb2 = mb2_ref[...]

    kcol = (lax.broadcasted_iota(jnp.int32, (N_HARM, 1), 0) + 1).astype(f32)  # (H, 1)
    # strict lower-triangular (in time) cumulative-sum matrix: M[t', t] = [t' < t]
    m_cum = (lax.broadcasted_iota(jnp.int32, (T, T), 0)
             < lax.broadcasted_iota(jnp.int32, (T, T), 1)).astype(f32)        # (T, T)
    lane = lax.broadcasted_iota(jnp.int32, (1, N), 1)                         # (1, N)
    ramp = ((lane & (FRAME - 1)) + 1).astype(f32)                             # (1, N)

    signal = jnp.zeros((1, N), f32)

    # ---- monophonic strings: MLP + controls + harmonic/noise synthesis ----
    for s in range(N_SYNTHS):
        pitch = pitch_all[s:s + 1, :]     # (1, T)
        vel = vel_all[s:s + 1, :]         # (1, T)
        # TODO(synk): note-release recurrence approximated by pitch passthrough.
        ext_pitch = pitch

        # monophonic 2-layer MLP (features x time)
        h = (mf[:, 0:1] * pitch + mf[:, 1:2] * vel
             + mf[:, 2:3] * (ext_pitch * (1.0 / 127.0))
             + ctx_term + mb1)
        h = jnp.maximum(h, 0.0)                                               # (HIDDEN, T)
        mono = jnp.dot(mw2, h, preferred_element_type=f32) + mb2              # (25, T)

        amps = _exp_sigmoid(mono[0:1, :])                                     # (1, T)
        hd = _exp_sigmoid(mono[1:1 + N_HARM, :])                              # (H, T)
        mags = _exp_sigmoid(mono[1 + N_HARM:, :]) * 0.05                      # (M, T)

        # inharmonicity model + detuner (MIDI pitch -> f0 in Hz)
        inharm = jnp.exp(slope * (ext_pitch - 69.0) / 12.0 + bias + g_inharm)  # (1, T)
        f0 = 440.0 * jnp.exp(_LN2 * (ext_pitch - 69.0 + det_scale * g_detune) / 12.0)

        # harmonic_synthesizer.get_controls
        ratios = kcol * jnp.sqrt(1.0 + inharm * kcol * kcol)                  # (H, T)
        freqs = f0 * ratios                                                   # (H, T)
        hd = jnp.where(freqs < SR / 2.0, hd, 0.0)                             # Nyquist mask
        hd = hd / (jnp.sum(hd, axis=0, keepdims=True) + 1e-7)                 # normalize
        harm_amps = amps * hd                                                 # (H, T)

        # phase accumulation at FRAME rate, hold-upsampled via MXU matmul
        dphi = (_TWO_PI * FRAME / SR) * freqs                                 # (H, T)
        phi0 = jnp.dot(dphi, m_cum, preferred_element_type=f32)               # (H, T)
        amps_up = jnp.dot(harm_amps, u_hold, preferred_element_type=f32)      # (H, N)
        freqs_up = jnp.dot(freqs, u_hold, preferred_element_type=f32)         # (H, N)
        base_up = jnp.dot(phi0, u_hold, preferred_element_type=f32)           # (H, N)
        phase = base_up + (_TWO_PI / SR) * freqs_up * ramp
        phase = phase - _TWO_PI * jnp.floor(phase * (1.0 / _TWO_PI))          # mod 2*pi
        harmonic = jnp.sum(amps_up * jnp.sin(phase), axis=0, keepdims=True)   # (1, N)

        # filtered-noise synthesizer (fixed noise bands)
        mags_up = jnp.dot(mags, u_hold, preferred_element_type=f32)           # (M, N)
        noise = jnp.sum(mags_up * bands, axis=0, keepdims=True)               # (1, N)

        signal = signal + harmonic + noise

    # ---- reverb: dry + causal FIR via lane rotations (first tap masked) ----
    wet = jnp.zeros((1, N), f32)
    for k in range(1, IR_LEN):
        delayed = pltpu.roll(signal, shift=k, axis=1)
        delayed = jnp.where(lane >= k, delayed, 0.0)
        wet = wet + ir_row[:, k:k + 1] * delayed

    sig_ref[0] = signal + wet
    dry_ref[0] = signal
    irout_ref[0] = ir_row


# ------------------------------- BlockSpecs ------------------------------------
def _batch_spec(shape):
    """Leading (batch) dim blocked by the grid, trailing dims whole."""
    nd = len(shape)
    return pl.BlockSpec((1,) + tuple(shape[1:]),
                        lambda b, pm, nd=nd: (b,) + (0,) * (nd - 1))


def _const_spec(shape):
    """Whole-array block, identical for every grid step."""
    nd = len(shape)
    return pl.BlockSpec(tuple(shape), lambda b, pm, nd=nd: (0,) * nd)


# ------------------------------ model glue -------------------------------------
def init_params(key):
    ks = jax.random.split(key, 9)

    def w(k, shape, scale):
        return scale * jax.random.normal(k, shape, dtype=jnp.float32)

    return dict(
        z_emb=w(ks[0], (N_INSTR, Z_DIM), 1.0),
        inharm_emb=w(ks[1], (N_INSTR, 1), 0.1),
        detune_emb=w(ks[2], (N_INSTR, 1), 0.1),
        ctx_w1=w(ks[3], (2 * N_SYNTHS + 4 + Z_DIM, HIDDEN), 0.3),
        ctx_b1=jnp.zeros((1, HIDDEN), jnp.float32),
        ctx_w2=w(ks[4], (HIDDEN, CTX_DIM), 0.3),
        ctx_b2=jnp.zeros((1, CTX_DIM), jnp.float32),
        mono_w1=w(ks[5], (2 + 1 + CTX_DIM, HIDDEN), 0.3),
        mono_b1=jnp.zeros((1, HIDDEN), jnp.float32),
        mono_w2=w(ks[6], (HIDDEN, MONO_OUT), 0.3),
        mono_b2=jnp.zeros((1, MONO_OUT), jnp.float32),
        inharm_slope=jnp.float32(0.3),
        inharm_bias=jnp.float32(-9.0),
        detune_scale=jnp.float32(1.0),
        ir_table=w(ks[7], (N_INSTR, IR_LEN), 0.1),
        # TODO(synk): fixed Gaussian tables stand in for DDSP filtered-noise bands.
        noise_bands=w(ks[8], (N_NOISE, N), 1.0),
    )


@jax.jit
def piano_forward(params, conditioning, pedal, piano_model):
    f32 = jnp.float32
    conditioning = conditioning.astype(f32)         # (B, T, S, 2)
    pedal = pedal.astype(f32)                       # (B, T, 4)
    piano_model = piano_model.astype(jnp.int32)     # (B,)

    # ---- layout plumbing (tiny, done once per call) ----
    cond_t = jnp.transpose(conditioning, (0, 2, 3, 1)).reshape(B, 2 * N_SYNTHS, T)
    pedal_t = jnp.transpose(pedal, (0, 2, 1))                       # (B, 4, T)
    pitch_st = jnp.transpose(conditioning[..., 0], (0, 2, 1))       # (B, S, T)
    vel_st = jnp.transpose(conditioning[..., 1], (0, 2, 1))         # (B, S, T)

    w1 = params["ctx_w1"]
    w1c_t = jnp.transpose(w1[: 2 * N_SYNTHS])                       # (HIDDEN, 2S)
    w1p_t = jnp.transpose(w1[2 * N_SYNTHS: 2 * N_SYNTHS + 4])       # (HIDDEN, 4)
    w1z_t = jnp.transpose(w1[2 * N_SYNTHS + 4:])                    # (HIDDEN, Z)
    cb1_t = jnp.transpose(params["ctx_b1"])                         # (HIDDEN, 1)
    cw2_t = jnp.transpose(params["ctx_w2"])                         # (CTX, HIDDEN)
    cb2_t = jnp.transpose(params["ctx_b2"])                         # (CTX, 1)
    m1 = params["mono_w1"]
    mf_t = jnp.transpose(m1[0:3])                                   # (HIDDEN, 3)
    mcw_t = jnp.transpose(m1[3:])                                   # (HIDDEN, CTX)
    mb1_t = jnp.transpose(params["mono_b1"])                        # (HIDDEN, 1)
    mw2_t = jnp.transpose(params["mono_w2"])                        # (25, HIDDEN)
    mb2_t = jnp.transpose(params["mono_b2"])                        # (25, 1)

    u_hold = (jnp.arange(N, dtype=jnp.int32)[None, :] // FRAME
              == jnp.arange(T, dtype=jnp.int32)[:, None]).astype(f32)  # (T, N)
    scal = jnp.stack([params["inharm_slope"], params["inharm_bias"],
                      params["detune_scale"], jnp.float32(0.0)]).reshape(1, 4)

    inputs = (cond_t, pedal_t, pitch_st, vel_st,
              params["z_emb"], params["inharm_emb"], params["detune_emb"],
              params["ir_table"], u_hold, params["noise_bands"],
              w1c_t, w1p_t, w1z_t, cb1_t, cw2_t, cb2_t,
              mf_t, mcw_t, mb1_t, mw2_t, mb2_t, scal)

    in_specs = [_batch_spec(cond_t.shape), _batch_spec(pedal_t.shape),
                _batch_spec(pitch_st.shape), _batch_spec(vel_st.shape)]
    in_specs += [_const_spec(a.shape) for a in inputs[4:]]

    out_shape = (jax.ShapeDtypeStruct((B, 1, N), f32),
                 jax.ShapeDtypeStruct((B, 1, IR_LEN), f32),
                 jax.ShapeDtypeStruct((B, 1, N), f32))
    out_specs = [_batch_spec((B, 1, N)), _batch_spec((B, 1, IR_LEN)),
                 _batch_spec((B, 1, N))]

    sig3, ir3, dry3 = pl.pallas_call(
        _piano_kernel,
        out_shape=out_shape,
        grid_spec=pltpu.PrefetchScalarGridSpec(
            num_scalar_prefetch=1,
            grid=(B,),
            in_specs=in_specs,
            out_specs=out_specs,
        ),
        compiler_params=pltpu.CompilerParams(
            dimension_semantics=("parallel",)),
    )(piano_model, *inputs)

    signal = sig3.reshape(B, N)
    reverb_ir = ir3.reshape(B, IR_LEN)
    non_ir_signal = lax.stop_gradient(dry3.reshape(B, N))   # .detach()
    return signal, reverb_ir, non_ir_signal


# ---------------------------------- main ----------------------------------------
if __name__ == "__main__":
    key = jax.random.PRNGKey(0)
    k1, k2, k3, kp = jax.random.split(key, 4)

    pitch = 40.0 + 40.0 * jax.random.uniform(k1, (B, T, N_SYNTHS, 1), dtype=jnp.float32)
    velocity = jax.random.uniform(k2, (B, T, N_SYNTHS, 1), dtype=jnp.float32)
    conditioning = jnp.concatenate([pitch, velocity], axis=-1)      # (B, T, S, 2)
    pedal = jax.random.uniform(k3, (B, T, 4), dtype=jnp.float32)    # (B, T, 4)
    piano_model = jnp.array([0, 2], dtype=jnp.int32)                # (B,)

    params = init_params(kp)

    signal, reverb_ir, non_ir_signal = piano_forward(
        params, conditioning, pedal, piano_model
    )
    jax.block_until_ready((signal, reverb_ir, non_ir_signal))

    assert signal.shape == (B, N)
    assert reverb_ir.shape == (B, IR_LEN)
    assert non_ir_signal.shape == (B, N)
    assert bool(jnp.all(jnp.isfinite(signal)))
    assert bool(jnp.all(jnp.isfinite(non_ir_signal)))

    print("KERNEL_OK")
</pallas_src>

<mosaic_0001>
module attributes {stable_mosaic.version = 11 : i64} {
  func.func @_piano_kernel(%arg0: i32, %arg1: memref<2xi32, #tpu.memory_space<smem>>, %arg2: memref<1x8x8xf32, #tpu.memory_space<vmem>>, %arg3: memref<1x4x8xf32, #tpu.memory_space<vmem>>, %arg4: memref<1x4x8xf32, #tpu.memory_space<vmem>>, %arg5: memref<1x4x8xf32, #tpu.memory_space<vmem>>, %arg6: memref<4x8xf32, #tpu.memory_space<vmem>>, %arg7: memref<4x1xf32, #tpu.memory_space<vmem>>, %arg8: memref<4x1xf32, #tpu.memory_space<vmem>>, %arg9: memref<4x16xf32, #tpu.memory_space<vmem>>, %arg10: memref<8x128xf32, #tpu.memory_space<vmem>>, %arg11: memref<8x128xf32, #tpu.memory_space<vmem>>, %arg12: memref<32x8xf32, #tpu.memory_space<vmem>>, %arg13: memref<32x4xf32, #tpu.memory_space<vmem>>, %arg14: memref<32x8xf32, #tpu.memory_space<vmem>>, %arg15: memref<32x1xf32, #tpu.memory_space<vmem>>, %arg16: memref<16x32xf32, #tpu.memory_space<vmem>>, %arg17: memref<16x1xf32, #tpu.memory_space<vmem>>, %arg18: memref<32x3xf32, #tpu.memory_space<vmem>>, %arg19: memref<32x16xf32, #tpu.memory_space<vmem>>, %arg20: memref<32x1xf32, #tpu.memory_space<vmem>>, %arg21: memref<25x32xf32, #tpu.memory_space<vmem>>, %arg22: memref<25x1xf32, #tpu.memory_space<vmem>>, %arg23: memref<1x4xf32, #tpu.memory_space<vmem>>, %arg24: memref<1x1x128xf32, #tpu.memory_space<vmem>>, %arg25: memref<1x1x16xf32, #tpu.memory_space<vmem>>, %arg26: memref<1x1x128xf32, #tpu.memory_space<vmem>>) attributes {dimension_semantics = [#tpu.dimension_semantics<parallel>], iteration_bounds = array<i64: 2>, scalar_prefetch = 1 : i64, scratch_operands = 0 : i64, tpu.core_type = #tpu.core_type<tc>, window_params = [{transform_indices = @transform_0, window_bounds = array<i64: 1, 8, 8>}, {transform_indices = @transform_1, window_bounds = array<i64: 1, 4, 8>}, {transform_indices = @transform_2, window_bounds = array<i64: 1, 4, 8>}, {transform_indices = @transform_3, window_bounds = array<i64: 1, 4, 8>}, {pipeline_mode = #tpu.pipeline_mode<synchronous>, transform_indices = @transform_4, window_bounds = array<i64: 4, 8>}, {pipeline_mode = #tpu.pipeline_mode<synchronous>, transform_indices = @transform_5, window_bounds = array<i64: 4, 1>}, {pipeline_mode = #tpu.pipeline_mode<synchronous>, transform_indices = @transform_6, window_bounds = array<i64: 4, 1>}, {pipeline_mode = #tpu.pipeline_mode<synchronous>, transform_indices = @transform_7, window_bounds = array<i64: 4, 16>}, {pipeline_mode = #tpu.pipeline_mode<synchronous>, transform_indices = @transform_8, window_bounds = array<i64: 8, 128>}, {pipeline_mode = #tpu.pipeline_mode<synchronous>, transform_indices = @transform_9, window_bounds = array<i64: 8, 128>}, {pipeline_mode = #tpu.pipeline_mode<synchronous>, transform_indices = @transform_10, window_bounds = array<i64: 32, 8>}, {pipeline_mode = #tpu.pipeline_mode<synchronous>, transform_indices = @transform_11, window_bounds = array<i64: 32, 4>}, {pipeline_mode = #tpu.pipeline_mode<synchronous>, transform_indices = @transform_12, window_bounds = array<i64: 32, 8>}, {pipeline_mode = #tpu.pipeline_mode<synchronous>, transform_indices = @transform_13, window_bounds = array<i64: 32, 1>}, {pipeline_mode = #tpu.pipeline_mode<synchronous>, transform_indices = @transform_14, window_bounds = array<i64: 16, 32>}, {pipeline_mode = #tpu.pipeline_mode<synchronous>, transform_indices = @transform_15, window_bounds = array<i64: 16, 1>}, {pipeline_mode = #tpu.pipeline_mode<synchronous>, transform_indices = @transform_16, window_bounds = array<i64: 32, 3>}, {pipeline_mode = #tpu.pipeline_mode<synchronous>, transform_indices = @transform_17, window_bounds = array<i64: 32, 16>}, {pipeline_mode = #tpu.pipeline_mode<synchronous>, transform_indices = @transform_18, window_bounds = array<i64: 32, 1>}, {pipeline_mode = #tpu.pipeline_mode<synchronous>, transform_indices = @transform_19, window_bounds = array<i64: 25, 32>}, {pipeline_mode = #tpu.pipeline_mode<synchronous>, transform_indices = @transform_20, window_bounds = array<i64: 25, 1>}, {pipeline_mode = #tpu.pipeline_mode<synchronous>, transform_indices = @transform_21, window_bounds = array<i64: 1, 4>}, {transform_indices = @transform_22, window_bounds = array<i64: 1, 1, 128>}, {transform_indices = @transform_23, window_bounds = array<i64: 1, 1, 16>}, {transform_indices = @transform_24, window_bounds = array<i64: 1, 1, 128>}]} {
    %0 = arith.index_cast %arg0 : i32 to index
    %1 = memref.load %arg1[%0] : memref<2xi32, #tpu.memory_space<smem>>
    %2 = tpu.iota {dimensions = array<i32: 0>} : vector<4x1xi32>
    %3 = vector.broadcast %1 : i32 to vector<4x1xi32>
    %4 = arith.cmpi eq, %2, %3 : vector<4x1xi32>
    %5 = arith.extui %4 : vector<4x1xi1> to vector<4x1xi32>
    %6 = arith.sitofp %5 : vector<4x1xi32> to vector<4x1xf32>
    %c0 = arith.constant 0 : index
    %c0_0 = arith.constant 0 : index
    %7 = vector.load %arg6[%c0, %c0_0] : memref<4x8xf32, #tpu.memory_space<vmem>>, vector<4x8xf32>
    %8 = vector.broadcast %6 : vector<4x1xf32> to vector<4x8xf32>
    %9 = arith.mulf %7, %8 : vector<4x8xf32>
    %cst = arith.constant dense<0.000000e+00> : vector<8xf32>
    %10 = vector.multi_reduction <add>, %9, %cst [0] : vector<4x8xf32> to vector<8xf32>
    %11 = vector.shape_cast %10 : vector<8xf32> to vector<1x8xf32>
    %c0_1 = arith.constant 0 : index
    %c0_2 = arith.constant 0 : index
    %12 = vector.load %arg7[%c0_1, %c0_2] : memref<4x1xf32, #tpu.memory_space<vmem>>, vector<4x1xf32>
    %13 = arith.mulf %12, %6 : vector<4x1xf32>
    %cst_3 = arith.constant dense<0.000000e+00> : vector<1xf32>
    %14 = vector.multi_reduction <add>, %13, %cst_3 [0] : vector<4x1xf32> to vector<1xf32>
    %15 = vector.shape_cast %14 : vector<1xf32> to vector<1x1xf32>
    %c0_4 = arith.constant 0 : index
    %c0_5 = arith.constant 0 : index
    %16 = vector.load %arg8[%c0_4, %c0_5] : memref<4x1xf32, #tpu.memory_space<vmem>>, vector<4x1xf32>
    %17 = arith.mulf %16, %6 : vector<4x1xf32>
    %cst_6 = arith.constant dense<0.000000e+00> : vector<1xf32>
    %18 = vector.multi_reduction <add>, %17, %cst_6 [0] : vector<4x1xf32> to vector<1xf32>
    %19 = vector.shape_cast %18 : vector<1xf32> to vector<1x1xf32>
    %c0_7 = arith.constant 0 : index
    %c0_8 = arith.constant 0 : index
    %20 = vector.load %arg9[%c0_7, %c0_8] : memref<4x16xf32, #tpu.memory_space<vmem>>, vector<4x16xf32>
    %21 = vector.broadcast %6 : vector<4x1xf32> to vector<4x16xf32>
    %22 = arith.mulf %20, %21 : vector<4x16xf32>
    %cst_9 = arith.constant dense<0.000000e+00> : vector<16xf32>
    %23 = vector.multi_reduction <add>, %22, %cst_9 [0] : vector<4x16xf32> to vector<16xf32>
    %24 = vector.shape_cast %23 : vector<16xf32> to vector<1x16xf32>
    %c0_10 = arith.constant 0 : index
    %c0_11 = arith.constant 0 : index
    %25 = vector.load %arg23[%c0_10, %c0_11] : memref<1x4xf32, #tpu.memory_space<vmem>>, vector<1x4xf32>
    %26 = vector.extract_strided_slice %25 {offsets = [0, 0], sizes = [1, 1], strides = [1, 1]} : vector<1x4xf32> to vector<1x1xf32>
    %27 = vector.extract_strided_slice %25 {offsets = [0, 1], sizes = [1, 1], strides = [1, 1]} : vector<1x4xf32> to vector<1x1xf32>
    %28 = vector.extract_strided_slice %25 {offsets = [0, 2], sizes = [1, 1], strides = [1, 1]} : vector<1x4xf32> to vector<1x1xf32>
    %c0_12 = arith.constant 0 : index
    %c0_13 = arith.constant 0 : index
    %c0_14 = arith.constant 0 : index
    %29 = vector.load %arg2[%c0_12, %c0_13, %c0_14] : memref<1x8x8xf32, #tpu.memory_space<vmem>>, vector<1x8x8xf32>
    %30 = vector.shape_cast %29 : vector<1x8x8xf32> to vector<8x8xf32>
    %c0_15 = arith.constant 0 : index
    %c0_16 = arith.constant 0 : index
    %c0_17 = arith.constant 0 : index
    %31 = vector.load %arg3[%c0_15, %c0_16, %c0_17] : memref<1x4x8xf32, #tpu.memory_space<vmem>>, vector<1x4x8xf32>
    %32 = vector.shape_cast %31 : vector<1x4x8xf32> to vector<4x8xf32>
    %c0_18 = arith.constant 0 : index
    %c0_19 = arith.constant 0 : index
    %33 = vector.load %arg14[%c0_18, %c0_19] : memref<32x8xf32, #tpu.memory_space<vmem>>, vector<32x8xf32>
    %34 = vector.broadcast %11 : vector<1x8xf32> to vector<32x8xf32>
    %35 = arith.mulf %33, %34 : vector<32x8xf32>
    %cst_20 = arith.constant dense<0.000000e+00> : vector<32xf32>
    %36 = vector.multi_reduction <add>, %35, %cst_20 [1] : vector<32x8xf32> to vector<32xf32>
    %37 = vector.shape_cast %36 : vector<32xf32> to vector<32x1xf32>
    %c0_21 = arith.constant 0 : index
    %c0_22 = arith.constant 0 : index
    %38 = vector.load %arg12[%c0_21, %c0_22] : memref<32x8xf32, #tpu.memory_space<vmem>>, vector<32x8xf32>
    %cst_23 = arith.constant dense<0.000000e+00> : vector<32x8xf32>
    %39 = tpu.matmul %38, %30, %cst_23 {dimension_numbers = #tpu.dot_dimension_numbers<[1], [0], [0], [1], [0, 0, 1, 1], [], []>} : vector<32x8xf32>, vector<8x8xf32>, vector<32x8xf32> -> vector<32x8xf32>
    %c0_24 = arith.constant 0 : index
    %c0_25 = arith.constant 0 : index
    %40 = vector.load %arg13[%c0_24, %c0_25] : memref<32x4xf32, #tpu.memory_space<vmem>>, vector<32x4xf32>
    %cst_26 = arith.constant dense<0.000000e+00> : vector<32x8xf32>
    %41 = tpu.matmul %40, %32, %cst_26 {dimension_numbers = #tpu.dot_dimension_numbers<[1], [0], [0], [1], [0, 0, 1, 1], [], []>} : vector<32x4xf32>, vector<4x8xf32>, vector<32x8xf32> -> vector<32x8xf32>
    %42 = arith.addf %39, %41 : vector<32x8xf32>
    %43 = vector.broadcast %37 : vector<32x1xf32> to vector<32x8xf32>
    %44 = arith.addf %42, %43 : vector<32x8xf32>
    %c0_27 = arith.constant 0 : index
    %c0_28 = arith.constant 0 : index
    %45 = vector.load %arg15[%c0_27, %c0_28] : memref<32x1xf32, #tpu.memory_space<vmem>>, vector<32x1xf32>
    %46 = vector.broadcast %45 : vector<32x1xf32> to vector<32x8xf32>
    %47 = arith.addf %44, %46 : vector<32x8xf32>
    %cst_29 = arith.constant 0.000000e+00 : f32
    %48 = vector.broadcast %cst_29 : f32 to vector<32x8xf32>
    %49 = arith.maximumf %47, %48 : vector<32x8xf32>
    %c0_30 = arith.constant 0 : index
    %c0_31 = arith.constant 0 : index
    %50 = vector.load %arg16[%c0_30, %c0_31] : memref<16x32xf32, #tpu.memory_space<vmem>>, vector<16x32xf32>
    %cst_32 = arith.constant dense<0.000000e+00> : vector<16x8xf32>
    %51 = tpu.matmul %50, %49, %cst_32 {dimension_numbers = #tpu.dot_dimension_numbers<[1], [0], [0], [1], [0, 0, 1, 1], [], []>} : vector<16x32xf32>, vector<32x8xf32>, vector<16x8xf32> -> vector<16x8xf32>
    %c0_33 = arith.constant 0 : index
    %c0_34 = arith.constant 0 : index
    %52 = vector.load %arg17[%c0_33, %c0_34] : memref<16x1xf32, #tpu.memory_space<vmem>>, vector<16x1xf32>
    %53 = vector.broadcast %52 : vector<16x1xf32> to vector<16x8xf32>
    %54 = arith.addf %51, %53 : vector<16x8xf32>
    %c0_35 = arith.constant 0 : index
    %c0_36 = arith.constant 0 : index
    %55 = vector.load %arg19[%c0_35, %c0_36] : memref<32x16xf32, #tpu.memory_space<vmem>>, vector<32x16xf32>
    %cst_37 = arith.constant dense<0.000000e+00> : vector<32x8xf32>
    %56 = tpu.matmul %55, %54, %cst_37 {dimension_numbers = #tpu.dot_dimension_numbers<[1], [0], [0], [1], [0, 0, 1, 1], [], []>} : vector<32x16xf32>, vector<16x8xf32>, vector<32x8xf32> -> vector<32x8xf32>
    %c0_38 = arith.constant 0 : index
    %c0_39 = arith.constant 0 : index
    %c0_40 = arith.constant 0 : index
    %57 = vector.load %arg4[%c0_38, %c0_39, %c0_40] : memref<1x4x8xf32, #tpu.memory_space<vmem>>, vector<1x4x8xf32>
    %58 = vector.shape_cast %57 : vector<1x4x8xf32> to vector<4x8xf32>
    %c0_41 = arith.constant 0 : index
    %c0_42 = arith.constant 0 : index
    %c0_43 = arith.constant 0 : index
    %59 = vector.load %arg5[%c0_41, %c0_42, %c0_43] : memref<1x4x8xf32, #tpu.memory_space<vmem>>, vector<1x4x8xf32>
    %60 = vector.shape_cast %59 : vector<1x4x8xf32> to vector<4x8xf32>
    %c0_44 = arith.constant 0 : index
    %c0_45 = arith.constant 0 : index
    %61 = vector.load %arg10[%c0_44, %c0_45] : memref<8x128xf32, #tpu.memory_space<vmem>>, vector<8x128xf32>
    %c0_46 = arith.constant 0 : index
    %c0_47 = arith.constant 0 : index
    %62 = vector.load %arg11[%c0_46, %c0_47] : memref<8x128xf32, #tpu.memory_space<vmem>>, vector<8x128xf32>
    %c0_48 = arith.constant 0 : index
    %c0_49 = arith.constant 0 : index
    %63 = vector.load %arg18[%c0_48, %c0_49] : memref<32x3xf32, #tpu.memory_space<vmem>>, vector<32x3xf32>
    %c0_50 = arith.constant 0 : index
    %c0_51 = arith.constant 0 : index
    %64 = vector.load %arg20[%c0_50, %c0_51] : memref<32x1xf32, #tpu.memory_space<vmem>>, vector<32x1xf32>
    %c0_52 = arith.constant 0 : index
    %c0_53 = arith.constant 0 : index
    %65 = vector.load %arg21[%c0_52, %c0_53] : memref<25x32xf32, #tpu.memory_space<vmem>>, vector<25x32xf32>
    %c0_54 = arith.constant 0 : index
    %c0_55 = arith.constant 0 : index
    %66 = vector.load %arg22[%c0_54, %c0_55] : memref<25x1xf32, #tpu.memory_space<vmem>>, vector<25x1xf32>
    %67 = tpu.iota {dimensions = array<i32: 0>} : vector<16x1xi32>
    %c1_i32 = arith.constant 1 : i32
    %68 = vector.broadcast %c1_i32 : i32 to vector<16x1xi32>
    %69 = arith.addi %67, %68 : vector<16x1xi32>
    %70 = arith.sitofp %69 : vector<16x1xi32> to vector<16x1xf32>
    %71 = tpu.iota {dimensions = array<i32: 0>} : vector<8x8xi32>
    %72 = tpu.iota {dimensions = array<i32: 1>} : vector<8x8xi32>
    %73 = arith.cmpi slt, %71, %72 : vector<8x8xi32>
    %74 = arith.extui %73 : vector<8x8xi1> to vector<8x8xi32>
    %75 = arith.sitofp %74 : vector<8x8xi32> to vector<8x8xf32>
    %76 = tpu.iota {dimensions = array<i32: 1>} : vector<1x128xi32>
    %c15_i32 = arith.constant 15 : i32
    %77 = vector.broadcast %c15_i32 : i32 to vector<1x128xi32>
    %78 = arith.andi %76, %77 : vector<1x128xi32>
    %c1_i32_56 = arith.constant 1 : i32
    %79 = vector.broadcast %c1_i32_56 : i32 to vector<1x128xi32>
    %80 = arith.addi %78, %79 : vector<1x128xi32>
    %81 = arith.sitofp %80 : vector<1x128xi32> to vector<1x128xf32>
    %cst_57 = arith.constant 0.000000e+00 : f32
    %82 = vector.broadcast %cst_57 : f32 to vector<1x128xf32>
    %83 = vector.extract_strided_slice %58 {offsets = [0, 0], sizes = [1, 8], strides = [1, 1]} : vector<4x8xf32> to vector<1x8xf32>
    %84 = vector.extract_strided_slice %60 {offsets = [0, 0], sizes = [1, 8], strides = [1, 1]} : vector<4x8xf32> to vector<1x8xf32>
    %85 = vector.extract_strided_slice %63 {offsets = [0, 0], sizes = [32, 1], strides = [1, 1]} : vector<32x3xf32> to vector<32x1xf32>
    %86 = vector.broadcast %85 : vector<32x1xf32> to vector<32x8xf32>
    %87 = vector.broadcast %83 : vector<1x8xf32> to vector<32x8xf32>
    %88 = arith.mulf %86, %87 : vector<32x8xf32>
    %89 = vector.extract_strided_slice %63 {offsets = [0, 1], sizes = [32, 1], strides = [1, 1]} : vector<32x3xf32> to vector<32x1xf32>
    %90 = vector.broadcast %89 : vector<32x1xf32> to vector<32x8xf32>
    %91 = vector.broadcast %84 : vector<1x8xf32> to vector<32x8xf32>
    %92 = arith.mulf %90, %91 : vector<32x8xf32>
    %93 = arith.addf %88, %92 : vector<32x8xf32>
    %94 = vector.extract_strided_slice %63 {offsets = [0, 2], sizes = [32, 1], strides = [1, 1]} : vector<32x3xf32> to vector<32x1xf32>
    %cst_58 = arith.constant 0.00787401571 : f32
    %95 = vector.broadcast %cst_58 : f32 to vector<1x8xf32>
    %96 = arith.mulf %83, %95 : vector<1x8xf32>
    %97 = vector.broadcast %94 : vector<32x1xf32> to vector<32x8xf32>
    %98 = vector.broadcast %96 : vector<1x8xf32> to vector<32x8xf32>
    %99 = arith.mulf %97, %98 : vector<32x8xf32>
    %100 = arith.addf %93, %99 : vector<32x8xf32>
    %101 = arith.addf %100, %56 : vector<32x8xf32>
    %102 = vector.broadcast %64 : vector<32x1xf32> to vector<32x8xf32>
    %103 = arith.addf %101, %102 : vector<32x8xf32>
    %cst_59 = arith.constant 0.000000e+00 : f32
    %104 = vector.broadcast %cst_59 : f32 to vector<32x8xf32>
    %105 = arith.maximumf %103, %104 : vector<32x8xf32>
    %cst_60 = arith.constant dense<0.000000e+00> : vector<25x8xf32>
    %106 = tpu.matmul %65, %105, %cst_60 {dimension_numbers = #tpu.dot_dimension_numbers<[1], [0], [0], [1], [0, 0, 1, 1], [], []>} : vector<25x32xf32>, vector<32x8xf32>, vector<25x8xf32> -> vector<25x8xf32>
    %107 = vector.broadcast %66 : vector<25x1xf32> to vector<25x8xf32>
    %108 = arith.addf %106, %107 : vector<25x8xf32>
    %109 = vector.extract_strided_slice %108 {offsets = [0, 0], sizes = [1, 8], strides = [1, 1]} : vector<25x8xf32> to vector<1x8xf32>
    %cst_61 = arith.constant 0.000000e+00 : f32
    %110 = vector.broadcast %cst_61 : f32 to vector<1x8xf32>
    %111 = arith.subf %110, %109 : vector<1x8xf32>
    %112 = math.exp %111 : vector<1x8xf32>
    %cst_62 = arith.constant 1.000000e+00 : f32
    %113 = vector.broadcast %cst_62 : f32 to vector<1x8xf32>
    %114 = arith.addf %113, %112 : vector<1x8xf32>
    %cst_63 = arith.constant 1.000000e+00 : f32
    %115 = vector.broadcast %cst_63 : f32 to vector<1x8xf32>
    %116 = arith.divf %115, %114 : vector<1x8xf32>
    %cst_64 = arith.constant 9.99999968E-21 : f32
    %117 = vector.broadcast %cst_64 : f32 to vector<1x8xf32>
    %118 = arith.maximumf %116, %117 : vector<1x8xf32>
    %119 = math.log %118 : vector<1x8xf32>
    %cst_65 = arith.constant 2.30258512 : f32
    %120 = vector.broadcast %cst_65 : f32 to vector<1x8xf32>
    %121 = arith.mulf %120, %119 : vector<1x8xf32>
    %122 = math.exp %121 : vector<1x8xf32>
    %cst_66 = arith.constant 2.000000e+00 : f32
    %123 = vector.broadcast %cst_66 : f32 to vector<1x8xf32>
    %124 = arith.mulf %123, %122 : vector<1x8xf32>
    %cst_67 = arith.constant 1.000000e-07 : f32
    %125 = vector.broadcast %cst_67 : f32 to vector<1x8xf32>
    %126 = arith.addf %124, %125 : vector<1x8xf32>
    %127 = vector.extract_strided_slice %108 {offsets = [1, 0], sizes = [16, 8], strides = [1, 1]} : vector<25x8xf32> to vector<16x8xf32>
    %cst_68 = arith.constant 0.000000e+00 : f32
    %128 = vector.broadcast %cst_68 : f32 to vector<16x8xf32>
    %129 = arith.subf %128, %127 : vector<16x8xf32>
    %130 = math.exp %129 : vector<16x8xf32>
    %cst_69 = arith.constant 1.000000e+00 : f32
    %131 = vector.broadcast %cst_69 : f32 to vector<16x8xf32>
    %132 = arith.addf %131, %130 : vector<16x8xf32>
    %cst_70 = arith.constant 1.000000e+00 : f32
    %133 = vector.broadcast %cst_70 : f32 to vector<16x8xf32>
    %134 = arith.divf %133, %132 : vector<16x8xf32>
    %cst_71 = arith.constant 9.99999968E-21 : f32
    %135 = vector.broadcast %cst_71 : f32 to vector<16x8xf32>
    %136 = arith.maximumf %134, %135 : vector<16x8xf32>
    %137 = math.log %136 : vector<16x8xf32>
    %cst_72 = arith.constant 2.30258512 : f32
    %138 = vector.broadcast %cst_72 : f32 to vector<16x8xf32>
    %139 = arith.mulf %138, %137 : vector<16x8xf32>
    %140 = math.exp %139 : vector<16x8xf32>
    %cst_73 = arith.constant 2.000000e+00 : f32
    %141 = vector.broadcast %cst_73 : f32 to vector<16x8xf32>
    %142 = arith.mulf %141, %140 : vector<16x8xf32>
    %cst_74 = arith.constant 1.000000e-07 : f32
    %143 = vector.broadcast %cst_74 : f32 to vector<16x8xf32>
    %144 = arith.addf %142, %143 : vector<16x8xf32>
    %145 = vector.extract_strided_slice %108 {offsets = [17, 0], sizes = [8, 8], strides = [1, 1]} : vector<25x8xf32> to vector<8x8xf32>
    %cst_75 = arith.constant 0.000000e+00 : f32
    %146 = vector.broadcast %cst_75 : f32 to vector<8x8xf32>
    %147 = arith.subf %146, %145 : vector<8x8xf32>
    %148 = math.exp %147 : vector<8x8xf32>
    %cst_76 = arith.constant 1.000000e+00 : f32
    %149 = vector.broadcast %cst_76 : f32 to vector<8x8xf32>
    %150 = arith.addf %149, %148 : vector<8x8xf32>
    %cst_77 = arith.constant 1.000000e+00 : f32
    %151 = vector.broadcast %cst_77 : f32 to vector<8x8xf32>
    %152 = arith.divf %151, %150 : vector<8x8xf32>
    %cst_78 = arith.constant 9.99999968E-21 : f32
    %153 = vector.broadcast %cst_78 : f32 to vector<8x8xf32>
    %154 = arith.maximumf %152, %153 : vector<8x8xf32>
    %155 = math.log %154 : vector<8x8xf32>
    %cst_79 = arith.constant 2.30258512 : f32
    %156 = vector.broadcast %cst_79 : f32 to vector<8x8xf32>
    %157 = arith.mulf %156, %155 : vector<8x8xf32>
    %158 = math.exp %157 : vector<8x8xf32>
    %cst_80 = arith.constant 2.000000e+00 : f32
    %159 = vector.broadcast %cst_80 : f32 to vector<8x8xf32>
    %160 = arith.mulf %159, %158 : vector<8x8xf32>
    %cst_81 = arith.constant 1.000000e-07 : f32
    %161 = vector.broadcast %cst_81 : f32 to vector<8x8xf32>
    %162 = arith.addf %160, %161 : vector<8x8xf32>
    %cst_82 = arith.constant 5.000000e-02 : f32
    %163 = vector.broadcast %cst_82 : f32 to vector<8x8xf32>
    %164 = arith.mulf %162, %163 : vector<8x8xf32>
    %cst_83 = arith.constant 6.900000e+01 : f32
    %165 = vector.broadcast %cst_83 : f32 to vector<1x8xf32>
    %166 = arith.subf %83, %165 : vector<1x8xf32>
    %167 = vector.broadcast %26 : vector<1x1xf32> to vector<1x8xf32>
    %168 = arith.mulf %167, %166 : vector<1x8xf32>
    %cst_84 = arith.constant 1.200000e+01 : f32
    %169 = vector.broadcast %cst_84 : f32 to vector<1x8xf32>
    %170 = arith.divf %168, %169 : vector<1x8xf32>
    %171 = vector.broadcast %27 : vector<1x1xf32> to vector<1x8xf32>
    %172 = arith.addf %170, %171 : vector<1x8xf32>
    %173 = vector.broadcast %15 : vector<1x1xf32> to vector<1x8xf32>
    %174 = arith.addf %172, %173 : vector<1x8xf32>
    %175 = math.exp %174 : vector<1x8xf32>
    %cst_85 = arith.constant 6.900000e+01 : f32
    %176 = vector.broadcast %cst_85 : f32 to vector<1x8xf32>
    %177 = arith.subf %83, %176 : vector<1x8xf32>
    %178 = arith.mulf %28, %19 : vector<1x1xf32>
    %179 = vector.broadcast %178 : vector<1x1xf32> to vector<1x8xf32>
    %180 = arith.addf %177, %179 : vector<1x8xf32>
    %cst_86 = arith.constant 0.693147182 : f32
    %181 = vector.broadcast %cst_86 : f32 to vector<1x8xf32>
    %182 = arith.mulf %181, %180 : vector<1x8xf32>
    %cst_87 = arith.constant 1.200000e+01 : f32
    %183 = vector.broadcast %cst_87 : f32 to vector<1x8xf32>
    %184 = arith.divf %182, %183 : vector<1x8xf32>
    %185 = math.exp %184 : vector<1x8xf32>
    %cst_88 = arith.constant 4.400000e+02 : f32
    %186 = vector.broadcast %cst_88 : f32 to vector<1x8xf32>
    %187 = arith.mulf %186, %185 : vector<1x8xf32>
    %188 = vector.broadcast %175 : vector<1x8xf32> to vector<16x8xf32>
    %189 = vector.broadcast %70 : vector<16x1xf32> to vector<16x8xf32>
    %190 = arith.mulf %188, %189 : vector<16x8xf32>
    %191 = vector.broadcast %70 : vector<16x1xf32> to vector<16x8xf32>
    %192 = arith.mulf %190, %191 : vector<16x8xf32>
    %cst_89 = arith.constant 1.000000e+00 : f32
    %193 = vector.broadcast %cst_89 : f32 to vector<16x8xf32>
    %194 = arith.addf %193, %192 : vector<16x8xf32>
    %195 = math.sqrt %194 : vector<16x8xf32>
    %196 = vector.broadcast %70 : vector<16x1xf32> to vector<16x8xf32>
    %197 = arith.mulf %196, %195 : vector<16x8xf32>
    %198 = vector.broadcast %187 : vector<1x8xf32> to vector<16x8xf32>
    %199 = arith.mulf %198, %197 : vector<16x8xf32>
    %cst_90 = arith.constant 8.000000e+03 : f32
    %200 = vector.broadcast %cst_90 : f32 to vector<16x8xf32>
    %201 = arith.cmpf olt, %199, %200 : vector<16x8xf32>
    %cst_91 = arith.constant 0.000000e+00 : f32
    %202 = vector.broadcast %cst_91 : f32 to vector<16x8xf32>
    %203 = arith.select %201, %144, %202 : vector<16x8xi1>, vector<16x8xf32>
    %cst_92 = arith.constant dense<0.000000e+00> : vector<8xf32>
    %204 = vector.multi_reduction <add>, %203, %cst_92 [0] : vector<16x8xf32> to vector<8xf32>
    %205 = vector.shape_cast %204 : vector<8xf32> to vector<1x8xf32>
    %cst_93 = arith.constant 1.000000e-07 : f32
    %206 = vector.broadcast %cst_93 : f32 to vector<1x8xf32>
    %207 = arith.addf %205, %206 : vector<1x8xf32>
    %208 = vector.broadcast %207 : vector<1x8xf32> to vector<16x8xf32>
    %209 = arith.divf %203, %208 : vector<16x8xf32>
    %210 = vector.broadcast %126 : vector<1x8xf32> to vector<16x8xf32>
    %211 = arith.mulf %210, %209 : vector<16x8xf32>
    %cst_94 = arith.constant 0.00628318544 : f32
    %212 = vector.broadcast %cst_94 : f32 to vector<16x8xf32>
    %213 = arith.mulf %212, %199 : vector<16x8xf32>
    %cst_95 = arith.constant dense<0.000000e+00> : vector<16x8xf32>
    %214 = tpu.matmul %213, %75, %cst_95 {dimension_numbers = #tpu.dot_dimension_numbers<[1], [0], [0], [1], [0, 0, 1, 1], [], []>} : vector<16x8xf32>, vector<8x8xf32>, vector<16x8xf32> -> vector<16x8xf32>
    %cst_96 = arith.constant dense<0.000000e+00> : vector<16x128xf32>
    %215 = tpu.matmul %211, %61, %cst_96 {dimension_numbers = #tpu.dot_dimension_numbers<[1], [0], [0], [1], [0, 0, 1, 1], [], []>} : vector<16x8xf32>, vector<8x128xf32>, vector<16x128xf32> -> vector<16x128xf32>
    %cst_97 = arith.constant dense<0.000000e+00> : vector<16x128xf32>
    %216 = tpu.matmul %199, %61, %cst_97 {dimension_numbers = #tpu.dot_dimension_numbers<[1], [0], [0], [1], [0, 0, 1, 1], [], []>} : vector<16x8xf32>, vector<8x128xf32>, vector<16x128xf32> -> vector<16x128xf32>
    %cst_98 = arith.constant dense<0.000000e+00> : vector<16x128xf32>
    %217 = tpu.matmul %214, %61, %cst_98 {dimension_numbers = #tpu.dot_dimension_numbers<[1], [0], [0], [1], [0, 0, 1, 1], [], []>} : vector<16x8xf32>, vector<8x128xf32>, vector<16x128xf32> -> vector<16x128xf32>
    %cst_99 = arith.constant 3.9269909E-4 : f32
    %218 = vector.broadcast %cst_99 : f32 to vector<16x128xf32>
    %219 = arith.mulf %218, %216 : vector<16x128xf32>
    %220 = vector.broadcast %81 : vector<1x128xf32> to vector<16x128xf32>
    %221 = arith.mulf %219, %220 : vector<16x128xf32>
    %222 = arith.addf %217, %221 : vector<16x128xf32>
    %cst_100 = arith.constant 0.159154937 : f32
    %223 = vector.broadcast %cst_100 : f32 to vector<16x128xf32>
    %224 = arith.mulf %222, %223 : vector<16x128xf32>
    %225 = math.floor %224 : vector<16x128xf32>
    %cst_101 = arith.constant 6.28318548 : f32
    %226 = vector.broadcast %cst_101 : f32 to vector<16x128xf32>
    %227 = arith.mulf %226, %225 : vector<16x128xf32>
    %228 = arith.subf %222, %227 : vector<16x128xf32>
    %229 = math.sin %228 : vector<16x128xf32>
    %230 = arith.mulf %215, %229 : vector<16x128xf32>
    %cst_102 = arith.constant dense<0.000000e+00> : vector<128xf32>
    %231 = vector.multi_reduction <add>, %230, %cst_102 [0] : vector<16x128xf32> to vector<128xf32>
    %232 = vector.shape_cast %231 : vector<128xf32> to vector<1x128xf32>
    %cst_103 = arith.constant dense<0.000000e+00> : vector<8x128xf32>
    %233 = tpu.matmul %164, %61, %cst_103 {dimension_numbers = #tpu.dot_dimension_numbers<[1], [0], [0], [1], [0, 0, 1, 1], [], []>} : vector<8x8xf32>, vector<8x128xf32>, vector<8x128xf32> -> vector<8x128xf32>
    %234 = arith.mulf %233, %62 : vector<8x128xf32>
    %cst_104 = arith.constant dense<0.000000e+00> : vector<128xf32>
    %235 = vector.multi_reduction <add>, %234, %cst_104 [0] : vector<8x128xf32> to vector<128xf32>
    %236 = vector.shape_cast %235 : vector<128xf32> to vector<1x128xf32>
    %237 = arith.addf %82, %232 : vector<1x128xf32>
    %238 = arith.addf %237, %236 : vector<1x128xf32>
    %239 = vector.extract_strided_slice %58 {offsets = [1, 0], sizes = [1, 8], strides = [1, 1]} : vector<4x8xf32> to vector<1x8xf32>
    %240 = vector.extract_strided_slice %60 {offsets = [1, 0], sizes = [1, 8], strides = [1, 1]} : vector<4x8xf32> to vector<1x8xf32>
    %241 = vector.extract_strided_slice %63 {offsets = [0, 0], sizes = [32, 1], strides = [1, 1]} : vector<32x3xf32> to vector<32x1xf32>
    %242 = vector.broadcast %241 : vector<32x1xf32> to vector<32x8xf32>
    %243 = vector.broadcast %239 : vector<1x8xf32> to vector<32x8xf32>
    %244 = arith.mulf %242, %243 : vector<32x8xf32>
    %245 = vector.extract_strided_slice %63 {offsets = [0, 1], sizes = [32, 1], strides = [1, 1]} : vector<32x3xf32> to vector<32x1xf32>
    %246 = vector.broadcast %245 : vector<32x1xf32> to vector<32x8xf32>
    %247 = vector.broadcast %240 : vector<1x8xf32> to vector<32x8xf32>
    %248 = arith.mulf %246, %247 : vector<32x8xf32>
    %249 = arith.addf %244, %248 : vector<32x8xf32>
    %250 = vector.extract_strided_slice %63 {offsets = [0, 2], sizes = [32, 1], strides = [1, 1]} : vector<32x3xf32> to vector<32x1xf32>
    %cst_105 = arith.constant 0.00787401571 : f32
    %251 = vector.broadcast %cst_105 : f32 to vector<1x8xf32>
    %252 = arith.mulf %239, %251 : vector<1x8xf32>
    %253 = vector.broadcast %250 : vector<32x1xf32> to vector<32x8xf32>
    %254 = vector.broadcast %252 : vector<1x8xf32> to vector<32x8xf32>
    %255 = arith.mulf %253, %254 : vector<32x8xf32>
    %256 = arith.addf %249, %255 : vector<32x8xf32>
    %257 = arith.addf %256, %56 : vector<32x8xf32>
    %258 = vector.broadcast %64 : vector<32x1xf32> to vector<32x8xf32>
    %259 = arith.addf %257, %258 : vector<32x8xf32>
    %cst_106 = arith.constant 0.000000e+00 : f32
    %260 = vector.broadcast %cst_106 : f32 to vector<32x8xf32>
    %261 = arith.maximumf %259, %260 : vector<32x8xf32>
    %cst_107 = arith.constant dense<0.000000e+00> : vector<25x8xf32>
    %262 = tpu.matmul %65, %261, %cst_107 {dimension_numbers = #tpu.dot_dimension_numbers<[1], [0], [0], [1], [0, 0, 1, 1], [], []>} : vector<25x32xf32>, vector<32x8xf32>, vector<25x8xf32> -> vector<25x8xf32>
    %263 = vector.broadcast %66 : vector<25x1xf32> to vector<25x8xf32>
    %264 = arith.addf %262, %263 : vector<25x8xf32>
    %265 = vector.extract_strided_slice %264 {offsets = [0, 0], sizes = [1, 8], strides = [1, 1]} : vector<25x8xf32> to vector<1x8xf32>
    %cst_108 = arith.constant 0.000000e+00 : f32
    %266 = vector.broadcast %cst_108 : f32 to vector<1x8xf32>
    %267 = arith.subf %266, %265 : vector<1x8xf32>
    %268 = math.exp %267 : vector<1x8xf32>
    %cst_109 = arith.constant 1.000000e+00 : f32
    %269 = vector.broadcast %cst_109 : f32 to vector<1x8xf32>
    %270 = arith.addf %269, %268 : vector<1x8xf32>
    %cst_110 = arith.constant 1.000000e+00 : f32
    %271 = vector.broadcast %cst_110 : f32 to vector<1x8xf32>
    %272 = arith.divf %271, %270 : vector<1x8xf32>
    %cst_111 = arith.constant 9.99999968E-21 : f32
    %273 = vector.broadcast %cst_111 : f32 to vector<1x8xf32>
    %274 = arith.maximumf %272, %273 : vector<1x8xf32>
    %275 = math.log %274 : vector<1x8xf32>
    %cst_112 = arith.constant 2.30258512 : f32
    %276 = vector.broadcast %cst_112 : f32 to vector<1x8xf32>
    %277 = arith.mulf %276, %275 : vector<1x8xf32>
    %278 = math.exp %277 : vector<1x8xf32>
    %cst_113 = arith.constant 2.000000e+00 : f32
    %279 = vector.broadcast %cst_113 : f32 to vector<1x8xf32>
    %280 = arith.mulf %279, %278 : vector<1x8xf32>
    %cst_114 = arith.constant 1.000000e-07 : f32
    %281 = vector.broadcast %cst_114 : f32 to vector<1x8xf32>
    %282 = arith.addf %280, %281 : vector<1x8xf32>
    %283 = vector.extract_strided_slice %264 {offsets = [1, 0], sizes = [16, 8], strides = [1, 1]} : vector<25x8xf32> to vector<16x8xf32>
    %cst_115 = arith.constant 0.000000e+00 : f32
    %284 = vector.broadcast %cst_115 : f32 to vector<16x8xf32>
    %285 = arith.subf %284, %283 : vector<16x8xf32>
    %286 = math.exp %285 : vector<16x8xf32>
    %cst_116 = arith.constant 1.000000e+00 : f32
    %287 = vector.broadcast %cst_116 : f32 to vector<16x8xf32>
    %288 = arith.addf %287, %286 : vector<16x8xf32>
    %cst_117 = arith.constant 1.000000e+00 : f32
    %289 = vector.broadcast %cst_117 : f32 to vector<16x8xf32>
    %290 = arith.divf %289, %288 : vector<16x8xf32>
    %cst_118 = arith.constant 9.99999968E-21 : f32
    %291 = vector.broadcast %cst_118 : f32 to vector<16x8xf32>
    %292 = arith.maximumf %290, %291 : vector<16x8xf32>
    %293 = math.log %292 : vector<16x8xf32>
    %cst_119 = arith.constant 2.30258512 : f32
    %294 = vector.broadcast %cst_119 : f32 to vector<16x8xf32>
    %295 = arith.mulf %294, %293 : vector<16x8xf32>
    %296 = math.exp %295 : vector<16x8xf32>
    %cst_120 = arith.constant 2.000000e+00 : f32
    %297 = vector.broadcast %cst_120 : f32 to vector<16x8xf32>
    %298 = arith.mulf %297, %296 : vector<16x8xf32>
    %cst_121 = arith.constant 1.000000e-07 : f32
    %299 = vector.broadcast %cst_121 : f32 to vector<16x8xf32>
    %300 = arith.addf %298, %299 : vector<16x8xf32>
    %301 = vector.extract_strided_slice %264 {offsets = [17, 0], sizes = [8, 8], strides = [1, 1]} : vector<25x8xf32> to vector<8x8xf32>
    %cst_122 = arith.constant 0.000000e+00 : f32
    %302 = vector.broadcast %cst_122 : f32 to vector<8x8xf32>
    %303 = arith.subf %302, %301 : vector<8x8xf32>
    %304 = math.exp %303 : vector<8x8xf32>
    %cst_123 = arith.constant 1.000000e+00 : f32
    %305 = vector.broadcast %cst_123 : f32 to vector<8x8xf32>
    %306 = arith.addf %305, %304 : vector<8x8xf32>
    %cst_124 = arith.constant 1.000000e+00 : f32
    %307 = vector.broadcast %cst_124 : f32 to vector<8x8xf32>
    %308 = arith.divf %307, %306 : vector<8x8xf32>
    %cst_125 = arith.constant 9.99999968E-21 : f32
    %309 = vector.broadcast %cst_125 : f32 to vector<8x8xf32>
    %310 = arith.maximumf %308, %309 : vector<8x8xf32>
    %311 = math.log %310 : vector<8x8xf32>
    %cst_126 = arith.constant 2.30258512 : f32
    %312 = vector.broadcast %cst_126 : f32 to vector<8x8xf32>
    %313 = arith.mulf %312, %311 : vector<8x8xf32>
    %314 = math.exp %313 : vector<8x8xf32>
    %cst_127 = arith.constant 2.000000e+00 : f32
    %315 = vector.broadcast %cst_127 : f32 to vector<8x8xf32>
    %316 = arith.mulf %315, %314 : vector<8x8xf32>
    %cst_128 = arith.constant 1.000000e-07 : f32
    %317 = vector.broadcast %cst_128 : f32 to vector<8x8xf32>
    %318 = arith.addf %316, %317 : vector<8x8xf32>
    %cst_129 = arith.constant 5.000000e-02 : f32
    %319 = vector.broadcast %cst_129 : f32 to vector<8x8xf32>
    %320 = arith.mulf %318, %319 : vector<8x8xf32>
    %cst_130 = arith.constant 6.900000e+01 : f32
    %321 = vector.broadcast %cst_130 : f32 to vector<1x8xf32>
    %322 = arith.subf %239, %321 : vector<1x8xf32>
    %323 = vector.broadcast %26 : vector<1x1xf32> to vector<1x8xf32>
    %324 = arith.mulf %323, %322 : vector<1x8xf32>
    %cst_131 = arith.constant 1.200000e+01 : f32
    %325 = vector.broadcast %cst_131 : f32 to vector<1x8xf32>
    %326 = arith.divf %324, %325 : vector<1x8xf32>
    %327 = vector.broadcast %27 : vector<1x1xf32> to vector<1x8xf32>
    %328 = arith.addf %326, %327 : vector<1x8xf32>
    %329 = vector.broadcast %15 : vector<1x1xf32> to vector<1x8xf32>
    %330 = arith.addf %328, %329 : vector<1x8xf32>
    %331 = math.exp %330 : vector<1x8xf32>
    %cst_132 = arith.constant 6.900000e+01 : f32
    %332 = vector.broadcast %cst_132 : f32 to vector<1x8xf32>
    %333 = arith.subf %239, %332 : vector<1x8xf32>
    %334 = arith.mulf %28, %19 : vector<1x1xf32>
    %335 = vector.broadcast %334 : vector<1x1xf32> to vector<1x8xf32>
    %336 = arith.addf %333, %335 : vector<1x8xf32>
    %cst_133 = arith.constant 0.693147182 : f32
    %337 = vector.broadcast %cst_133 : f32 to vector<1x8xf32>
    %338 = arith.mulf %337, %336 : vector<1x8xf32>
    %cst_134 = arith.constant 1.200000e+01 : f32
    %339 = vector.broadcast %cst_134 : f32 to vector<1x8xf32>
    %340 = arith.divf %338, %339 : vector<1x8xf32>
    %341 = math.exp %340 : vector<1x8xf32>
    %cst_135 = arith.constant 4.400000e+02 : f32
    %342 = vector.broadcast %cst_135 : f32 to vector<1x8xf32>
    %343 = arith.mulf %342, %341 : vector<1x8xf32>
    %344 = vector.broadcast %331 : vector<1x8xf32> to vector<16x8xf32>
    %345 = vector.broadcast %70 : vector<16x1xf32> to vector<16x8xf32>
    %346 = arith.mulf %344, %345 : vector<16x8xf32>
    %347 = vector.broadcast %70 : vector<16x1xf32> to vector<16x8xf32>
    %348 = arith.mulf %346, %347 : vector<16x8xf32>
    %cst_136 = arith.constant 1.000000e+00 : f32
    %349 = vector.broadcast %cst_136 : f32 to vector<16x8xf32>
    %350 = arith.addf %349, %348 : vector<16x8xf32>
    %351 = math.sqrt %350 : vector<16x8xf32>
    %352 = vector.broadcast %70 : vector<16x1xf32> to vector<16x8xf32>
    %353 = arith.mulf %352, %351 : vector<16x8xf32>
    %354 = vector.broadcast %343 : vector<1x8xf32> to vector<16x8xf32>
    %355 = arith.mulf %354, %353 : vector<16x8xf32>
    %cst_137 = arith.constant 8.000000e+03 : f32
    %356 = vector.broadcast %cst_137 : f32 to vector<16x8xf32>
    %357 = arith.cmpf olt, %355, %356 : vector<16x8xf32>
    %cst_138 = arith.constant 0.000000e+00 : f32
    %358 = vector.broadcast %cst_138 : f32 to vector<16x8xf32>
    %359 = arith.select %357, %300, %358 : vector<16x8xi1>, vector<16x8xf32>
    %cst_139 = arith.constant dense<0.000000e+00> : vector<8xf32>
    %360 = vector.multi_reduction <add>, %359, %cst_139 [0] : vector<16x8xf32> to vector<8xf32>
    %361 = vector.shape_cast %360 : vector<8xf32> to vector<1x8xf32>
    %cst_140 = arith.constant 1.000000e-07 : f32
    %362 = vector.broadcast %cst_140 : f32 to vector<1x8xf32>
    %363 = arith.addf %361, %362 : vector<1x8xf32>
    %364 = vector.broadcast %363 : vector<1x8xf32> to vector<16x8xf32>
    %365 = arith.divf %359, %364 : vector<16x8xf32>
    %366 = vector.broadcast %282 : vector<1x8xf32> to vector<16x8xf32>
    %367 = arith.mulf %366, %365 : vector<16x8xf32>
    %cst_141 = arith.constant 0.00628318544 : f32
    %368 = vector.broadcast %cst_141 : f32 to vector<16x8xf32>
    %369 = arith.mulf %368, %355 : vector<16x8xf32>
    %cst_142 = arith.constant dense<0.000000e+00> : vector<16x8xf32>
    %370 = tpu.matmul %369, %75, %cst_142 {dimension_numbers = #tpu.dot_dimension_numbers<[1], [0], [0], [1], [0, 0, 1, 1], [], []>} : vector<16x8xf32>, vector<8x8xf32>, vector<16x8xf32> -> vector<16x8xf32>
    %cst_143 = arith.constant dense<0.000000e+00> : vector<16x128xf32>
    %371 = tpu.matmul %367, %61, %cst_143 {dimension_numbers = #tpu.dot_dimension_numbers<[1], [0], [0], [1], [0, 0, 1, 1], [], []>} : vector<16x8xf32>, vector<8x128xf32>, vector<16x128xf32> -> vector<16x128xf32>
    %cst_144 = arith.constant dense<0.000000e+00> : vector<16x128xf32>
    %372 = tpu.matmul %355, %61, %cst_144 {dimension_numbers = #tpu.dot_dimension_numbers<[1], [0], [0], [1], [0, 0, 1, 1], [], []>} : vector<16x8xf32>, vector<8x128xf32>, vector<16x128xf32> -> vector<16x128xf32>
    %cst_145 = arith.constant dense<0.000000e+00> : vector<16x128xf32>
    %373 = tpu.matmul %370, %61, %cst_145 {dimension_numbers = #tpu.dot_dimension_numbers<[1], [0], [0], [1], [0, 0, 1, 1], [], []>} : vector<16x8xf32>, vector<8x128xf32>, vector<16x128xf32> -> vector<16x128xf32>
    %cst_146 = arith.constant 3.9269909E-4 : f32
    %374 = vector.broadcast %cst_146 : f32 to vector<16x128xf32>
    %375 = arith.mulf %374, %372 : vector<16x128xf32>
    %376 = vector.broadcast %81 : vector<1x128xf32> to vector<16x128xf32>
    %377 = arith.mulf %375, %376 : vector<16x128xf32>
    %378 = arith.addf %373, %377 : vector<16x128xf32>
    %cst_147 = arith.constant 0.159154937 : f32
    %379 = vector.broadcast %cst_147 : f32 to vector<16x128xf32>
    %380 = arith.mulf %378, %379 : vector<16x128xf32>
    %381 = math.floor %380 : vector<16x128xf32>
    %cst_148 = arith.constant 6.28318548 : f32
    %382 = vector.broadcast %cst_148 : f32 to vector<16x128xf32>
    %383 = arith.mulf %382, %381 : vector<16x128xf32>
    %384 = arith.subf %378, %383 : vector<16x128xf32>
    %385 = math.sin %384 : vector<16x128xf32>
    %386 = arith.mulf %371, %385 : vector<16x128xf32>
    %cst_149 = arith.constant dense<0.000000e+00> : vector<128xf32>
    %387 = vector.multi_reduction <add>, %386, %cst_149 [0] : vector<16x128xf32> to vector<128xf32>
    %388 = vector.shape_cast %387 : vector<128xf32> to vector<1x128xf32>
    %cst_150 = arith.constant dense<0.000000e+00> : vector<8x128xf32>
    %389 = tpu.matmul %320, %61, %cst_150 {dimension_numbers = #tpu.dot_dimension_numbers<[1], [0], [0], [1], [0, 0, 1, 1], [], []>} : vector<8x8xf32>, vector<8x128xf32>, vector<8x128xf32> -> vector<8x128xf32>
    %390 = arith.mulf %389, %62 : vector<8x128xf32>
    %cst_151 = arith.constant dense<0.000000e+00> : vector<128xf32>
    %391 = vector.multi_reduction <add>, %390, %cst_151 [0] : vector<8x128xf32> to vector<128xf32>
    %392 = vector.shape_cast %391 : vector<128xf32> to vector<1x128xf32>
    %393 = arith.addf %238, %388 : vector<1x128xf32>
    %394 = arith.addf %393, %392 : vector<1x128xf32>
    %395 = vector.extract_strided_slice %58 {offsets = [2, 0], sizes = [1, 8], strides = [1, 1]} : vector<4x8xf32> to vector<1x8xf32>
    %396 = vector.extract_strided_slice %60 {offsets = [2, 0], sizes = [1, 8], strides = [1, 1]} : vector<4x8xf32> to vector<1x8xf32>
    %397 = vector.extract_strided_slice %63 {offsets = [0, 0], sizes = [32, 1], strides = [1, 1]} : vector<32x3xf32> to vector<32x1xf32>
    %398 = vector.broadcast %397 : vector<32x1xf32> to vector<32x8xf32>
    %399 = vector.broadcast %395 : vector<1x8xf32> to vector<32x8xf32>
    %400 = arith.mulf %398, %399 : vector<32x8xf32>
    %401 = vector.extract_strided_slice %63 {offsets = [0, 1], sizes = [32, 1], strides = [1, 1]} : vector<32x3xf32> to vector<32x1xf32>
    %402 = vector.broadcast %401 : vector<32x1xf32> to vector<32x8xf32>
    %403 = vector.broadcast %396 : vector<1x8xf32> to vector<32x8xf32>
    %404 = arith.mulf %402, %403 : vector<32x8xf32>
    %405 = arith.addf %400, %404 : vector<32x8xf32>
    %406 = vector.extract_strided_slice %63 {offsets = [0, 2], sizes = [32, 1], strides = [1, 1]} : vector<32x3xf32> to vector<32x1xf32>
    %cst_152 = arith.constant 0.00787401571 : f32
    %407 = vector.broadcast %cst_152 : f32 to vector<1x8xf32>
    %408 = arith.mulf %395, %407 : vector<1x8xf32>
    %409 = vector.broadcast %406 : vector<32x1xf32> to vector<32x8xf32>
    %410 = vector.broadcast %408 : vector<1x8xf32> to vector<32x8xf32>
    %411 = arith.mulf %409, %410 : vector<32x8xf32>
    %412 = arith.addf %405, %411 : vector<32x8xf32>
    %413 = arith.addf %412, %56 : vector<32x8xf32>
    %414 = vector.broadcast %64 : vector<32x1xf32> to vector<32x8xf32>
    %415 = arith.addf %413, %414 : vector<32x8xf32>
    %cst_153 = arith.constant 0.000000e+00 : f32
    %416 = vector.broadcast %cst_153 : f32 to vector<32x8xf32>
    %417 = arith.maximumf %415, %416 : vector<32x8xf32>
    %cst_154 = arith.constant dense<0.000000e+00> : vector<25x8xf32>
    %418 = tpu.matmul %65, %417, %cst_154 {dimension_numbers = #tpu.dot_dimension_numbers<[1], [0], [0], [1], [0, 0, 1, 1], [], []>} : vector<25x32xf32>, vector<32x8xf32>, vector<25x8xf32> -> vector<25x8xf32>
    %419 = vector.broadcast %66 : vector<25x1xf32> to vector<25x8xf32>
    %420 = arith.addf %418, %419 : vector<25x8xf32>
    %421 = vector.extract_strided_slice %420 {offsets = [0, 0], sizes = [1, 8], strides = [1, 1]} : vector<25x8xf32> to vector<1x8xf32>
    %cst_155 = arith.constant 0.000000e+00 : f32
    %422 = vector.broadcast %cst_155 : f32 to vector<1x8xf32>
    %423 = arith.subf %422, %421 : vector<1x8xf32>
    %424 = math.exp %423 : vector<1x8xf32>
    %cst_156 = arith.constant 1.000000e+00 : f32
    %425 = vector.broadcast %cst_156 : f32 to vector<1x8xf32>
    %426 = arith.addf %425, %424 : vector<1x8xf32>
    %cst_157 = arith.constant 1.000000e+00 : f32
    %427 = vector.broadcast %cst_157 : f32 to vector<1x8xf32>
    %428 = arith.divf %427, %426 : vector<1x8xf32>
    %cst_158 = arith.constant 9.99999968E-21 : f32
    %429 = vector.broadcast %cst_158 : f32 to vector<1x8xf32>
    %430 = arith.maximumf %428, %429 : vector<1x8xf32>
    %431 = math.log %430 : vector<1x8xf32>
    %cst_159 = arith.constant 2.30258512 : f32
    %432 = vector.broadcast %cst_159 : f32 to vector<1x8xf32>
    %433 = arith.mulf %432, %431 : vector<1x8xf32>
    %434 = math.exp %433 : vector<1x8xf32>
    %cst_160 = arith.constant 2.000000e+00 : f32
    %435 = vector.broadcast %cst_160 : f32 to vector<1x8xf32>
    %436 = arith.mulf %435, %434 : vector<1x8xf32>
    %cst_161 = arith.constant 1.000000e-07 : f32
    %437 = vector.broadcast %cst_161 : f32 to vector<1x8xf32>
    %438 = arith.addf %436, %437 : vector<1x8xf32>
    %439 = vector.extract_strided_slice %420 {offsets = [1, 0], sizes = [16, 8], strides = [1, 1]} : vector<25x8xf32> to vector<16x8xf32>
    %cst_162 = arith.constant 0.000000e+00 : f32
    %440 = vector.broadcast %cst_162 : f32 to vector<16x8xf32>
    %441 = arith.subf %440, %439 : vector<16x8xf32>
    %442 = math.exp %441 : vector<16x8xf32>
    %cst_163 = arith.constant 1.000000e+00 : f32
    %443 = vector.broadcast %cst_163 : f32 to vector<16x8xf32>
    %444 = arith.addf %443, %442 : vector<16x8xf32>
    %cst_164 = arith.constant 1.000000e+00 : f32
    %445 = vector.broadcast %cst_164 : f32 to vector<16x8xf32>
    %446 = arith.divf %445, %444 : vector<16x8xf32>
    %cst_165 = arith.constant 9.99999968E-21 : f32
    %447 = vector.broadcast %cst_165 : f32 to vector<16x8xf32>
    %448 = arith.maximumf %446, %447 : vector<16x8xf32>
    %449 = math.log %448 : vector<16x8xf32>
    %cst_166 = arith.constant 2.30258512 : f32
    %450 = vector.broadcast %cst_166 : f32 to vector<16x8xf32>
    %451 = arith.mulf %450, %449 : vector<16x8xf32>
    %452 = math.exp %451 : vector<16x8xf32>
    %cst_167 = arith.constant 2.000000e+00 : f32
    %453 = vector.broadcast %cst_167 : f32 to vector<16x8xf32>
    %454 = arith.mulf %453, %452 : vector<16x8xf32>
    %cst_168 = arith.constant 1.000000e-07 : f32
    %455 = vector.broadcast %cst_168 : f32 to vector<16x8xf32>
    %456 = arith.addf %454, %455 : vector<16x8xf32>
    %457 = vector.extract_strided_slice %420 {offsets = [17, 0], sizes = [8, 8], strides = [1, 1]} : vector<25x8xf32> to vector<8x8xf32>
    %cst_169 = arith.constant 0.000000e+00 : f32
    %458 = vector.broadcast %cst_169 : f32 to vector<8x8xf32>
    %459 = arith.subf %458, %457 : vector<8x8xf32>
    %460 = math.exp %459 : vector<8x8xf32>
    %cst_170 = arith.constant 1.000000e+00 : f32
    %461 = vector.broadcast %cst_170 : f32 to vector<8x8xf32>
    %462 = arith.addf %461, %460 : vector<8x8xf32>
    %cst_171 = arith.constant 1.000000e+00 : f32
    %463 = vector.broadcast %cst_171 : f32 to vector<8x8xf32>
    %464 = arith.divf %463, %462 : vector<8x8xf32>
    %cst_172 = arith.constant 9.99999968E-21 : f32
    %465 = vector.broadcast %cst_172 : f32 to vector<8x8xf32>
    %466 = arith.maximumf %464, %465 : vector<8x8xf32>
    %467 = math.log %466 : vector<8x8xf32>
    %cst_173 = arith.constant 2.30258512 : f32
    %468 = vector.broadcast %cst_173 : f32 to vector<8x8xf32>
    %469 = arith.mulf %468, %467 : vector<8x8xf32>
    %470 = math.exp %469 : vector<8x8xf32>
    %cst_174 = arith.constant 2.000000e+00 : f32
    %471 = vector.broadcast %cst_174 : f32 to vector<8x8xf32>
    %472 = arith.mulf %471, %470 : vector<8x8xf32>
    %cst_175 = arith.constant 1.000000e-07 : f32
    %473 = vector.broadcast %cst_175 : f32 to vector<8x8xf32>
    %474 = arith.addf %472, %473 : vector<8x8xf32>
    %cst_176 = arith.constant 5.000000e-02 : f32
    %475 = vector.broadcast %cst_176 : f32 to vector<8x8xf32>
    %476 = arith.mulf %474, %475 : vector<8x8xf32>
    %cst_177 = arith.constant 6.900000e+01 : f32
    %477 = vector.broadcast %cst_177 : f32 to vector<1x8xf32>
    %478 = arith.subf %395, %477 : vector<1x8xf32>
    %479 = vector.broadcast %26 : vector<1x1xf32> to vector<1x8xf32>
    %480 = arith.mulf %479, %478 : vector<1x8xf32>
    %cst_178 = arith.constant 1.200000e+01 : f32
    %481 = vector.broadcast %cst_178 : f32 to vector<1x8xf32>
    %482 = arith.divf %480, %481 : vector<1x8xf32>
    %483 = vector.broadcast %27 : vector<1x1xf32> to vector<1x8xf32>
    %484 = arith.addf %482, %483 : vector<1x8xf32>
    %485 = vector.broadcast %15 : vector<1x1xf32> to vector<1x8xf32>
    %486 = arith.addf %484, %485 : vector<1x8xf32>
    %487 = math.exp %486 : vector<1x8xf32>
    %cst_179 = arith.constant 6.900000e+01 : f32
    %488 = vector.broadcast %cst_179 : f32 to vector<1x8xf32>
    %489 = arith.subf %395, %488 : vector<1x8xf32>
    %490 = arith.mulf %28, %19 : vector<1x1xf32>
    %491 = vector.broadcast %490 : vector<1x1xf32> to vector<1x8xf32>
    %492 = arith.addf %489, %491 : vector<1x8xf32>
    %cst_180 = arith.constant 0.693147182 : f32
    %493 = vector.broadcast %cst_180 : f32 to vector<1x8xf32>
    %494 = arith.mulf %493, %492 : vector<1x8xf32>
    %cst_181 = arith.constant 1.200000e+01 : f32
    %495 = vector.broadcast %cst_181 : f32 to vector<1x8xf32>
    %496 = arith.divf %494, %495 : vector<1x8xf32>
    %497 = math.exp %496 : vector<1x8xf32>
    %cst_182 = arith.constant 4.400000e+02 : f32
    %498 = vector.broadcast %cst_182 : f32 to vector<1x8xf32>
    %499 = arith.mulf %498, %497 : vector<1x8xf32>
    %500 = vector.broadcast %487 : vector<1x8xf32> to vector<16x8xf32>
    %501 = vector.broadcast %70 : vector<16x1xf32> to vector<16x8xf32>
    %502 = arith.mulf %500, %501 : vector<16x8xf32>
    %503 = vector.broadcast %70 : vector<16x1xf32> to vector<16x8xf32>
    %504 = arith.mulf %502, %503 : vector<16x8xf32>
    %cst_183 = arith.constant 1.000000e+00 : f32
    %505 = vector.broadcast %cst_183 : f32 to vector<16x8xf32>
    %506 = arith.addf %505, %504 : vector<16x8xf32>
    %507 = math.sqrt %506 : vector<16x8xf32>
    %508 = vector.broadcast %70 : vector<16x1xf32> to vector<16x8xf32>
    %509 = arith.mulf %508, %507 : vector<16x8xf32>
    %510 = vector.broadcast %499 : vector<1x8xf32> to vector<16x8xf32>
    %511 = arith.mulf %510, %509 : vector<16x8xf32>
    %cst_184 = arith.constant 8.000000e+03 : f32
    %512 = vector.broadcast %cst_184 : f32 to vector<16x8xf32>
    %513 = arith.cmpf olt, %511, %512 : vector<16x8xf32>
    %cst_185 = arith.constant 0.000000e+00 : f32
    %514 = vector.broadcast %cst_185 : f32 to vector<16x8xf32>
    %515 = arith.select %513, %456, %514 : vector<16x8xi1>, vector<16x8xf32>
    %cst_186 = arith.constant dense<0.000000e+00> : vector<8xf32>
    %516 = vector.multi_reduction <add>, %515, %cst_186 [0] : vector<16x8xf32> to vector<8xf32>
    %517 = vector.shape_cast %516 : vector<8xf32> to vector<1x8xf32>
    %cst_187 = arith.constant 1.000000e-07 : f32
    %518 = vector.broadcast %cst_187 : f32 to vector<1x8xf32>
    %519 = arith.addf %517, %518 : vector<1x8xf32>
    %520 = vector.broadcast %519 : vector<1x8xf32> to vector<16x8xf32>
    %521 = arith.divf %515, %520 : vector<16x8xf32>
    %522 = vector.broadcast %438 : vector<1x8xf32> to vector<16x8xf32>
    %523 = arith.mulf %522, %521 : vector<16x8xf32>
    %cst_188 = arith.constant 0.00628318544 : f32
    %524 = vector.broadcast %cst_188 : f32 to vector<16x8xf32>
    %525 = arith.mulf %524, %511 : vector<16x8xf32>
    %cst_189 = arith.constant dense<0.000000e+00> : vector<16x8xf32>
    %526 = tpu.matmul %525, %75, %cst_189 {dimension_numbers = #tpu.dot_dimension_numbers<[1], [0], [0], [1], [0, 0, 1, 1], [], []>} : vector<16x8xf32>, vector<8x8xf32>, vector<16x8xf32> -> vector<16x8xf32>
    %cst_190 = arith.constant dense<0.000000e+00> : vector<16x128xf32>
    %527 = tpu.matmul %523, %61, %cst_190 {dimension_numbers = #tpu.dot_dimension_numbers<[1], [0], [0], [1], [0, 0, 1, 1], [], []>} : vector<16x8xf32>, vector<8x128xf32>, vector<16x128xf32> -> vector<16x128xf32>
    %cst_191 = arith.constant dense<0.000000e+00> : vector<16x128xf32>
    %528 = tpu.matmul %511, %61, %cst_191 {dimension_numbers = #tpu.dot_dimension_numbers<[1], [0], [0], [1], [0, 0, 1, 1], [], []>} : vector<16x8xf32>, vector<8x128xf32>, vector<16x128xf32> -> vector<16x128xf32>
    %cst_192 = arith.constant dense<0.000000e+00> : vector<16x128xf32>
    %529 = tpu.matmul %526, %61, %cst_192 {dimension_numbers = #tpu.dot_dimension_numbers<[1], [0], [0], [1], [0, 0, 1, 1], [], []>} : vector<16x8xf32>, vector<8x128xf32>, vector<16x128xf32> -> vector<16x128xf32>
    %cst_193 = arith.constant 3.9269909E-4 : f32
    %530 = vector.broadcast %cst_193 : f32 to vector<16x128xf32>
    %531 = arith.mulf %530, %528 : vector<16x128xf32>
    %532 = vector.broadcast %81 : vector<1x128xf32> to vector<16x128xf32>
    %533 = arith.mulf %531, %532 : vector<16x128xf32>
    %534 = arith.addf %529, %533 : vector<16x128xf32>
    %cst_194 = arith.constant 0.159154937 : f32
    %535 = vector.broadcast %cst_194 : f32 to vector<16x128xf32>
    %536 = arith.mulf %534, %535 : vector<16x128xf32>
    %537 = math.floor %536 : vector<16x128xf32>
    %cst_195 = arith.constant 6.28318548 : f32
    %538 = vector.broadcast %cst_195 : f32 to vector<16x128xf32>
    %539 = arith.mulf %538, %537 : vector<16x128xf32>
    %540 = arith.subf %534, %539 : vector<16x128xf32>
    %541 = math.sin %540 : vector<16x128xf32>
    %542 = arith.mulf %527, %541 : vector<16x128xf32>
    %cst_196 = arith.constant dense<0.000000e+00> : vector<128xf32>
    %543 = vector.multi_reduction <add>, %542, %cst_196 [0] : vector<16x128xf32> to vector<128xf32>
    %544 = vector.shape_cast %543 : vector<128xf32> to vector<1x128xf32>
    %cst_197 = arith.constant dense<0.000000e+00> : vector<8x128xf32>
    %545 = tpu.matmul %476, %61, %cst_197 {dimension_numbers = #tpu.dot_dimension_numbers<[1], [0], [0], [1], [0, 0, 1, 1], [], []>} : vector<8x8xf32>, vector<8x128xf32>, vector<8x128xf32> -> vector<8x128xf32>
    %546 = arith.mulf %545, %62 : vector<8x128xf32>
    %cst_198 = arith.constant dense<0.000000e+00> : vector<128xf32>
    %547 = vector.multi_reduction <add>, %546, %cst_198 [0] : vector<8x128xf32> to vector<128xf32>
    %548 = vector.shape_cast %547 : vector<128xf32> to vector<1x128xf32>
    %549 = arith.addf %394, %544 : vector<1x128xf32>
    %550 = arith.addf %549, %548 : vector<1x128xf32>
    %551 = vector.extract_strided_slice %58 {offsets = [3, 0], sizes = [1, 8], strides = [1, 1]} : vector<4x8xf32> to vector<1x8xf32>
    %552 = vector.extract_strided_slice %60 {offsets = [3, 0], sizes = [1, 8], strides = [1, 1]} : vector<4x8xf32> to vector<1x8xf32>
    %553 = vector.extract_strided_slice %63 {offsets = [0, 0], sizes = [32, 1], strides = [1, 1]} : vector<32x3xf32> to vector<32x1xf32>
    %554 = vector.broadcast %553 : vector<32x1xf32> to vector<32x8xf32>
    %555 = vector.broadcast %551 : vector<1x8xf32> to vector<32x8xf32>
    %556 = arith.mulf %554, %555 : vector<32x8xf32>
    %557 = vector.extract_strided_slice %63 {offsets = [0, 1], sizes = [32, 1], strides = [1, 1]} : vector<32x3xf32> to vector<32x1xf32>
    %558 = vector.broadcast %557 : vector<32x1xf32> to vector<32x8xf32>
    %559 = vector.broadcast %552 : vector<1x8xf32> to vector<32x8xf32>
    %560 = arith.mulf %558, %559 : vector<32x8xf32>
    %561 = arith.addf %556, %560 : vector<32x8xf32>
    %562 = vector.extract_strided_slice %63 {offsets = [0, 2], sizes = [32, 1], strides = [1, 1]} : vector<32x3xf32> to vector<32x1xf32>
    %cst_199 = arith.constant 0.00787401571 : f32
    %563 = vector.broadcast %cst_199 : f32 to vector<1x8xf32>
    %564 = arith.mulf %551, %563 : vector<1x8xf32>
    %565 = vector.broadcast %562 : vector<32x1xf32> to vector<32x8xf32>
    %566 = vector.broadcast %564 : vector<1x8xf32> to vector<32x8xf32>
    %567 = arith.mulf %565, %566 : vector<32x8xf32>
    %568 = arith.addf %561, %567 : vector<32x8xf32>
    %569 = arith.addf %568, %56 : vector<32x8xf32>
    %570 = vector.broadcast %64 : vector<32x1xf32> to vector<32x8xf32>
    %571 = arith.addf %569, %570 : vector<32x8xf32>
    %cst_200 = arith.constant 0.000000e+00 : f32
    %572 = vector.broadcast %cst_200 : f32 to vector<32x8xf32>
    %573 = arith.maximumf %571, %572 : vector<32x8xf32>
    %cst_201 = arith.constant dense<0.000000e+00> : vector<25x8xf32>
    %574 = tpu.matmul %65, %573, %cst_201 {dimension_numbers = #tpu.dot_dimension_numbers<[1], [0], [0], [1], [0, 0, 1, 1], [], []>} : vector<25x32xf32>, vector<32x8xf32>, vector<25x8xf32> -> vector<25x8xf32>
    %575 = vector.broadcast %66 : vector<25x1xf32> to vector<25x8xf32>
    %576 = arith.addf %574, %575 : vector<25x8xf32>
    %577 = vector.extract_strided_slice %576 {offsets = [0, 0], sizes = [1, 8], strides = [1, 1]} : vector<25x8xf32> to vector<1x8xf32>
    %cst_202 = arith.constant 0.000000e+00 : f32
    %578 = vector.broadcast %cst_202 : f32 to vector<1x8xf32>
    %579 = arith.subf %578, %577 : vector<1x8xf32>
    %580 = math.exp %579 : vector<1x8xf32>
    %cst_203 = arith.constant 1.000000e+00 : f32
    %581 = vector.broadcast %cst_203 : f32 to vector<1x8xf32>
    %582 = arith.addf %581, %580 : vector<1x8xf32>
    %cst_204 = arith.constant 1.000000e+00 : f32
    %583 = vector.broadcast %cst_204 : f32 to vector<1x8xf32>
    %584 = arith.divf %583, %582 : vector<1x8xf32>
    %cst_205 = arith.constant 9.99999968E-21 : f32
    %585 = vector.broadcast %cst_205 : f32 to vector<1x8xf32>
    %586 = arith.maximumf %584, %585 : vector<1x8xf32>
    %587 = math.log %586 : vector<1x8xf32>
    %cst_206 = arith.constant 2.30258512 : f32
    %588 = vector.broadcast %cst_206 : f32 to vector<1x8xf32>
    %589 = arith.mulf %588, %587 : vector<1x8xf32>
    %590 = math.exp %589 : vector<1x8xf32>
    %cst_207 = arith.constant 2.000000e+00 : f32
    %591 = vector.broadcast %cst_207 : f32 to vector<1x8xf32>
    %592 = arith.mulf %591, %590 : vector<1x8xf32>
    %cst_208 = arith.constant 1.000000e-07 : f32
    %593 = vector.broadcast %cst_208 : f32 to vector<1x8xf32>
    %594 = arith.addf %592, %593 : vector<1x8xf32>
    %595 = vector.extract_strided_slice %576 {offsets = [1, 0], sizes = [16, 8], strides = [1, 1]} : vector<25x8xf32> to vector<16x8xf32>
    %cst_209 = arith.constant 0.000000e+00 : f32
    %596 = vector.broadcast %cst_209 : f32 to vector<16x8xf32>
    %597 = arith.subf %596, %595 : vector<16x8xf32>
    %598 = math.exp %597 : vector<16x8xf32>
    %cst_210 = arith.constant 1.000000e+00 : f32
    %599 = vector.broadcast %cst_210 : f32 to vector<16x8xf32>
    %600 = arith.addf %599, %598 : vector<16x8xf32>
    %cst_211 = arith.constant 1.000000e+00 : f32
    %601 = vector.broadcast %cst_211 : f32 to vector<16x8xf32>
    %602 = arith.divf %601, %600 : vector<16x8xf32>
    %cst_212 = arith.constant 9.99999968E-21 : f32
    %603 = vector.broadcast %cst_212 : f32 to vector<16x8xf32>
    %604 = arith.maximumf %602, %603 : vector<16x8xf32>
    %605 = math.log %604 : vector<16x8xf32>
    %cst_213 = arith.constant 2.30258512 : f32
    %606 = vector.broadcast %cst_213 : f32 to vector<16x8xf32>
    %607 = arith.mulf %606, %605 : vector<16x8xf32>
    %608 = math.exp %607 : vector<16x8xf32>
    %cst_214 = arith.constant 2.000000e+00 : f32
    %609 = vector.broadcast %cst_214 : f32 to vector<16x8xf32>
    %610 = arith.mulf %609, %608 : vector<16x8xf32>
    %cst_215 = arith.constant 1.000000e-07 : f32
    %611 = vector.broadcast %cst_215 : f32 to vector<16x8xf32>
    %612 = arith.addf %610, %611 : vector<16x8xf32>
    %613 = vector.extract_strided_slice %576 {offsets = [17, 0], sizes = [8, 8], strides = [1, 1]} : vector<25x8xf32> to vector<8x8xf32>
    %cst_216 = arith.constant 0.000000e+00 : f32
    %614 = vector.broadcast %cst_216 : f32 to vector<8x8xf32>
    %615 = arith.subf %614, %613 : vector<8x8xf32>
    %616 = math.exp %615 : vector<8x8xf32>
    %cst_217 = arith.constant 1.000000e+00 : f32
    %617 = vector.broadcast %cst_217 : f32 to vector<8x8xf32>
    %618 = arith.addf %617, %616 : vector<8x8xf32>
    %cst_218 = arith.constant 1.000000e+00 : f32
    %619 = vector.broadcast %cst_218 : f32 to vector<8x8xf32>
    %620 = arith.divf %619, %618 : vector<8x8xf32>
    %cst_219 = arith.constant 9.99999968E-21 : f32
    %621 = vector.broadcast %cst_219 : f32 to vector<8x8xf32>
    %622 = arith.maximumf %620, %621 : vector<8x8xf32>
    %623 = math.log %622 : vector<8x8xf32>
    %cst_220 = arith.constant 2.30258512 : f32
    %624 = vector.broadcast %cst_220 : f32 to vector<8x8xf32>
    %625 = arith.mulf %624, %623 : vector<8x8xf32>
    %626 = math.exp %625 : vector<8x8xf32>
    %cst_221 = arith.constant 2.000000e+00 : f32
    %627 = vector.broadcast %cst_221 : f32 to vector<8x8xf32>
    %628 = arith.mulf %627, %626 : vector<8x8xf32>
    %cst_222 = arith.constant 1.000000e-07 : f32
    %629 = vector.broadcast %cst_222 : f32 to vector<8x8xf32>
    %630 = arith.addf %628, %629 : vector<8x8xf32>
    %cst_223 = arith.constant 5.000000e-02 : f32
    %631 = vector.broadcast %cst_223 : f32 to vector<8x8xf32>
    %632 = arith.mulf %630, %631 : vector<8x8xf32>
    %cst_224 = arith.constant 6.900000e+01 : f32
    %633 = vector.broadcast %cst_224 : f32 to vector<1x8xf32>
    %634 = arith.subf %551, %633 : vector<1x8xf32>
    %635 = vector.broadcast %26 : vector<1x1xf32> to vector<1x8xf32>
    %636 = arith.mulf %635, %634 : vector<1x8xf32>
    %cst_225 = arith.constant 1.200000e+01 : f32
    %637 = vector.broadcast %cst_225 : f32 to vector<1x8xf32>
    %638 = arith.divf %636, %637 : vector<1x8xf32>
    %639 = vector.broadcast %27 : vector<1x1xf32> to vector<1x8xf32>
    %640 = arith.addf %638, %639 : vector<1x8xf32>
    %641 = vector.broadcast %15 : vector<1x1xf32> to vector<1x8xf32>
    %642 = arith.addf %640, %641 : vector<1x8xf32>
    %643 = math.exp %642 : vector<1x8xf32>
    %cst_226 = arith.constant 6.900000e+01 : f32
    %644 = vector.broadcast %cst_226 : f32 to vector<1x8xf32>
    %645 = arith.subf %551, %644 : vector<1x8xf32>
    %646 = arith.mulf %28, %19 : vector<1x1xf32>
    %647 = vector.broadcast %646 : vector<1x1xf32> to vector<1x8xf32>
    %648 = arith.addf %645, %647 : vector<1x8xf32>
    %cst_227 = arith.constant 0.693147182 : f32
    %649 = vector.broadcast %cst_227 : f32 to vector<1x8xf32>
    %650 = arith.mulf %649, %648 : vector<1x8xf32>
    %cst_228 = arith.constant 1.200000e+01 : f32
    %651 = vector.broadcast %cst_228 : f32 to vector<1x8xf32>
    %652 = arith.divf %650, %651 : vector<1x8xf32>
    %653 = math.exp %652 : vector<1x8xf32>
    %cst_229 = arith.constant 4.400000e+02 : f32
    %654 = vector.broadcast %cst_229 : f32 to vector<1x8xf32>
    %655 = arith.mulf %654, %653 : vector<1x8xf32>
    %656 = vector.broadcast %643 : vector<1x8xf32> to vector<16x8xf32>
    %657 = vector.broadcast %70 : vector<16x1xf32> to vector<16x8xf32>
    %658 = arith.mulf %656, %657 : vector<16x8xf32>
    %659 = vector.broadcast %70 : vector<16x1xf32> to vector<16x8xf32>
    %660 = arith.mulf %658, %659 : vector<16x8xf32>
    %cst_230 = arith.constant 1.000000e+00 : f32
    %661 = vector.broadcast %cst_230 : f32 to vector<16x8xf32>
    %662 = arith.addf %661, %660 : vector<16x8xf32>
    %663 = math.sqrt %662 : vector<16x8xf32>
    %664 = vector.broadcast %70 : vector<16x1xf32> to vector<16x8xf32>
    %665 = arith.mulf %664, %663 : vector<16x8xf32>
    %666 = vector.broadcast %655 : vector<1x8xf32> to vector<16x8xf32>
    %667 = arith.mulf %666, %665 : vector<16x8xf32>
    %cst_231 = arith.constant 8.000000e+03 : f32
    %668 = vector.broadcast %cst_231 : f32 to vector<16x8xf32>
    %669 = arith.cmpf olt, %667, %668 : vector<16x8xf32>
    %cst_232 = arith.constant 0.000000e+00 : f32
    %670 = vector.broadcast %cst_232 : f32 to vector<16x8xf32>
    %671 = arith.select %669, %612, %670 : vector<16x8xi1>, vector<16x8xf32>
    %cst_233 = arith.constant dense<0.000000e+00> : vector<8xf32>
    %672 = vector.multi_reduction <add>, %671, %cst_233 [0] : vector<16x8xf32> to vector<8xf32>
    %673 = vector.shape_cast %672 : vector<8xf32> to vector<1x8xf32>
    %cst_234 = arith.constant 1.000000e-07 : f32
    %674 = vector.broadcast %cst_234 : f32 to vector<1x8xf32>
    %675 = arith.addf %673, %674 : vector<1x8xf32>
    %676 = vector.broadcast %675 : vector<1x8xf32> to vector<16x8xf32>
    %677 = arith.divf %671, %676 : vector<16x8xf32>
    %678 = vector.broadcast %594 : vector<1x8xf32> to vector<16x8xf32>
    %679 = arith.mulf %678, %677 : vector<16x8xf32>
    %cst_235 = arith.constant 0.00628318544 : f32
    %680 = vector.broadcast %cst_235 : f32 to vector<16x8xf32>
    %681 = arith.mulf %680, %667 : vector<16x8xf32>
    %cst_236 = arith.constant dense<0.000000e+00> : vector<16x8xf32>
    %682 = tpu.matmul %681, %75, %cst_236 {dimension_numbers = #tpu.dot_dimension_numbers<[1], [0], [0], [1], [0, 0, 1, 1], [], []>} : vector<16x8xf32>, vector<8x8xf32>, vector<16x8xf32> -> vector<16x8xf32>
    %cst_237 = arith.constant dense<0.000000e+00> : vector<16x128xf32>
    %683 = tpu.matmul %679, %61, %cst_237 {dimension_numbers = #tpu.dot_dimension_numbers<[1], [0], [0], [1], [0, 0, 1, 1], [], []>} : vector<16x8xf32>, vector<8x128xf32>, vector<16x128xf32> -> vector<16x128xf32>
    %cst_238 = arith.constant dense<0.000000e+00> : vector<16x128xf32>
    %684 = tpu.matmul %667, %61, %cst_238 {dimension_numbers = #tpu.dot_dimension_numbers<[1], [0], [0], [1], [0, 0, 1, 1], [], []>} : vector<16x8xf32>, vector<8x128xf32>, vector<16x128xf32> -> vector<16x128xf32>
    %cst_239 = arith.constant dense<0.000000e+00> : vector<16x128xf32>
    %685 = tpu.matmul %682, %61, %cst_239 {dimension_numbers = #tpu.dot_dimension_numbers<[1], [0], [0], [1], [0, 0, 1, 1], [], []>} : vector<16x8xf32>, vector<8x128xf32>, vector<16x128xf32> -> vector<16x128xf32>
    %cst_240 = arith.constant 3.9269909E-4 : f32
    %686 = vector.broadcast %cst_240 : f32 to vector<16x128xf32>
    %687 = arith.mulf %686, %684 : vector<16x128xf32>
    %688 = vector.broadcast %81 : vector<1x128xf32> to vector<16x128xf32>
    %689 = arith.mulf %687, %688 : vector<16x128xf32>
    %690 = arith.addf %685, %689 : vector<16x128xf32>
    %cst_241 = arith.constant 0.159154937 : f32
    %691 = vector.broadcast %cst_241 : f32 to vector<16x128xf32>
    %692 = arith.mulf %690, %691 : vector<16x128xf32>
    %693 = math.floor %692 : vector<16x128xf32>
    %cst_242 = arith.constant 6.28318548 : f32
    %694 = vector.broadcast %cst_242 : f32 to vector<16x128xf32>
    %695 = arith.mulf %694, %693 : vector<16x128xf32>
    %696 = arith.subf %690, %695 : vector<16x128xf32>
    %697 = math.sin %696 : vector<16x128xf32>
    %698 = arith.mulf %683, %697 : vector<16x128xf32>
    %cst_243 = arith.constant dense<0.000000e+00> : vector<128xf32>
    %699 = vector.multi_reduction <add>, %698, %cst_243 [0] : vector<16x128xf32> to vector<128xf32>
    %700 = vector.shape_cast %699 : vector<128xf32> to vector<1x128xf32>
    %cst_244 = arith.constant dense<0.000000e+00> : vector<8x128xf32>
    %701 = tpu.matmul %632, %61, %cst_244 {dimension_numbers = #tpu.dot_dimension_numbers<[1], [0], [0], [1], [0, 0, 1, 1], [], []>} : vector<8x8xf32>, vector<8x128xf32>, vector<8x128xf32> -> vector<8x128xf32>
    %702 = arith.mulf %701, %62 : vector<8x128xf32>
    %cst_245 = arith.constant dense<0.000000e+00> : vector<128xf32>
    %703 = vector.multi_reduction <add>, %702, %cst_245 [0] : vector<8x128xf32> to vector<128xf32>
    %704 = vector.shape_cast %703 : vector<128xf32> to vector<1x128xf32>
    %705 = arith.addf %550, %700 : vector<1x128xf32>
    %706 = arith.addf %705, %704 : vector<1x128xf32>
    %cst_246 = arith.constant 0.000000e+00 : f32
    %707 = vector.broadcast %cst_246 : f32 to vector<1x128xf32>
    %c1_i32_247 = arith.constant 1 : i32
    %708 = tpu.dynamic_rotate %706 by %c1_i32_247 dim 1 : vector<1x128xf32>, i32 -> vector<1x128xf32>
    %c1_i32_248 = arith.constant 1 : i32
    %709 = vector.broadcast %c1_i32_248 : i32 to vector<1x128xi32>
    %710 = arith.cmpi sge, %76, %709 : vector<1x128xi32>
    %cst_249 = arith.constant 0.000000e+00 : f32
    %711 = vector.broadcast %cst_249 : f32 to vector<1x128xf32>
    %712 = arith.select %710, %708, %711 : vector<1x128xi1>, vector<1x128xf32>
    %713 = vector.extract_strided_slice %24 {offsets = [0, 1], sizes = [1, 1], strides = [1, 1]} : vector<1x16xf32> to vector<1x1xf32>
    %714 = vector.broadcast %713 : vector<1x1xf32> to vector<1x128xf32>
    %715 = arith.mulf %714, %712 : vector<1x128xf32>
    %716 = arith.addf %707, %715 : vector<1x128xf32>
    %c2_i32 = arith.constant 2 : i32
    %717 = tpu.dynamic_rotate %706 by %c2_i32 dim 1 : vector<1x128xf32>, i32 -> vector<1x128xf32>
    %c2_i32_250 = arith.constant 2 : i32
    %718 = vector.broadcast %c2_i32_250 : i32 to vector<1x128xi32>
    %719 = arith.cmpi sge, %76, %718 : vector<1x128xi32>
    %cst_251 = arith.constant 0.000000e+00 : f32
    %720 = vector.broadcast %cst_251 : f32 to vector<1x128xf32>
    %721 = arith.select %719, %717, %720 : vector<1x128xi1>, vector<1x128xf32>
    %722 = vector.extract_strided_slice %24 {offsets = [0, 2], sizes = [1, 1], strides = [1, 1]} : vector<1x16xf32> to vector<1x1xf32>
    %723 = vector.broadcast %722 : vector<1x1xf32> to vector<1x128xf32>
    %724 = arith.mulf %723, %721 : vector<1x128xf32>
    %725 = arith.addf %716, %724 : vector<1x128xf32>
    %c3_i32 = arith.constant 3 : i32
    %726 = tpu.dynamic_rotate %706 by %c3_i32 dim 1 : vector<1x128xf32>, i32 -> vector<1x128xf32>
    %c3_i32_252 = arith.constant 3 : i32
    %727 = vector.broadcast %c3_i32_252 : i32 to vector<1x128xi32>
    %728 = arith.cmpi sge, %76, %727 : vector<1x128xi32>
    %cst_253 = arith.constant 0.000000e+00 : f32
    %729 = vector.broadcast %cst_253 : f32 to vector<1x128xf32>
    %730 = arith.select %728, %726, %729 : vector<1x128xi1>, vector<1x128xf32>
    %731 = vector.extract_strided_slice %24 {offsets = [0, 3], sizes = [1, 1], strides = [1, 1]} : vector<1x16xf32> to vector<1x1xf32>
    %732 = vector.broadcast %731 : vector<1x1xf32> to vector<1x128xf32>
    %733 = arith.mulf %732, %730 : vector<1x128xf32>
    %734 = arith.addf %725, %733 : vector<1x128xf32>
    %c4_i32 = arith.constant 4 : i32
    %735 = tpu.dynamic_rotate %706 by %c4_i32 dim 1 : vector<1x128xf32>, i32 -> vector<1x128xf32>
    %c4_i32_254 = arith.constant 4 : i32
    %736 = vector.broadcast %c4_i32_254 : i32 to vector<1x128xi32>
    %737 = arith.cmpi sge, %76, %736 : vector<1x128xi32>
    %cst_255 = arith.constant 0.000000e+00 : f32
    %738 = vector.broadcast %cst_255 : f32 to vector<1x128xf32>
    %739 = arith.select %737, %735, %738 : vector<1x128xi1>, vector<1x128xf32>
    %740 = vector.extract_strided_slice %24 {offsets = [0, 4], sizes = [1, 1], strides = [1, 1]} : vector<1x16xf32> to vector<1x1xf32>
    %741 = vector.broadcast %740 : vector<1x1xf32> to vector<1x128xf32>
    %742 = arith.mulf %741, %739 : vector<1x128xf32>
    %743 = arith.addf %734, %742 : vector<1x128xf32>
    %c5_i32 = arith.constant 5 : i32
    %744 = tpu.dynamic_rotate %706 by %c5_i32 dim 1 : vector<1x128xf32>, i32 -> vector<1x128xf32>
    %c5_i32_256 = arith.constant 5 : i32
    %745 = vector.broadcast %c5_i32_256 : i32 to vector<1x128xi32>
    %746 = arith.cmpi sge, %76, %745 : vector<1x128xi32>
    %cst_257 = arith.constant 0.000000e+00 : f32
    %747 = vector.broadcast %cst_257 : f32 to vector<1x128xf32>
    %748 = arith.select %746, %744, %747 : vector<1x128xi1>, vector<1x128xf32>
    %749 = vector.extract_strided_slice %24 {offsets = [0, 5], sizes = [1, 1], strides = [1, 1]} : vector<1x16xf32> to vector<1x1xf32>
    %750 = vector.broadcast %749 : vector<1x1xf32> to vector<1x128xf32>
    %751 = arith.mulf %750, %748 : vector<1x128xf32>
    %752 = arith.addf %743, %751 : vector<1x128xf32>
    %c6_i32 = arith.constant 6 : i32
    %753 = tpu.dynamic_rotate %706 by %c6_i32 dim 1 : vector<1x128xf32>, i32 -> vector<1x128xf32>
    %c6_i32_258 = arith.constant 6 : i32
    %754 = vector.broadcast %c6_i32_258 : i32 to vector<1x128xi32>
    %755 = arith.cmpi sge, %76, %754 : vector<1x128xi32>
    %cst_259 = arith.constant 0.000000e+00 : f32
    %756 = vector.broadcast %cst_259 : f32 to vector<1x128xf32>
    %757 = arith.select %755, %753, %756 : vector<1x128xi1>, vector<1x128xf32>
    %758 = vector.extract_strided_slice %24 {offsets = [0, 6], sizes = [1, 1], strides = [1, 1]} : vector<1x16xf32> to vector<1x1xf32>
    %759 = vector.broadcast %758 : vector<1x1xf32> to vector<1x128xf32>
    %760 = arith.mulf %759, %757 : vector<1x128xf32>
    %761 = arith.addf %752, %760 : vector<1x128xf32>
    %c7_i32 = arith.constant 7 : i32
    %762 = tpu.dynamic_rotate %706 by %c7_i32 dim 1 : vector<1x128xf32>, i32 -> vector<1x128xf32>
    %c7_i32_260 = arith.constant 7 : i32
    %763 = vector.broadcast %c7_i32_260 : i32 to vector<1x128xi32>
    %764 = arith.cmpi sge, %76, %763 : vector<1x128xi32>
    %cst_261 = arith.constant 0.000000e+00 : f32
    %765 = vector.broadcast %cst_261 : f32 to vector<1x128xf32>
    %766 = arith.select %764, %762, %765 : vector<1x128xi1>, vector<1x128xf32>
    %767 = vector.extract_strided_slice %24 {offsets = [0, 7], sizes = [1, 1], strides = [1, 1]} : vector<1x16xf32> to vector<1x1xf32>
    %768 = vector.broadcast %767 : vector<1x1xf32> to vector<1x128xf32>
    %769 = arith.mulf %768, %766 : vector<1x128xf32>
    %770 = arith.addf %761, %769 : vector<1x128xf32>
    %c8_i32 = arith.constant 8 : i32
    %771 = tpu.dynamic_rotate %706 by %c8_i32 dim 1 : vector<1x128xf32>, i32 -> vector<1x128xf32>
    %c8_i32_262 = arith.constant 8 : i32
    %772 = vector.broadcast %c8_i32_262 : i32 to vector<1x128xi32>
    %773 = arith.cmpi sge, %76, %772 : vector<1x128xi32>
    %cst_263 = arith.constant 0.000000e+00 : f32
    %774 = vector.broadcast %cst_263 : f32 to vector<1x128xf32>
    %775 = arith.select %773, %771, %774 : vector<1x128xi1>, vector<1x128xf32>
    %776 = vector.extract_strided_slice %24 {offsets = [0, 8], sizes = [1, 1], strides = [1, 1]} : vector<1x16xf32> to vector<1x1xf32>
    %777 = vector.broadcast %776 : vector<1x1xf32> to vector<1x128xf32>
    %778 = arith.mulf %777, %775 : vector<1x128xf32>
    %779 = arith.addf %770, %778 : vector<1x128xf32>
    %c9_i32 = arith.constant 9 : i32
    %780 = tpu.dynamic_rotate %706 by %c9_i32 dim 1 : vector<1x128xf32>, i32 -> vector<1x128xf32>
    %c9_i32_264 = arith.constant 9 : i32
    %781 = vector.broadcast %c9_i32_264 : i32 to vector<1x128xi32>
    %782 = arith.cmpi sge, %76, %781 : vector<1x128xi32>
    %cst_265 = arith.constant 0.000000e+00 : f32
    %783 = vector.broadcast %cst_265 : f32 to vector<1x128xf32>
    %784 = arith.select %782, %780, %783 : vector<1x128xi1>, vector<1x128xf32>
    %785 = vector.extract_strided_slice %24 {offsets = [0, 9], sizes = [1, 1], strides = [1, 1]} : vector<1x16xf32> to vector<1x1xf32>
    %786 = vector.broadcast %785 : vector<1x1xf32> to vector<1x128xf32>
    %787 = arith.mulf %786, %784 : vector<1x128xf32>
    %788 = arith.addf %779, %787 : vector<1x128xf32>
    %c10_i32 = arith.constant 10 : i32
    %789 = tpu.dynamic_rotate %706 by %c10_i32 dim 1 : vector<1x128xf32>, i32 -> vector<1x128xf32>
    %c10_i32_266 = arith.constant 10 : i32
    %790 = vector.broadcast %c10_i32_266 : i32 to vector<1x128xi32>
    %791 = arith.cmpi sge, %76, %790 : vector<1x128xi32>
    %cst_267 = arith.constant 0.000000e+00 : f32
    %792 = vector.broadcast %cst_267 : f32 to vector<1x128xf32>
    %793 = arith.select %791, %789, %792 : vector<1x128xi1>, vector<1x128xf32>
    %794 = vector.extract_strided_slice %24 {offsets = [0, 10], sizes = [1, 1], strides = [1, 1]} : vector<1x16xf32> to vector<1x1xf32>
    %795 = vector.broadcast %794 : vector<1x1xf32> to vector<1x128xf32>
    %796 = arith.mulf %795, %793 : vector<1x128xf32>
    %797 = arith.addf %788, %796 : vector<1x128xf32>
    %c11_i32 = arith.constant 11 : i32
    %798 = tpu.dynamic_rotate %706 by %c11_i32 dim 1 : vector<1x128xf32>, i32 -> vector<1x128xf32>
    %c11_i32_268 = arith.constant 11 : i32
    %799 = vector.broadcast %c11_i32_268 : i32 to vector<1x128xi32>
    %800 = arith.cmpi sge, %76, %799 : vector<1x128xi32>
    %cst_269 = arith.constant 0.000000e+00 : f32
    %801 = vector.broadcast %cst_269 : f32 to vector<1x128xf32>
    %802 = arith.select %800, %798, %801 : vector<1x128xi1>, vector<1x128xf32>
    %803 = vector.extract_strided_slice %24 {offsets = [0, 11], sizes = [1, 1], strides = [1, 1]} : vector<1x16xf32> to vector<1x1xf32>
    %804 = vector.broadcast %803 : vector<1x1xf32> to vector<1x128xf32>
    %805 = arith.mulf %804, %802 : vector<1x128xf32>
    %806 = arith.addf %797, %805 : vector<1x128xf32>
    %c12_i32 = arith.constant 12 : i32
    %807 = tpu.dynamic_rotate %706 by %c12_i32 dim 1 : vector<1x128xf32>, i32 -> vector<1x128xf32>
    %c12_i32_270 = arith.constant 12 : i32
    %808 = vector.broadcast %c12_i32_270 : i32 to vector<1x128xi32>
    %809 = arith.cmpi sge, %76, %808 : vector<1x128xi32>
    %cst_271 = arith.constant 0.000000e+00 : f32
    %810 = vector.broadcast %cst_271 : f32 to vector<1x128xf32>
    %811 = arith.select %809, %807, %810 : vector<1x128xi1>, vector<1x128xf32>
    %812 = vector.extract_strided_slice %24 {offsets = [0, 12], sizes = [1, 1], strides = [1, 1]} : vector<1x16xf32> to vector<1x1xf32>
    %813 = vector.broadcast %812 : vector<1x1xf32> to vector<1x128xf32>
    %814 = arith.mulf %813, %811 : vector<1x128xf32>
    %815 = arith.addf %806, %814 : vector<1x128xf32>
    %c13_i32 = arith.constant 13 : i32
    %816 = tpu.dynamic_rotate %706 by %c13_i32 dim 1 : vector<1x128xf32>, i32 -> vector<1x128xf32>
    %c13_i32_272 = arith.constant 13 : i32
    %817 = vector.broadcast %c13_i32_272 : i32 to vector<1x128xi32>
    %818 = arith.cmpi sge, %76, %817 : vector<1x128xi32>
    %cst_273 = arith.constant 0.000000e+00 : f32
    %819 = vector.broadcast %cst_273 : f32 to vector<1x128xf32>
    %820 = arith.select %818, %816, %819 : vector<1x128xi1>, vector<1x128xf32>
    %821 = vector.extract_strided_slice %24 {offsets = [0, 13], sizes = [1, 1], strides = [1, 1]} : vector<1x16xf32> to vector<1x1xf32>
    %822 = vector.broadcast %821 : vector<1x1xf32> to vector<1x128xf32>
    %823 = arith.mulf %822, %820 : vector<1x128xf32>
    %824 = arith.addf %815, %823 : vector<1x128xf32>
    %c14_i32 = arith.constant 14 : i32
    %825 = tpu.dynamic_rotate %706 by %c14_i32 dim 1 : vector<1x128xf32>, i32 -> vector<1x128xf32>
    %c14_i32_274 = arith.constant 14 : i32
    %826 = vector.broadcast %c14_i32_274 : i32 to vector<1x128xi32>
    %827 = arith.cmpi sge, %76, %826 : vector<1x128xi32>
    %cst_275 = arith.constant 0.000000e+00 : f32
    %828 = vector.broadcast %cst_275 : f32 to vector<1x128xf32>
    %829 = arith.select %827, %825, %828 : vector<1x128xi1>, vector<1x128xf32>
    %830 = vector.extract_strided_slice %24 {offsets = [0, 14], sizes = [1, 1], strides = [1, 1]} : vector<1x16xf32> to vector<1x1xf32>
    %831 = vector.broadcast %830 : vector<1x1xf32> to vector<1x128xf32>
    %832 = arith.mulf %831, %829 : vector<1x128xf32>
    %833 = arith.addf %824, %832 : vector<1x128xf32>
    %c15_i32_276 = arith.constant 15 : i32
    %834 = tpu.dynamic_rotate %706 by %c15_i32_276 dim 1 : vector<1x128xf32>, i32 -> vector<1x128xf32>
    %c15_i32_277 = arith.constant 15 : i32
    %835 = vector.broadcast %c15_i32_277 : i32 to vector<1x128xi32>
    %836 = arith.cmpi sge, %76, %835 : vector<1x128xi32>
    %cst_278 = arith.constant 0.000000e+00 : f32
    %837 = vector.broadcast %cst_278 : f32 to vector<1x128xf32>
    %838 = arith.select %836, %834, %837 : vector<1x128xi1>, vector<1x128xf32>
    %839 = vector.extract_strided_slice %24 {offsets = [0, 15], sizes = [1, 1], strides = [1, 1]} : vector<1x16xf32> to vector<1x1xf32>
    %840 = vector.broadcast %839 : vector<1x1xf32> to vector<1x128xf32>
    %841 = arith.mulf %840, %838 : vector<1x128xf32>
    %842 = arith.addf %833, %841 : vector<1x128xf32>
    %843 = arith.addf %706, %842 : vector<1x128xf32>
    %c0_279 = arith.constant 0 : index
    %c0_280 = arith.constant 0 : index
    %c0_281 = arith.constant 0 : index
    %844 = vector.load %arg24[%c0_279, %c0_280, %c0_281] : memref<1x1x128xf32, #tpu.memory_space<vmem>>, vector<1x1x128xf32>
    %845 = vector.shape_cast %844 : vector<1x1x128xf32> to vector<1x128xf32>
    %846 = vector.shape_cast %843 : vector<1x128xf32> to vector<1x1x128xf32>
    tpu.vector_store %arg24[%c0_279, %c0_280, %c0_281], %846 {strides = array<i32>} : memref<1x1x128xf32, #tpu.memory_space<vmem>>, vector<1x1x128xf32>,
    %c0_282 = arith.constant 0 : index
    %c0_283 = arith.constant 0 : index
    %c0_284 = arith.constant 0 : index
    %847 = vector.load %arg26[%c0_282, %c0_283, %c0_284] : memref<1x1x128xf32, #tpu.memory_space<vmem>>, vector<1x1x128xf32>
    %848 = vector.shape_cast %847 : vector<1x1x128xf32> to vector<1x128xf32>
    %849 = vector.shape_cast %706 : vector<1x128xf32> to vector<1x1x128xf32>
    tpu.vector_store %arg26[%c0_282, %c0_283, %c0_284], %849 {strides = array<i32>} : memref<1x1x128xf32, #tpu.memory_space<vmem>>, vector<1x1x128xf32>,
    %c0_285 = arith.constant 0 : index
    %c0_286 = arith.constant 0 : index
    %c0_287 = arith.constant 0 : index
    %850 = vector.load %arg25[%c0_285, %c0_286, %c0_287] : memref<1x1x16xf32, #tpu.memory_space<vmem>>, vector<1x1x16xf32>
    %851 = vector.shape_cast %850 : vector<1x1x16xf32> to vector<1x16xf32>
    %852 = vector.shape_cast %24 : vector<1x16xf32> to vector<1x1x16xf32>
    tpu.vector_store %arg25[%c0_285, %c0_286, %c0_287], %852 {strides = array<i32>} : memref<1x1x16xf32, #tpu.memory_space<vmem>>, vector<1x1x16xf32>,
    return
  }
  func.func @transform_0(%arg0: i32, %arg1: memref<2xi32, #tpu.memory_space<smem>>) -> (i32, i32, i32) {
    %c0_i32 = arith.constant 0 : i32
    %c0_i32_0 = arith.constant 0 : i32
    %c0_i32_1 = arith.constant 0 : i32
    return %arg0, %c0_i32, %c0_i32_0 : i32, i32, i32
  }
  func.func @transform_1(%arg0: i32, %arg1: memref<2xi32, #tpu.memory_space<smem>>) -> (i32, i32, i32) {
    %c0_i32 = arith.constant 0 : i32
    %c0_i32_0 = arith.constant 0 : i32
    %c0_i32_1 = arith.constant 0 : i32
    return %arg0, %c0_i32, %c0_i32_0 : i32, i32, i32
  }
  func.func @transform_2(%arg0: i32, %arg1: memref<2xi32, #tpu.memory_space<smem>>) -> (i32, i32, i32) {
    %c0_i32 = arith.constant 0 : i32
    %c0_i32_0 = arith.constant 0 : i32
    %c0_i32_1 = arith.constant 0 : i32
    return %arg0, %c0_i32, %c0_i32_0 : i32, i32, i32
  }
  func.func @transform_3(%arg0: i32, %arg1: memref<2xi32, #tpu.memory_space<smem>>) -> (i32, i32, i32) {
    %c0_i32 = arith.constant 0 : i32
    %c0_i32_0 = arith.constant 0 : i32
    %c0_i32_1 = arith.constant 0 : i32
    return %arg0, %c0_i32, %c0_i32_0 : i32, i32, i32
  }
  func.func @transform_4(%arg0: i32, %arg1: memref<2xi32, #tpu.memory_space<smem>>) -> (i32, i32) {
    %c0_i32 = arith.constant 0 : i32
    %c0_i32_0 = arith.constant 0 : i32
    %c0_i32_1 = arith.constant 0 : i32
    return %c0_i32, %c0_i32_0 : i32, i32
  }
  func.func @transform_5(%arg0: i32, %arg1: memref<2xi32, #tpu.memory_space<smem>>) -> (i32, i32) {
    %c0_i32 = arith.constant 0 : i32
    %c0_i32_0 = arith.constant 0 : i32
    %c0_i32_1 = arith.constant 0 : i32
    return %c0_i32, %c0_i32_0 : i32, i32
  }
  func.func @transform_6(%arg0: i32, %arg1: memref<2xi32, #tpu.memory_space<smem>>) -> (i32, i32) {
    %c0_i32 = arith.constant 0 : i32
    %c0_i32_0 = arith.constant 0 : i32
    %c0_i32_1 = arith.constant 0 : i32
    return %c0_i32, %c0_i32_0 : i32, i32
  }
  func.func @transform_7(%arg0: i32, %arg1: memref<2xi32, #tpu.memory_space<smem>>) -> (i32, i32) {
    %c0_i32 = arith.constant 0 : i32
    %c0_i32_0 = arith.constant 0 : i32
    %c0_i32_1 = arith.constant 0 : i32
    return %c0_i32, %c0_i32_0 : i32, i32
  }
  func.func @transform_8(%arg0: i32, %arg1: memref<2xi32, #tpu.memory_space<smem>>) -> (i32, i32) {
    %c0_i32 = arith.constant 0 : i32
    %c0_i32_0 = arith.constant 0 : i32
    %c0_i32_1 = arith.constant 0 : i32
    return %c0_i32, %c0_i32_0 : i32, i32
  }
  func.func @transform_9(%arg0: i32, %arg1: memref<2xi32, #tpu.memory_space<smem>>) -> (i32, i32) {
    %c0_i32 = arith.constant 0 : i32
    %c0_i32_0 = arith.constant 0 : i32
    %c0_i32_1 = arith.constant 0 : i32
    return %c0_i32, %c0_i32_0 : i32, i32
  }
  func.func @transform_10(%arg0: i32, %arg1: memref<2xi32, #tpu.memory_space<smem>>) -> (i32, i32) {
    %c0_i32 = arith.constant 0 : i32
    %c0_i32_0 = arith.constant 0 : i32
    %c0_i32_1 = arith.constant 0 : i32
    return %c0_i32, %c0_i32_0 : i32, i32
  }
  func.func @transform_11(%arg0: i32, %arg1: memref<2xi32, #tpu.memory_space<smem>>) -> (i32, i32) {
    %c0_i32 = arith.constant 0 : i32
    %c0_i32_0 = arith.constant 0 : i32
    %c0_i32_1 = arith.constant 0 : i32
    return %c0_i32, %c0_i32_0 : i32, i32
  }
  func.func @transform_12(%arg0: i32, %arg1: memref<2xi32, #tpu.memory_space<smem>>) -> (i32, i32) {
    %c0_i32 = arith.constant 0 : i32
    %c0_i32_0 = arith.constant 0 : i32
    %c0_i32_1 = arith.constant 0 : i32
    return %c0_i32, %c0_i32_0 : i32, i32
  }
  func.func @transform_13(%arg0: i32, %arg1: memref<2xi32, #tpu.memory_space<smem>>) -> (i32, i32) {
    %c0_i32 = arith.constant 0 : i32
    %c0_i32_0 = arith.constant 0 : i32
    %c0_i32_1 = arith.constant 0 : i32
    return %c0_i32, %c0_i32_0 : i32, i32
  }
  func.func @transform_14(%arg0: i32, %arg1: memref<2xi32, #tpu.memory_space<smem>>) -> (i32, i32) {
    %c0_i32 = arith.constant 0 : i32
    %c0_i32_0 = arith.constant 0 : i32
    %c0_i32_1 = arith.constant 0 : i32
    return %c0_i32, %c0_i32_0 : i32, i32
  }
  func.func @transform_15(%arg0: i32, %arg1: memref<2xi32, #tpu.memory_space<smem>>) -> (i32, i32) {
    %c0_i32 = arith.constant 0 : i32
    %c0_i32_0 = arith.constant 0 : i32
    %c0_i32_1 = arith.constant 0 : i32
    return %c0_i32, %c0_i32_0 : i32, i32
  }
  func.func @transform_16(%arg0: i32, %arg1: memref<2xi32, #tpu.memory_space<smem>>) -> (i32, i32) {
    %c0_i32 = arith.constant 0 : i32
    %c0_i32_0 = arith.constant 0 : i32
    %c0_i32_1 = arith.constant 0 : i32
    return %c0_i32, %c0_i32_0 : i32, i32
  }
  func.func @transform_17(%arg0: i32, %arg1: memref<2xi32, #tpu.memory_space<smem>>) -> (i32, i32) {
    %c0_i32 = arith.constant 0 : i32
    %c0_i32_0 = arith.constant 0 : i32
    %c0_i32_1 = arith.constant 0 : i32
    return %c0_i32, %c0_i32_0 : i32, i32
  }
  func.func @transform_18(%arg0: i32, %arg1: memref<2xi32, #tpu.memory_space<smem>>) -> (i32, i32) {
    %c0_i32 = arith.constant 0 : i32
    %c0_i32_0 = arith.constant 0 : i32
    %c0_i32_1 = arith.constant 0 : i32
    return %c0_i32, %c0_i32_0 : i32, i32
  }
  func.func @transform_19(%arg0: i32, %arg1: memref<2xi32, #tpu.memory_space<smem>>) -> (i32, i32) {
    %c0_i32 = arith.constant 0 : i32
    %c0_i32_0 = arith.constant 0 : i32
    %c0_i32_1 = arith.constant 0 : i32
    return %c0_i32, %c0_i32_0 : i32, i32
  }
  func.func @transform_20(%arg0: i32, %arg1: memref<2xi32, #tpu.memory_space<smem>>) -> (i32, i32) {
    %c0_i32 = arith.constant 0 : i32
    %c0_i32_0 = arith.constant 0 : i32
    %c0_i32_1 = arith.constant 0 : i32
    return %c0_i32, %c0_i32_0 : i32, i32
  }
  func.func @transform_21(%arg0: i32, %arg1: memref<2xi32, #tpu.memory_space<smem>>) -> (i32, i32) {
    %c0_i32 = arith.constant 0 : i32
    %c0_i32_0 = arith.constant 0 : i32
    %c0_i32_1 = arith.constant 0 : i32
    return %c0_i32, %c0_i32_0 : i32, i32
  }
  func.func @transform_22(%arg0: i32, %arg1: memref<2xi32, #tpu.memory_space<smem>>) -> (i32, i32, i32) {
    %c0_i32 = arith.constant 0 : i32
    %c0_i32_0 = arith.constant 0 : i32
    %c0_i32_1 = arith.constant 0 : i32
    return %arg0, %c0_i32, %c0_i32_0 : i32, i32, i32
  }
  func.func @transform_23(%arg0: i32, %arg1: memref<2xi32, #tpu.memory_space<smem>>) -> (i32, i32, i32) {
    %c0_i32 = arith.constant 0 : i32
    %c0_i32_0 = arith.constant 0 : i32
    %c0_i32_1 = arith.constant 0 : i32
    return %arg0, %c0_i32, %c0_i32_0 : i32, i32, i32
  }
  func.func @transform_24(%arg0: i32, %arg1: memref<2xi32, #tpu.memory_space<smem>>) -> (i32, i32, i32) {
    %c0_i32 = arith.constant 0 : i32
    %c0_i32_0 = arith.constant 0 : i32
    %c0_i32_1 = arith.constant 0 : i32
    return %arg0, %c0_i32, %c0_i32_0 : i32, i32, i32
  }
}

</mosaic_0001>

<llo_original>
// kernel: piano_forward.1
$region0: #{piano_forward.1}
  #allocation0 [shape = 'u32[]', space=smem, size = 0x4, offset = 0x4, fixed_abs, tag = 'smem constant byte address 0x4 - core index']
  #allocation1 [shape = 'u32[72,128]{1,0:T(1,128)}', space=vmem, size = 0x9000, scoped, tag = 'internal scratch']
  #allocation2 [shape = 's32[1]{0}', space=sflag, size = 0x4, scoped, tag = 'scoped memory for piano_forward.1']
  #allocation3 [shape = 'u8[512]{0}', space=smem, size = 0x200, scoped, tag = 'prefetched SMEM operand 0']
  %s0 = inlined_call_operand.vmem [shape: s32[2], index: 0, kind: input, shape index: {}]
  %s1 = inlined_call_operand.vmem [shape: f32[2,8,8], index: 1, kind: input, shape index: {}]
  %s2 = inlined_call_operand.vmem [shape: f32[2,4,8], index: 2, kind: input, shape index: {}]
  %s3 = inlined_call_operand.vmem [shape: f32[2,4,8], index: 3, kind: input, shape index: {}]
  %s4 = inlined_call_operand.vmem [shape: f32[2,4,8], index: 4, kind: input, shape index: {}]
  %s5 = inlined_call_operand.vmem [shape: f32[4,8], index: 5, kind: input, shape index: {}]
  %s6 = inlined_call_operand.vmem [shape: f32[4,1], index: 6, kind: input, shape index: {}]
  %s7 = inlined_call_operand.vmem [shape: f32[4,1], index: 7, kind: input, shape index: {}]
  %s8 = inlined_call_operand.vmem [shape: f32[4,16], index: 8, kind: input, shape index: {}]
  %s9 = inlined_call_operand.vmem [shape: f32[8,128], index: 9, kind: input, shape index: {}]
  %s10 = inlined_call_operand.vmem [shape: f32[8,128], index: 10, kind: input, shape index: {}]
  %s11 = inlined_call_operand.vmem [shape: f32[32,8], index: 11, kind: input, shape index: {}]
  %s12 = inlined_call_operand.vmem [shape: f32[32,4], index: 12, kind: input, shape index: {}]
  %s13 = inlined_call_operand.vmem [shape: f32[32,8], index: 13, kind: input, shape index: {}]
  %s14 = inlined_call_operand.vmem [shape: f32[32,1], index: 14, kind: input, shape index: {}]
  %s15 = inlined_call_operand.vmem [shape: f32[16,32], index: 15, kind: input, shape index: {}]
  %s16 = inlined_call_operand.vmem [shape: f32[16,1], index: 16, kind: input, shape index: {}]
  %s17 = inlined_call_operand.vmem [shape: f32[32,3], index: 17, kind: input, shape index: {}]
  %s18 = inlined_call_operand.vmem [shape: f32[32,16], index: 18, kind: input, shape index: {}]
  %s19 = inlined_call_operand.vmem [shape: f32[32,1], index: 19, kind: input, shape index: {}]
  %s20 = inlined_call_operand.vmem [shape: f32[25,32], index: 20, kind: input, shape index: {}]
  %s21 = inlined_call_operand.vmem [shape: f32[25,1], index: 21, kind: input, shape index: {}]
  %s22 = inlined_call_operand.vmem [shape: f32[1,4], index: 22, kind: input, shape index: {}]
  %s23 = inlined_call_operand.hbm [shape: f32[2,1,128], index: 23, kind: output, shape index: {0}]
  %s24 = inlined_call_operand.hbm [shape: f32[2,1,16], index: 24, kind: output, shape index: {1}]
  %s25 = inlined_call_operand.hbm [shape: f32[2,1,128], index: 25, kind: output, shape index: {2}]
  %26 = xla_tuple %s23, %s24, %s25
  %s27 = sld [smem:[#allocation0]]
  $region137: #{piano_forward.1} parent=0
    _
  %s29 = ssub.s32 1, %s27
  %s30 = scalar_select 0, %s29, %s27
  %s32 = sshll.u32 %s0, 4
  %s33 = int_to_ptr.vmem [resolvable:$true] %s32
  %35 = dma.vmem_to_smem %s33, 16, [#allocation3], [#allocation2]
  %37 = dma.done [#allocation2], 16
  %38 = sfence
  $region1: #{piano_forward.1} parent=0
    #allocation4 [shape = 'u8[1024]{0}', space=vmem, size = 0x400, scoped, tag = 'output window, operand 0']
    #allocation5 [shape = 's32[2]{0}', space=sflag, size = 0x8, scoped, tag = 'scoped memory for piano_forward.1']
    #allocation6 [shape = 'u8[1024]{0}', space=vmem, size = 0x400, scoped, tag = 'output window, operand 1']
    #allocation7 [shape = 's32[2]{0}', space=sflag, size = 0x8, scoped, tag = 'scoped memory for piano_forward.1']
    #allocation8 [shape = 'u8[1024]{0}', space=vmem, size = 0x400, scoped, tag = 'output window, operand 2']
    %39 = vsyncpa [#allocation5], 0
    %s40 = scalar_lea.sflag [#allocation5], 1
    %41 = vsyncpa %s40, 0
    %42 = vsyncpa [#allocation7], 0
    %s43 = scalar_lea.sflag [#allocation7], 1
    %44 = vsyncpa %s43, 0
    loop: start=0, step=1, limit=4
    $region2: #{piano_forward.1} parent=1 // loop_pre_header
      _
    $region3: #{piano_forward.1} parent=1 // loop_header
      %s46 = sphi 0, %s50
      %p47 = scmp.ge.s32.totalorder %s46, 4
      %s56 = sphi 0, %s58
      %s59 = sphi 0, %s56
      %s60 = sphi 0, %s59
      %s76 = sphi 0, %s60
      %s82 = sphi 0, %s84
      %s85 = sphi 0, %s82
      %s86 = sphi 0, %s85
      %s102 = sphi 0, %s86
      %s108 = sphi 0, %s110
      %s111 = sphi 0, %s108
      %s112 = sphi 0, %s111
      %s128 = sphi 0, %s112
      %s134 = sphi 0, %s136
      %s137 = sphi 0, %s134
      %s138 = sphi 0, %s137
      %s154 = sphi 0, %s138
      %s158 = sphi 0, %s158
      %s160 = sphi 0, %s158
      %s161 = sphi 0, %s160
      %s175 = sphi 0, %s161
      %s179 = sphi 0, %s179
      %s181 = sphi 0, %s179
      %s182 = sphi 0, %s181
      %s196 = sphi 0, %s182
      %s200 = sphi 0, %s200
      %s202 = sphi 0, %s200
      %s203 = sphi 0, %s202
      %s217 = sphi 0, %s203
      %s221 = sphi 0, %s221
      %s223 = sphi 0, %s221
      %s224 = sphi 0, %s223
      %s238 = sphi 0, %s224
      %s242 = sphi 0, %s242
      %s244 = sphi 0, %s242
      %s245 = sphi 0, %s244
      %s259 = sphi 0, %s245
      %s263 = sphi 0, %s263
      %s265 = sphi 0, %s263
      %s266 = sphi 0, %s265
      %s280 = sphi 0, %s266
      %s284 = sphi 0, %s284
      %s286 = sphi 0, %s284
      %s287 = sphi 0, %s286
      %s301 = sphi 0, %s287
      %s305 = sphi 0, %s305
      %s307 = sphi 0, %s305
      %s308 = sphi 0, %s307
      %s322 = sphi 0, %s308
      %s326 = sphi 0, %s326
      %s328 = sphi 0, %s326
      %s329 = sphi 0, %s328
      %s343 = sphi 0, %s329
      %s347 = sphi 0, %s347
      %s349 = sphi 0, %s347
      %s350 = sphi 0, %s349
      %s364 = sphi 0, %s350
      %s368 = sphi 0, %s368
      %s370 = sphi 0, %s368
      %s371 = sphi 0, %s370
      %s385 = sphi 0, %s371
      %s389 = sphi 0, %s389
      %s391 = sphi 0, %s389
      %s392 = sphi 0, %s391
      %s406 = sphi 0, %s392
      %s410 = sphi 0, %s410
      %s412 = sphi 0, %s410
      %s413 = sphi 0, %s412
      %s427 = sphi 0, %s413
      %s431 = sphi 0, %s431
      %s433 = sphi 0, %s431
      %s434 = sphi 0, %s433
      %s448 = sphi 0, %s434
      %s452 = sphi 0, %s452
      %s454 = sphi 0, %s452
      %s455 = sphi 0, %s454
      %s469 = sphi 0, %s455
      %s473 = sphi 0, %s473
      %s475 = sphi 0, %s473
      %s476 = sphi 0, %s475
      %s490 = sphi 0, %s476
      %s494 = sphi 0, %s494
      %s496 = sphi 0, %s494
      %s497 = sphi 0, %s496
      %s511 = sphi 0, %s497
      %s515 = sphi 0, %s515
      %s517 = sphi 0, %s515
      %s518 = sphi 0, %s517
      %s532 = sphi 0, %s518
      %s538 = sphi 0, %s540
      %s541 = sphi 0, %s538
      %s542 = sphi 0, %s541
      %s558 = sphi 0, %s542
      %s564 = sphi 0, %s566
      %s567 = sphi 0, %s564
      %s568 = sphi 0, %s567
      %s584 = sphi 0, %s568
      %s590 = sphi 0, %s592
      %s593 = sphi 0, %s590
      %s594 = sphi 0, %s593
      %s610 = sphi 0, %s594
    $region4: #{piano_forward.1} parent=1 // loop_header_branch
      %49 = sbr.rel (%p47) target = $region8
    $region5: #{piano_forward.1} parent=1 // loop_body
      %s51 = ssub.s32 %s46, 1
      %s52 = ssub.s32 %s46, 2
      %s53 = sadd.s32 %s46, 1
      %s54 = ssub.s32 %s46, %s53
      %p55 = scmp.eq.s32.totalorder %s54, 0
      %s57 = sadd.s32 %s56, 1
      %s58 = scalar_select %p55, %s56, %s57
      %p61 = pneg %p55
      %p62 = scmp.eq.s32.totalorder %s46, 1
      %p63 = por %p61, %p62
      %p64 = scmp.ne.s32.totalorder %s56, %s59
      %p65 = scmp.eq.s32.totalorder %s46, 0
      %p66 = por %p64, %p65
      %p67 = scmp.ne.s32.totalorder %s56, %s59
      %p68 = scmp.eq.s32.totalorder %s51, 1
      %p69 = por %p67, %p68
      %p70 = scmp.ne.s32.totalorder %s59, %s60
      %p71 = scmp.eq.s32.totalorder %s51, 0
      %p72 = por %p70, %p71
      %p73 = scmp.ne.s32.totalorder %s59, %s60
      %p74 = scmp.eq.s32.totalorder %s52, 1
      %p75 = por %p73, %p74
      %p77 = scmp.ne.s32.totalorder %s60, %s76
      %p78 = scmp.eq.s32.totalorder %s52, 0
      %p79 = por %p77, %p78
      %s80 = ssub.s32 %s46, %s53
      %p81 = scmp.eq.s32.totalorder %s80, 0
      %s83 = sadd.s32 %s82, 1
      %s84 = scalar_select %p81, %s82, %s83
      %p87 = pneg %p81
      %p88 = scmp.eq.s32.totalorder %s46, 1
      %p89 = por %p87, %p88
      %p90 = scmp.ne.s32.totalorder %s82, %s85
      %p91 = scmp.eq.s32.totalorder %s46, 0
      %p92 = por %p90, %p91
      %p93 = scmp.ne.s32.totalorder %s82, %s85
      %p94 = scmp.eq.s32.totalorder %s51, 1
      %p95 = por %p93, %p94
      %p96 = scmp.ne.s32.totalorder %s85, %s86
      %p97 = scmp.eq.s32.totalorder %s51, 0
      %p98 = por %p96, %p97
      %p99 = scmp.ne.s32.totalorder %s85, %s86
      %p100 = scmp.eq.s32.totalorder %s52, 1
      %p101 = por %p99, %p100
      %p103 = scmp.ne.s32.totalorder %s86, %s102
      %p104 = scmp.eq.s32.totalorder %s52, 0
      %p105 = por %p103, %p104
      %s106 = ssub.s32 %s46, %s53
      %p107 = scmp.eq.s32.totalorder %s106, 0
      %s109 = sadd.s32 %s108, 1
      %s110 = scalar_select %p107, %s108, %s109
      %p113 = pneg %p107
      %p114 = scmp.eq.s32.totalorder %s46, 1
      %p115 = por %p113, %p114
      %p116 = scmp.ne.s32.totalorder %s108, %s111
      %p117 = scmp.eq.s32.totalorder %s46, 0
      %p118 = por %p116, %p117
      %p119 = scmp.ne.s32.totalorder %s108, %s111
      %p120 = scmp.eq.s32.totalorder %s51, 1
      %p121 = por %p119, %p120
      %p122 = scmp.ne.s32.totalorder %s111, %s112
      %p123 = scmp.eq.s32.totalorder %s51, 0
      %p124 = por %p122, %p123
      %p125 = scmp.ne.s32.totalorder %s111, %s112
      %p126 = scmp.eq.s32.totalorder %s52, 1
      %p127 = por %p125, %p126
      %p129 = scmp.ne.s32.totalorder %s112, %s128
      %p130 = scmp.eq.s32.totalorder %s52, 0
      %p131 = por %p129, %p130
      %s132 = ssub.s32 %s46, %s53
      %p133 = scmp.eq.s32.totalorder %s132, 0
      %s135 = sadd.s32 %s134, 1
      %s136 = scalar_select %p133, %s134, %s135
      %p139 = pneg %p133
      %p140 = scmp.eq.s32.totalorder %s46, 1
      %p141 = por %p139, %p140
      %p142 = scmp.ne.s32.totalorder %s134, %s137
      %p143 = scmp.eq.s32.totalorder %s46, 0
      %p144 = por %p142, %p143
      %p145 = scmp.ne.s32.totalorder %s134, %s137
      %p146 = scmp.eq.s32.totalorder %s51, 1
      %p147 = por %p145, %p146
      %p148 = scmp.ne.s32.totalorder %s137, %s138
      %p149 = scmp.eq.s32.totalorder %s51, 0
      %p150 = por %p148, %p149
      %p151 = scmp.ne.s32.totalorder %s137, %s138
      %p152 = scmp.eq.s32.totalorder %s52, 1
      %p153 = por %p151, %p152
      %p155 = scmp.ne.s32.totalorder %s138, %s154
      %p156 = scmp.eq.s32.totalorder %s52, 0
      %p157 = por %p155, %p156
      %s159 = sadd.s32 %s158, 1
      %p162 = scmp.eq.s32.totalorder %s46, 1
      %p163 = scmp.ne.s32.totalorder %s158, %s160
      %p164 = scmp.eq.s32.totalorder %s46, 0
      %p165 = por %p163, %p164
      %p166 = scmp.ne.s32.totalorder %s158, %s160
      %p167 = scmp.eq.s32.totalorder %s51, 1
      %p168 = por %p166, %p167
      %p169 = scmp.ne.s32.totalorder %s160, %s161
      %p170 = scmp.eq.s32.totalorder %s51, 0
      %p171 = por %p169, %p170
      %p172 = scmp.ne.s32.totalorder %s160, %s161
      %p173 = scmp.eq.s32.totalorder %s52, 1
      %p174 = por %p172, %p173
      %p176 = scmp.ne.s32.totalorder %s161, %s175
      %p177 = scmp.eq.s32.totalorder %s52, 0
      %p178 = por %p176, %p177
      %s180 = sadd.s32 %s179, 1
      %p183 = scmp.eq.s32.totalorder %s46, 1
      %p184 = scmp.ne.s32.totalorder %s179, %s181
      %p185 = scmp.eq.s32.totalorder %s46, 0
      %p186 = por %p184, %p185
      %p187 = scmp.ne.s32.totalorder %s179, %s181
      %p188 = scmp.eq.s32.totalorder %s51, 1
      %p189 = por %p187, %p188
      %p190 = scmp.ne.s32.totalorder %s181, %s182
      %p191 = scmp.eq.s32.totalorder %s51, 0
      %p192 = por %p190, %p191
      %p193 = scmp.ne.s32.totalorder %s181, %s182
      %p194 = scmp.eq.s32.totalorder %s52, 1
      %p195 = por %p193, %p194
      %p197 = scmp.ne.s32.totalorder %s182, %s196
      %p198 = scmp.eq.s32.totalorder %s52, 0
      %p199 = por %p197, %p198
      %s201 = sadd.s32 %s200, 1
      %p204 = scmp.eq.s32.totalorder %s46, 1
      %p205 = scmp.ne.s32.totalorder %s200, %s202
      %p206 = scmp.eq.s32.totalorder %s46, 0
      %p207 = por %p205, %p206
      %p208 = scmp.ne.s32.totalorder %s200, %s202
      %p209 = scmp.eq.s32.totalorder %s51, 1
      %p210 = por %p208, %p209
      %p211 = scmp.ne.s32.totalorder %s202, %s203
      %p212 = scmp.eq.s32.totalorder %s51, 0
      %p213 = por %p211, %p212
      %p214 = scmp.ne.s32.totalorder %s202, %s203
      %p215 = scmp.eq.s32.totalorder %s52, 1
      %p216 = por %p214, %p215
      %p218 = scmp.ne.s32.totalorder %s203, %s217
      %p219 = scmp.eq.s32.totalorder %s52, 0
      %p220 = por %p218, %p219
      %s222 = sadd.s32 %s221, 1
      %p225 = scmp.eq.s32.totalorder %s46, 1
      %p226 = scmp.ne.s32.totalorder %s221, %s223
      %p227 = scmp.eq.s32.totalorder %s46, 0
      %p228 = por %p226, %p227
      %p229 = scmp.ne.s32.totalorder %s221, %s223
      %p230 = scmp.eq.s32.totalorder %s51, 1
      %p231 = por %p229, %p230
      %p232 = scmp.ne.s32.totalorder %s223, %s224
      %p233 = scmp.eq.s32.totalorder %s51, 0
      %p234 = por %p232, %p233
      %p235 = scmp.ne.s32.totalorder %s223, %s224
      %p236 = scmp.eq.s32.totalorder %s52, 1
      %p237 = por %p235, %p236
      %p239 = scmp.ne.s32.totalorder %s224, %s238
      %p240 = scmp.eq.s32.totalorder %s52, 0
      %p241 = por %p239, %p240
      %s243 = sadd.s32 %s242, 1
      %p246 = scmp.eq.s32.totalorder %s46, 1
      %p247 = scmp.ne.s32.totalorder %s242, %s244
      %p248 = scmp.eq.s32.totalorder %s46, 0
      %p249 = por %p247, %p248
      %p250 = scmp.ne.s32.totalorder %s242, %s244
      %p251 = scmp.eq.s32.totalorder %s51, 1
      %p252 = por %p250, %p251
      %p253 = scmp.ne.s32.totalorder %s244, %s245
      %p254 = scmp.eq.s32.totalorder %s51, 0
      %p255 = por %p253, %p254
      %p256 = scmp.ne.s32.totalorder %s244, %s245
      %p257 = scmp.eq.s32.totalorder %s52, 1
      %p258 = por %p256, %p257
      %p260 = scmp.ne.s32.totalorder %s245, %s259
      %p261 = scmp.eq.s32.totalorder %s52, 0
      %p262 = por %p260, %p261
      %s264 = sadd.s32 %s263, 1
      %p267 = scmp.eq.s32.totalorder %s46, 1
      %p268 = scmp.ne.s32.totalorder %s263, %s265
      %p269 = scmp.eq.s32.totalorder %s46, 0
      %p270 = por %p268, %p269
      %p271 = scmp.ne.s32.totalorder %s263, %s265
      %p272 = scmp.eq.s32.totalorder %s51, 1
      %p273 = por %p271, %p272
      %p274 = scmp.ne.s32.totalorder %s265, %s266
      %p275 = scmp.eq.s32.totalorder %s51, 0
      %p276 = por %p274, %p275
      %p277 = scmp.ne.s32.totalorder %s265, %s266
      %p278 = scmp.eq.s32.totalorder %s52, 1
      %p279 = por %p277, %p278
      %p281 = scmp.ne.s32.totalorder %s266, %s280
      %p282 = scmp.eq.s32.totalorder %s52, 0
      %p283 = por %p281, %p282
      %s285 = sadd.s32 %s284, 1
      %p288 = scmp.eq.s32.totalorder %s46, 1
      %p289 = scmp.ne.s32.totalorder %s284, %s286
      %p290 = scmp.eq.s32.totalorder %s46, 0
      %p291 = por %p289, %p290
      %p292 = scmp.ne.s32.totalorder %s284, %s286
      %p293 = scmp.eq.s32.totalorder %s51, 1
      %p294 = por %p292, %p293
      %p295 = scmp.ne.s32.totalorder %s286, %s287
      %p296 = scmp.eq.s32.totalorder %s51, 0
      %p297 = por %p295, %p296
      %p298 = scmp.ne.s32.totalorder %s286, %s287
      %p299 = scmp.eq.s32.totalorder %s52, 1
      %p300 = por %p298, %p299
      %p302 = scmp.ne.s32.totalorder %s287, %s301
      %p303 = scmp.eq.s32.totalorder %s52, 0
      %p304 = por %p302, %p303
      %s306 = sadd.s32 %s305, 1
      %p309 = scmp.eq.s32.totalorder %s46, 1
      %p310 = scmp.ne.s32.totalorder %s305, %s307
      %p311 = scmp.eq.s32.totalorder %s46, 0
      %p312 = por %p310, %p311
      %p313 = scmp.ne.s32.totalorder %s305, %s307
      %p314 = scmp.eq.s32.totalorder %s51, 1
      %p315 = por %p313, %p314
      %p316 = scmp.ne.s32.totalorder %s307, %s308
      %p317 = scmp.eq.s32.totalorder %s51, 0
      %p318 = por %p316, %p317
      %p319 = scmp.ne.s32.totalorder %s307, %s308
      %p320 = scmp.eq.s32.totalorder %s52, 1
      %p321 = por %p319, %p320
      %p323 = scmp.ne.s32.totalorder %s308, %s322
      %p324 = scmp.eq.s32.totalorder %s52, 0
      %p325 = por %p323, %p324
      %s327 = sadd.s32 %s326, 1
      %p330 = scmp.eq.s32.totalorder %s46, 1
      %p331 = scmp.ne.s32.totalorder %s326, %s328
      %p332 = scmp.eq.s32.totalorder %s46, 0
      %p333 = por %p331, %p332
      %p334 = scmp.ne.s32.totalorder %s326, %s328
      %p335 = scmp.eq.s32.totalorder %s51, 1
      %p336 = por %p334, %p335
      %p337 = scmp.ne.s32.totalorder %s328, %s329
      %p338 = scmp.eq.s32.totalorder %s51, 0
      %p339 = por %p337, %p338
      %p340 = scmp.ne.s32.totalorder %s328, %s329
      %p341 = scmp.eq.s32.totalorder %s52, 1
      %p342 = por %p340, %p341
      %p344 = scmp.ne.s32.totalorder %s329, %s343
      %p345 = scmp.eq.s32.totalorder %s52, 0
      %p346 = por %p344, %p345
      %s348 = sadd.s32 %s347, 1
      %p351 = scmp.eq.s32.totalorder %s46, 1
      %p352 = scmp.ne.s32.totalorder %s347, %s349
      %p353 = scmp.eq.s32.totalorder %s46, 0
      %p354 = por %p352, %p353
      %p355 = scmp.ne.s32.totalorder %s347, %s349
      %p356 = scmp.eq.s32.totalorder %s51, 1
      %p357 = por %p355, %p356
      %p358 = scmp.ne.s32.totalorder %s349, %s350
      %p359 = scmp.eq.s32.totalorder %s51, 0
      %p360 = por %p358, %p359
      %p361 = scmp.ne.s32.totalorder %s349, %s350
      %p362 = scmp.eq.s32.totalorder %s52, 1
      %p363 = por %p361, %p362
      %p365 = scmp.ne.s32.totalorder %s350, %s364
      %p366 = scmp.eq.s32.totalorder %s52, 0
      %p367 = por %p365, %p366
      %s369 = sadd.s32 %s368, 1
      %p372 = scmp.eq.s32.totalorder %s46, 1
      %p373 = scmp.ne.s32.totalorder %s368, %s370
      %p374 = scmp.eq.s32.totalorder %s46, 0
      %p375 = por %p373, %p374
      %p376 = scmp.ne.s32.totalorder %s368, %s370
      %p377 = scmp.eq.s32.totalorder %s51, 1
      %p378 = por %p376, %p377
      %p379 = scmp.ne.s32.totalorder %s370, %s371
      %p380 = scmp.eq.s32.totalorder %s51, 0
      %p381 = por %p379, %p380
      %p382 = scmp.ne.s32.totalorder %s370, %s371
      %p383 = scmp.eq.s32.totalorder %s52, 1
      %p384 = por %p382, %p383
      %p386 = scmp.ne.s32.totalorder %s371, %s385
      %p387 = scmp.eq.s32.totalorder %s52, 0
      %p388 = por %p386, %p387
      %s390 = sadd.s32 %s389, 1
      %p393 = scmp.eq.s32.totalorder %s46, 1
      %p394 = scmp.ne.s32.totalorder %s389, %s391
      %p395 = scmp.eq.s32.totalorder %s46, 0
      %p396 = por %p394, %p395
      %p397 = scmp.ne.s32.totalorder %s389, %s391
      %p398 = scmp.eq.s32.totalorder %s51, 1
      %p399 = por %p397, %p398
      %p400 = scmp.ne.s32.totalorder %s391, %s392
      %p401 = scmp.eq.s32.totalorder %s51, 0
      %p402 = por %p400, %p401
      %p403 = scmp.ne.s32.totalorder %s391, %s392
      %p404 = scmp.eq.s32.totalorder %s52, 1
      %p405 = por %p403, %p404
      %p407 = scmp.ne.s32.totalorder %s392, %s406
      %p408 = scmp.eq.s32.totalorder %s52, 0
      %p409 = por %p407, %p408
      %s411 = sadd.s32 %s410, 1
      %p414 = scmp.eq.s32.totalorder %s46, 1
      %p415 = scmp.ne.s32.totalorder %s410, %s412
      %p416 = scmp.eq.s32.totalorder %s46, 0
      %p417 = por %p415, %p416
      %p418 = scmp.ne.s32.totalorder %s410, %s412
      %p419 = scmp.eq.s32.totalorder %s51, 1
      %p420 = por %p418, %p419
      %p421 = scmp.ne.s32.totalorder %s412, %s413
      %p422 = scmp.eq.s32.totalorder %s51, 0
      %p423 = por %p421, %p422
      %p424 = scmp.ne.s32.totalorder %s412, %s413
      %p425 = scmp.eq.s32.totalorder %s52, 1
      %p426 = por %p424, %p425
      %p428 = scmp.ne.s32.totalorder %s413, %s427
      %p429 = scmp.eq.s32.totalorder %s52, 0
      %p430 = por %p428, %p429
      %s432 = sadd.s32 %s431, 1
      %p435 = scmp.eq.s32.totalorder %s46, 1
      %p436 = scmp.ne.s32.totalorder %s431, %s433
      %p437 = scmp.eq.s32.totalorder %s46, 0
      %p438 = por %p436, %p437
      %p439 = scmp.ne.s32.totalorder %s431, %s433
      %p440 = scmp.eq.s32.totalorder %s51, 1
      %p441 = por %p439, %p440
      %p442 = scmp.ne.s32.totalorder %s433, %s434
      %p443 = scmp.eq.s32.totalorder %s51, 0
      %p444 = por %p442, %p443
      %p445 = scmp.ne.s32.totalorder %s433, %s434
      %p446 = scmp.eq.s32.totalorder %s52, 1
      %p447 = por %p445, %p446
      %p449 = scmp.ne.s32.totalorder %s434, %s448
      %p450 = scmp.eq.s32.totalorder %s52, 0
      %p451 = por %p449, %p450
      %s453 = sadd.s32 %s452, 1
      %p456 = scmp.eq.s32.totalorder %s46, 1
      %p457 = scmp.ne.s32.totalorder %s452, %s454
      %p458 = scmp.eq.s32.totalorder %s46, 0
      %p459 = por %p457, %p458
      %p460 = scmp.ne.s32.totalorder %s452, %s454
      %p461 = scmp.eq.s32.totalorder %s51, 1
      %p462 = por %p460, %p461
      %p463 = scmp.ne.s32.totalorder %s454, %s455
      %p464 = scmp.eq.s32.totalorder %s51, 0
      %p465 = por %p463, %p464
      %p466 = scmp.ne.s32.totalorder %s454, %s455
      %p467 = scmp.eq.s32.totalorder %s52, 1
      %p468 = por %p466, %p467
      %p470 = scmp.ne.s32.totalorder %s455, %s469
      %p471 = scmp.eq.s32.totalorder %s52, 0
      %p472 = por %p470, %p471
      %s474 = sadd.s32 %s473, 1
      %p477 = scmp.eq.s32.totalorder %s46, 1
      %p478 = scmp.ne.s32.totalorder %s473, %s475
      %p479 = scmp.eq.s32.totalorder %s46, 0
      %p480 = por %p478, %p479
      %p481 = scmp.ne.s32.totalorder %s473, %s475
      %p482 = scmp.eq.s32.totalorder %s51, 1
      %p483 = por %p481, %p482
      %p484 = scmp.ne.s32.totalorder %s475, %s476
      %p485 = scmp.eq.s32.totalorder %s51, 0
      %p486 = por %p484, %p485
      %p487 = scmp.ne.s32.totalorder %s475, %s476
      %p488 = scmp.eq.s32.totalorder %s52, 1
      %p489 = por %p487, %p488
      %p491 = scmp.ne.s32.totalorder %s476, %s490
      %p492 = scmp.eq.s32.totalorder %s52, 0
      %p493 = por %p491, %p492
      %s495 = sadd.s32 %s494, 1
      %p498 = scmp.eq.s32.totalorder %s46, 1
      %p499 = scmp.ne.s32.totalorder %s494, %s496
      %p500 = scmp.eq.s32.totalorder %s46, 0
      %p501 = por %p499, %p500
      %p502 = scmp.ne.s32.totalorder %s494, %s496
      %p503 = scmp.eq.s32.totalorder %s51, 1
      %p504 = por %p502, %p503
      %p505 = scmp.ne.s32.totalorder %s496, %s497
      %p506 = scmp.eq.s32.totalorder %s51, 0
      %p507 = por %p505, %p506
      %p508 = scmp.ne.s32.totalorder %s496, %s497
      %p509 = scmp.eq.s32.totalorder %s52, 1
      %p510 = por %p508, %p509
      %p512 = scmp.ne.s32.totalorder %s497, %s511
      %p513 = scmp.eq.s32.totalorder %s52, 0
      %p514 = por %p512, %p513
      %s516 = sadd.s32 %s515, 1
      %p519 = scmp.eq.s32.totalorder %s46, 1
      %p520 = scmp.ne.s32.totalorder %s515, %s517
      %p521 = scmp.eq.s32.totalorder %s46, 0
      %p522 = por %p520, %p521
      %p523 = scmp.ne.s32.totalorder %s515, %s517
      %p524 = scmp.eq.s32.totalorder %s51, 1
      %p525 = por %p523, %p524
      %p526 = scmp.ne.s32.totalorder %s517, %s518
      %p527 = scmp.eq.s32.totalorder %s51, 0
      %p528 = por %p526, %p527
      %p529 = scmp.ne.s32.totalorder %s517, %s518
      %p530 = scmp.eq.s32.totalorder %s52, 1
      %p531 = por %p529, %p530
      %p533 = scmp.ne.s32.totalorder %s518, %s532
      %p534 = scmp.eq.s32.totalorder %s52, 0
      %p535 = por %p533, %p534
      %s536 = ssub.s32 %s46, %s53
      %p537 = scmp.eq.s32.totalorder %s536, 0
      %s539 = sadd.s32 %s538, 1
      %s540 = scalar_select %p537, %s538, %s539
      %p543 = pneg %p537
      %p544 = scmp.eq.s32.totalorder %s46, 1
      %p545 = por %p543, %p544
      %p546 = scmp.ne.s32.totalorder %s538, %s541
      %p547 = scmp.eq.s32.totalorder %s46, 0
      %p548 = por %p546, %p547
      %p549 = scmp.ne.s32.totalorder %s538, %s541
      %p550 = scmp.eq.s32.totalorder %s51, 1
      %p551 = por %p549, %p550
      %p552 = scmp.ne.s32.totalorder %s541, %s542
      %p553 = scmp.eq.s32.totalorder %s51, 0
      %p554 = por %p552, %p553
      %p555 = scmp.ne.s32.totalorder %s541, %s542
      %p556 = scmp.eq.s32.totalorder %s52, 1
      %p557 = por %p555, %p556
      %p559 = scmp.ne.s32.totalorder %s542, %s558
      %p560 = scmp.eq.s32.totalorder %s52, 0
      %p561 = por %p559, %p560
      %s562 = ssub.s32 %s46, %s53
      %p563 = scmp.eq.s32.totalorder %s562, 0
      %s565 = sadd.s32 %s564, 1
      %s566 = scalar_select %p563, %s564, %s565
      %p569 = pneg %p563
      %p570 = scmp.eq.s32.totalorder %s46, 1
      %p571 = por %p569, %p570
      %p572 = scmp.ne.s32.totalorder %s564, %s567
      %p573 = scmp.eq.s32.totalorder %s46, 0
      %p574 = por %p572, %p573
      %p575 = scmp.ne.s32.totalorder %s564, %s567
      %p576 = scmp.eq.s32.totalorder %s51, 1
      %p577 = por %p575, %p576
      %p578 = scmp.ne.s32.totalorder %s567, %s568
      %p579 = scmp.eq.s32.totalorder %s51, 0
      %p580 = por %p578, %p579
      %p581 = scmp.ne.s32.totalorder %s567, %s568
      %p582 = scmp.eq.s32.totalorder %s52, 1
      %p583 = por %p581, %p582
      %p585 = scmp.ne.s32.totalorder %s568, %s584
      %p586 = scmp.eq.s32.totalorder %s52, 0
      %p587 = por %p585, %p586
      %s588 = ssub.s32 %s46, %s53
      %p589 = scmp.eq.s32.totalorder %s588, 0
      %s591 = sadd.s32 %s590, 1
      %s592 = scalar_select %p589, %s590, %s591
      %p595 = pneg %p589
      %p596 = scmp.eq.s32.totalorder %s46, 1
      %p597 = por %p595, %p596
      %p598 = scmp.ne.s32.totalorder %s590, %s593
      %p599 = scmp.eq.s32.totalorder %s46, 0
      %p600 = por %p598, %p599
      %p601 = scmp.ne.s32.totalorder %s590, %s593
      %p602 = scmp.eq.s32.totalorder %s51, 1
      %p603 = por %p601, %p602
      %p604 = scmp.ne.s32.totalorder %s593, %s594
      %p605 = scmp.eq.s32.totalorder %s51, 0
      %p606 = por %p604, %p605
      %p607 = scmp.ne.s32.totalorder %s593, %s594
      %p608 = scmp.eq.s32.totalorder %s52, 1
      %p609 = por %p607, %p608
      %p611 = scmp.ne.s32.totalorder %s594, %s610
      %p612 = scmp.eq.s32.totalorder %s52, 0
      %p613 = por %p611, %p612
      %p614 = scmp.le.s32.totalorder 1, %s46
      %p615 = scmp.lt.s32.totalorder %s46, 3
      %p616 = pnand %p614, %p615
      %p617 = pneg %p616
      // Predicated region
      $region9: #{piano_forward.1} parent=5 // pred_check
        _
      $region10: #{piano_forward.1} parent=5 // pred_check_branch
        %619 = sbr.rel (%p616) target = $region12
      $region11: #{piano_forward.1} parent=5 // pred_region
        %s620 = ssub.s32 %s46, 1
        // Predicated region
        $region13: #{piano_forward.1} parent=11 // pred_check
          %p621 = pneg %p171
        $region14: #{piano_forward.1} parent=11 // pred_check_branch
          %623 = sbr.rel (%p621) target = $region16
        $region15: #{piano_forward.1} parent=11 // pred_region
          _
        $region16: #{piano_forward.1} parent=11 // pred_fallthru
          _
        // Predicated region
        $region17: #{piano_forward.1} parent=11 // pred_check
          %p624 = pneg %p192
        $region18: #{piano_forward.1} parent=11 // pred_check_branch
          %626 = sbr.rel (%p624) target = $region20
        $region19: #{piano_forward.1} parent=11 // pred_region
          _
        $region20: #{piano_forward.1} parent=11 // pred_fallthru
          _
        // Predicated region
        $region21: #{piano_forward.1} parent=11 // pred_check
          %p627 = pneg %p213
        $region22: #{piano_forward.1} parent=11 // pred_check_branch
          %629 = sbr.rel (%p627) target = $region24
        $region23: #{piano_forward.1} parent=11 // pred_region
          _
        $region24: #{piano_forward.1} parent=11 // pred_fallthru
          _
        // Predicated region
        $region25: #{piano_forward.1} parent=11 // pred_check
          %p630 = pneg %p234
        $region26: #{piano_forward.1} parent=11 // pred_check_branch
          %632 = sbr.rel (%p630) target = $region28
        $region27: #{piano_forward.1} parent=11 // pred_region
          _
        $region28: #{piano_forward.1} parent=11 // pred_fallthru
          _
        // Predicated region
        $region29: #{piano_forward.1} parent=11 // pred_check
          %p633 = pneg %p255
        $region30: #{piano_forward.1} parent=11 // pred_check_branch
          %635 = sbr.rel (%p633) target = $region32
        $region31: #{piano_forward.1} parent=11 // pred_region
          _
        $region32: #{piano_forward.1} parent=11 // pred_fallthru
          _
        // Predicated region
        $region33: #{piano_forward.1} parent=11 // pred_check
          %p636 = pneg %p276
        $region34: #{piano_forward.1} parent=11 // pred_check_branch
          %638 = sbr.rel (%p636) target = $region36
        $region35: #{piano_forward.1} parent=11 // pred_region
          _
        $region36: #{piano_forward.1} parent=11 // pred_fallthru
          _
        // Predicated region
        $region37: #{piano_forward.1} parent=11 // pred_check
          %p639 = pneg %p297
        $region38: #{piano_forward.1} parent=11 // pred_check_branch
          %641 = sbr.rel (%p639) target = $region40
        $region39: #{piano_forward.1} parent=11 // pred_region
          _
        $region40: #{piano_forward.1} parent=11 // pred_fallthru
          _
        // Predicated region
        $region41: #{piano_forward.1} parent=11 // pred_check
          %p642 = pneg %p318
        $region42: #{piano_forward.1} parent=11 // pred_check_branch
          %644 = sbr.rel (%p642) target = $region44
        $region43: #{piano_forward.1} parent=11 // pred_region
          _
        $region44: #{piano_forward.1} parent=11 // pred_fallthru
          _
        // Predicated region
        $region45: #{piano_forward.1} parent=11 // pred_check
          %p645 = pneg %p339
        $region46: #{piano_forward.1} parent=11 // pred_check_branch
          %647 = sbr.rel (%p645) target = $region48
        $region47: #{piano_forward.1} parent=11 // pred_region
          _
        $region48: #{piano_forward.1} parent=11 // pred_fallthru
          _
        // Predicated region
        $region49: #{piano_forward.1} parent=11 // pred_check
          %p648 = pneg %p360
        $region50: #{piano_forward.1} parent=11 // pred_check_branch
          %650 = sbr.rel (%p648) target = $region52
        $region51: #{piano_forward.1} parent=11 // pred_region
          _
        $region52: #{piano_forward.1} parent=11 // pred_fallthru
          _
        // Predicated region
        $region53: #{piano_forward.1} parent=11 // pred_check
          %p651 = pneg %p381
        $region54: #{piano_forward.1} parent=11 // pred_check_branch
          %653 = sbr.rel (%p651) target = $region56
        $region55: #{piano_forward.1} parent=11 // pred_region
          _
        $region56: #{piano_forward.1} parent=11 // pred_fallthru
          _
        // Predicated region
        $region57: #{piano_forward.1} parent=11 // pred_check
          %p654 = pneg %p402
        $region58: #{piano_forward.1} parent=11 // pred_check_branch
          %656 = sbr.rel (%p654) target = $region60
        $region59: #{piano_forward.1} parent=11 // pred_region
          _
        $region60: #{piano_forward.1} parent=11 // pred_fallthru
          _
        // Predicated region
        $region61: #{piano_forward.1} parent=11 // pred_check
          %p657 = pneg %p423
        $region62: #{piano_forward.1} parent=11 // pred_check_branch
          %659 = sbr.rel (%p657) target = $region64
        $region63: #{piano_forward.1} parent=11 // pred_region
          _
        $region64: #{piano_forward.1} parent=11 // pred_fallthru
          _
        // Predicated region
        $region65: #{piano_forward.1} parent=11 // pred_check
          %p660 = pneg %p444
        $region66: #{piano_forward.1} parent=11 // pred_check_branch
          %662 = sbr.rel (%p660) target = $region68
        $region67: #{piano_forward.1} parent=11 // pred_region
          _
        $region68: #{piano_forward.1} parent=11 // pred_fallthru
          _
        // Predicated region
        $region69: #{piano_forward.1} parent=11 // pred_check
          %p663 = pneg %p465
        $region70: #{piano_forward.1} parent=11 // pred_check_branch
          %665 = sbr.rel (%p663) target = $region72
        $region71: #{piano_forward.1} parent=11 // pred_region
          _
        $region72: #{piano_forward.1} parent=11 // pred_fallthru
          _
        // Predicated region
        $region73: #{piano_forward.1} parent=11 // pred_check
          %p666 = pneg %p486
        $region74: #{piano_forward.1} parent=11 // pred_check_branch
          %668 = sbr.rel (%p666) target = $region76
        $region75: #{piano_forward.1} parent=11 // pred_region
          _
        $region76: #{piano_forward.1} parent=11 // pred_fallthru
          _
        // Predicated region
        $region77: #{piano_forward.1} parent=11 // pred_check
          %p669 = pneg %p507
        $region78: #{piano_forward.1} parent=11 // pred_check_branch
          %671 = sbr.rel (%p669) target = $region80
        $region79: #{piano_forward.1} parent=11 // pred_region
          _
        $region80: #{piano_forward.1} parent=11 // pred_fallthru
          _
        // Predicated region
        $region81: #{piano_forward.1} parent=11 // pred_check
          %p672 = pneg %p528
        $region82: #{piano_forward.1} parent=11 // pred_check_branch
          %674 = sbr.rel (%p672) target = $region84
        $region83: #{piano_forward.1} parent=11 // pred_region
          _
        $region84: #{piano_forward.1} parent=11 // pred_fallthru
          _
      $region12: #{piano_forward.1} parent=5 // pred_fallthru
        _
      %p675 = scmp.lt.s32.totalorder %s46, 2
      // Predicated region
      $region85: #{piano_forward.1} parent=5 // pred_check
        %p676 = pneg %p675
      $region86: #{piano_forward.1} parent=5 // pred_check_branch
        %678 = sbr.rel (%p676) target = $region88
      $region87: #{piano_forward.1} parent=5 // pred_region
        // Predicated region
        $region89: #{piano_forward.1} parent=87 // pred_check
          %p679 = pneg %p66
        $region90: #{piano_forward.1} parent=87 // pred_check_branch
          %681 = sbr.rel (%p679) target = $region92
        $region91: #{piano_forward.1} parent=87 // pred_region
          %p682 = scmp.lt.s32.totalorder %s46, 1
          %s683 = scalar_select %p682, %s46, 1
          %s684 = smul.addr %s683, 8
          %s685 = scalar_lea.vmem %s1, %s684
        $region92: #{piano_forward.1} parent=87 // pred_fallthru
          _
        // Predicated region
        $region93: #{piano_forward.1} parent=87 // pred_check
          %p686 = pneg %p92
        $region94: #{piano_forward.1} parent=87 // pred_check_branch
          %688 = sbr.rel (%p686) target = $region96
        $region95: #{piano_forward.1} parent=87 // pred_region
          %p689 = scmp.lt.s32.totalorder %s46, 1
          %s690 = scalar_select %p689, %s46, 1
          %s691 = smul.addr %s690, 4
          %s692 = scalar_lea.vmem %s2, %s691
        $region96: #{piano_forward.1} parent=87 // pred_fallthru
          _
        // Predicated region
        $region97: #{piano_forward.1} parent=87 // pred_check
          %p693 = pneg %p118
        $region98: #{piano_forward.1} parent=87 // pred_check_branch
          %695 = sbr.rel (%p693) target = $region100
        $region99: #{piano_forward.1} parent=87 // pred_region
          %p696 = scmp.lt.s32.totalorder %s46, 1
          %s697 = scalar_select %p696, %s46, 1
          %s698 = smul.addr %s697, 4
          %s699 = scalar_lea.vmem %s3, %s698
        $region100: #{piano_forward.1} parent=87 // pred_fallthru
          _
        // Predicated region
        $region101: #{piano_forward.1} parent=87 // pred_check
          %p700 = pneg %p144
        $region102: #{piano_forward.1} parent=87 // pred_check_branch
          %702 = sbr.rel (%p700) target = $region104
        $region103: #{piano_forward.1} parent=87 // pred_region
          %p703 = scmp.lt.s32.totalorder %s46, 1
          %s704 = scalar_select %p703, %s46, 1
          %s705 = smul.addr %s704, 4
          %s706 = scalar_lea.vmem %s4, %s705
        $region104: #{piano_forward.1} parent=87 // pred_fallthru
          _
      $region88: #{piano_forward.1} parent=5 // pred_fallthru
        _
      %p707 = scmp.le.s32.totalorder 1, %s46
      %p708 = scmp.lt.s32.totalorder %s46, 3
      %p709 = pnand %p707, %p708
      %p710 = pneg %p709
      // Predicated region
      $region105: #{piano_forward.1} parent=5 // pred_check
        _
      $region106: #{piano_forward.1} parent=5 // pred_check_branch
        %712 = sbr.rel (%p709) target = $region108
      $region107: #{piano_forward.1} parent=5 // pred_region
        %s713 = ssub.s32 %s46, 1
        %p714 = scmp.lt.s32.totalorder %s51, 1
        %s715 = scalar_select %p714, %s51, 1
        %s716 = smul.addr %s715, 8
        %s717 = scalar_lea.vmem %s1, %s716
        %p718 = pneg %p72
        %p719 = pneg %p69
        %p720 = scmp.lt.s32.totalorder %s51, 1
        %s721 = scalar_select %p720, %s51, 1
        %s722 = smul.addr %s721, 4
        %s723 = scalar_lea.vmem %s2, %s722
        %p724 = pneg %p98
        %p725 = pneg %p95
        %p726 = scmp.lt.s32.totalorder %s51, 1
        %s727 = scalar_select %p726, %s51, 1
        %s728 = smul.addr %s727, 4
        %s729 = scalar_lea.vmem %s3, %s728
        %p730 = pneg %p124
        %p731 = pneg %p121
        %p732 = scmp.lt.s32.totalorder %s51, 1
        %s733 = scalar_select %p732, %s51, 1
        %s734 = smul.addr %s733, 4
        %s735 = scalar_lea.vmem %s4, %s734
        %p736 = pneg %p150
        %p737 = pneg %p147
        %p738 = pneg %p171
        %p739 = pneg %p168
        %p740 = pneg %p192
        %p741 = pneg %p189
        %p742 = pneg %p213
        %p743 = pneg %p210
        %p744 = pneg %p234
        %p745 = pneg %p231
        %p746 = pneg %p255
        %p747 = pneg %p252
        %p748 = pneg %p276
        %p749 = pneg %p273
        %p750 = pneg %p297
        %p751 = pneg %p294
        %p752 = pneg %p318
        %p753 = pneg %p315
        %p754 = pneg %p339
        %p755 = pneg %p336
        %p756 = pneg %p360
        %p757 = pneg %p357
        %p758 = pneg %p381
        %p759 = pneg %p378
        %p760 = pneg %p402
        %p761 = pneg %p399
        %p762 = pneg %p423
        %p763 = pneg %p420
        %p764 = pneg %p444
        %p765 = pneg %p441
        %p766 = pneg %p465
        %p767 = pneg %p462
        %p768 = pneg %p486
        %p769 = pneg %p483
        %p770 = pneg %p507
        %p771 = pneg %p504
        %p772 = pneg %p528
        %p773 = pneg %p525
        %p774 = pneg %p554
        %p775 = pneg %p551
        %s776 = sand.u32 %s541, 1
        %s777 = scalar_lea.sflag [#allocation5], %s776
        %s778 = sand.u32 %s541, 1
        %s779 = scalar_lea.vmem [#allocation4], %s778
        %p780 = pneg %p580
        %p781 = pneg %p577
        %s782 = sand.u32 %s51, 1
        %s783 = scalar_lea.sflag [#allocation7], %s782
        %s784 = sand.u32 %s567, 1
        %s785 = scalar_lea.vmem [#allocation6], %s784
        %p786 = pneg %p606
        %p787 = pneg %p603
        %s788 = sand.u32 %s51, 1
        %s789 = scalar_lea.sflag [#allocation7], %s788
        %s790 = sand.u32 %s593, 1
        %s791 = scalar_lea.vmem [#allocation8], %s790
        %p792 = scmp.lt.s32.totalorder %s51, 1
        %s793 = scalar_select %p792, %s51, 1
        %s794 = smul.addr %s793, 8
        %s795 = scalar_lea.vmem %s1, %s794
        %p796 = scmp.lt.s32.totalorder %s51, 1
        %s797 = scalar_select %p796, %s51, 1
        %s798 = smul.addr %s797, 4
        %s799 = scalar_lea.vmem %s2, %s798
        %p800 = scmp.lt.s32.totalorder %s51, 1
        %s801 = scalar_select %p800, %s51, 1
        %s802 = smul.addr %s801, 4
        %s803 = scalar_lea.vmem %s3, %s802
        %p804 = scmp.lt.s32.totalorder %s51, 1
        %s805 = scalar_select %p804, %s51, 1
        %s806 = smul.addr %s805, 4
        %s807 = scalar_lea.vmem %s4, %s806
        %s808 = sld [smem:[#allocation3 + %s51]]
        %v809 = vlaneseq
        %v810 = vshrl.u32 %v809, 7
        %v811 = vstv %s808
        %vm812 = vcmp.eq.s32.totalorder %v810, %v811
        %v813 = vsel %vm812, 1, 0
        %v814 = vcvt.s32.f32 %v813
        %v815 = vld [vmem:[%s5] sm:$0xf]
        %v816 = vmul.f32 %v815, %v814
        %vm817 = vcmask 60416
        %v818 = vsel %vm817, %v816, 0.0
        %v819 = vrot.slane %v818, 4
        %v820 = vadd.f32 %v818, %v819
        %v821 = vrot.slane %v820, 2
        %v822 = vadd.f32 %v820, %v821
        %v823 = vrot.slane %v822, 1
        %v824 = vadd.f32 %v822, %v823
        %v825 = vld [vmem:[%s6] sm:$0xf]
        %v826 = vmul.f32 %v825, %v814
        %vm827 = vcmask 3072
        %v828 = vsel %vm827, %v826, 0.0
        %v829 = vrot.slane %v828, 4
        %v830 = vadd.f32 %v828, %v829
        %v831 = vrot.slane %v830, 2
        %v832 = vadd.f32 %v830, %v831
        %v833 = vrot.slane %v832, 1
        %v834 = vadd.f32 %v832, %v833
        %v835 = vld [vmem:[%s7] sm:$0xf]
        %v836 = vmul.f32 %v835, %v814
        %v837 = vsel %vm827, %v836, 0.0
        %v838 = vrot.slane %v837, 4
        %v839 = vadd.f32 %v837, %v838
        %v840 = vrot.slane %v839, 2
        %v841 = vadd.f32 %v839, %v840
        %v842 = vrot.slane %v841, 1
        %v843 = vadd.f32 %v841, %v842
        %v844 = vld [vmem:[%s8] sm:$0xf]
        %v845 = vmul.f32 %v844, %v814
        %vm846 = vcmask 125952
        %v847 = vsel %vm846, %v845, 0.0
        %v848 = vrot.slane %v847, 4
        %v849 = vadd.f32 %v847, %v848
        %v850 = vrot.slane %v849, 2
        %v851 = vadd.f32 %v849, %v850
        %v852 = vrot.slane %v851, 1
        %v853 = vadd.f32 %v851, %v852
        %v854 = vld [vmem:[%s22] sm:$0x1]
        %v855 = vld [vmem:[%s795] sm:$0xff]
        %v856 = vld [vmem:[%s799] sm:$0xf]
        %v857 = vld [vmem:[%s13] sm:$0xff]
        %v858 = vld [vmem:[%s13 + $0x8] sm:$0xff]
        %v859 = vld [vmem:[%s13 + $0x10] sm:$0xff]
        %v860 = vld [vmem:[%s13 + $0x18] sm:$0xff]
        %v861 = vmul.f32 %v857, %v824
        %v862 = vmul.f32 %v858, %v824
        %v863 = vmul.f32 %v859, %v824
        %v864 = vmul.f32 %v860, %v824
        %vm865 = vcmask 64512
        %v866 = vsel %vm865, %v861, 0.0
        %867 = vadd.xlane.f32.xlu0 %v866
        %v868 = vpop.xlane.xlu0 %867
        %v869 = vsel %vm865, %v862, 0.0
        %870 = vadd.xlane.f32.xlu0 %v869
        %v871 = vpop.xlane.xlu0 %870
        %v872 = vsel %vm865, %v863, 0.0
        %873 = vadd.xlane.f32.xlu0 %v872
        %v874 = vpop.xlane.xlu0 %873
        %v875 = vsel %vm865, %v864, 0.0
        %876 = vadd.xlane.f32.xlu0 %v875
        %v877 = vpop.xlane.xlu0 %876
        %v878 = vld [vmem:[%s11] sm:$0xff]
        %v879 = vld [vmem:[%s11 + $0x8] sm:$0xff]
        %v880 = vld [vmem:[%s11 + $0x10] sm:$0xff]
        %v881 = vld [vmem:[%s11 + $0x18] sm:$0xff]
        %v882 = vld [vmem:[%s12] sm:$0xff]
        %v883 = vld [vmem:[%s12 + $0x8] sm:$0xff]
        %v884 = vld [vmem:[%s12 + $0x10] sm:$0xff]
        %v885 = vld [vmem:[%s12 + $0x18] sm:$0xff]
        %vm886 = vcmask 31744
        %v888 = vsel %vm886, %v882, 0
        %v891 = vsel %vm886, %v883, 0
        %v894 = vsel %vm886, %v884, 0
        %v897 = vsel %vm886, %v885, 0
        %vm899 = vcmask 1043456
        %v901 = vsel %vm899, %v856, 0
        %903 = vmatpush.msra.mxu0 0.0
        %904 = vmatpush.msra.mxu0 0.0
        %905 = vmatpush.msra.mxu0 0.0
        %906 = vmatpush.msra.mxu0 0.0
        %907 = vmatpush.msra.mxu0 0.0
        %908 = vmatpush.msra.mxu0 0.0
        %909 = vmatpush.msra.mxu0 0.0
        %910 = vmatpush.msra.mxu0 0.0
        %911 = vmatpush.msra.mxu0 0.0
        %912 = vmatpush.msra.mxu0 0.0
        %913 = vmatpush.msra.mxu0 0.0
        %914 = vmatpush.msra.mxu0 0.0
        %915 = vmatpush.msra.mxu0 0.0
        %916 = vmatpush.msra.mxu0 0.0
        %917 = vmatpush.msra.mxu0 0.0
        %918 = vmatpush.msra.mxu0 %v901
        %919 = vmatmul.f32.gmra.mxu0 %v888
        %v920 = vpop.f32.mrf.mxu0
        %v921 = vadd.f32 0.0, %v920
        %922 = vmatmul.f32.gmra.mxu0 %v891
        %v923 = vpop.f32.mrf.mxu0
        %v924 = vadd.f32 0.0, %v923
        %925 = vmatmul.f32.gmra.mxu0 %v894
        %v926 = vpop.f32.mrf.mxu0
        %v927 = vadd.f32 0.0, %v926
        %928 = vmatmul.f32.gmra.mxu0 %v897
        %v929 = vpop.f32.mrf.mxu0
        %v930 = vadd.f32 0.0, %v929
        %931 = vdwg.mxu0
        %v933 = vsel %vm865, %v878, 0
        %v936 = vsel %vm865, %v879, 0
        %v939 = vsel %vm865, %v880, 0
        %v942 = vsel %vm865, %v881, 0
        %944 = vmatpush.msra.mxu0 0.0
        %945 = vmatpush.msra.mxu0 0.0
        %946 = vmatpush.msra.mxu0 0.0
        %947 = vmatpush.msra.mxu0 0.0
        %948 = vmatpush.msra.mxu0 0.0
        %949 = vmatpush.msra.mxu0 0.0
        %950 = vmatpush.msra.mxu0 0.0
        %951 = vmatpush.msra.mxu0 0.0
        %952 = vmatpush.msra.mxu0 0.0
        %953 = vmatpush.msra.mxu0 0.0
        %954 = vmatpush.msra.mxu0 0.0
        %955 = vmatpush.msra.mxu0 0.0
        %956 = vmatpush.msra.mxu0 0.0
        %957 = vmatpush.msra.mxu0 0.0
        %958 = vmatpush.msra.mxu0 0.0
        %959 = vmatpush.msra.mxu0 %v855
        %960 = vmatmul.f32.gmra.mxu0 %v933
        %v961 = vpop.f32.mrf.mxu0
        %v962 = vadd.f32 %v921, %v961
        %963 = vmatmul.f32.gmra.mxu0 %v936
        %v964 = vpop.f32.mrf.mxu0
        %v965 = vadd.f32 %v924, %v964
        %966 = vmatmul.f32.gmra.mxu0 %v939
        %v967 = vpop.f32.mrf.mxu0
        %v968 = vadd.f32 %v927, %v967
        %969 = vmatmul.f32.gmra.mxu0 %v942
        %v970 = vpop.f32.mrf.mxu0
        %v971 = vadd.f32 %v930, %v970
        %972 = vdwg.mxu0
        %v973 = vadd.f32 %v962, %v868
        %v974 = vadd.f32 %v965, %v871
        %v975 = vadd.f32 %v968, %v874
        %v976 = vadd.f32 %v971, %v877
        %v977 = vld [vmem:[%s14] sm:$0xff]
        %v978 = vld [vmem:[%s14 + $0x8] sm:$0xff]
        %v979 = vld [vmem:[%s14 + $0x10] sm:$0xff]
        %v980 = vld [vmem:[%s14 + $0x18] sm:$0xff]
        %982 = vset.pattern.permute.xlu0 0
        %983 = vperm.xlu0 %982, %v977
        %v984 = vpop.permute.xlu0 %983
        %987 = vset.pattern.permute.xlu0 0
        %988 = vperm.xlu0 %987, %v978
        %v989 = vpop.permute.xlu0 %988
        %992 = vset.pattern.permute.xlu0 0
        %993 = vperm.xlu0 %992, %v979
        %v994 = vpop.permute.xlu0 %993
        %997 = vset.pattern.permute.xlu0 0
        %998 = vperm.xlu0 %997, %v980
        %v999 = vpop.permute.xlu0 %998
        %v1001 = vadd.f32 %v973, %v984
        %v1002 = vadd.f32 %v974, %v989
        %v1003 = vadd.f32 %v975, %v994
        %v1004 = vadd.f32 %v976, %v999
        %v1005 = vmax.f32 %v1001, 0.0
        %v1006 = vmax.f32 %v1002, 0.0
        %v1007 = vmax.f32 %v1003, 0.0
        %v1008 = vmax.f32 %v1004, 0.0
        %v1009 = vld [vmem:[%s15] sm:$0xff]
        %v1010 = vld [vmem:[%s15 + $0x8] sm:$0xff]
        %v1011 = vld [vmem:[%s16] sm:$0xff]
        %v1012 = vld [vmem:[%s16 + $0x8] sm:$0xff]
        %1014 = vset.pattern.permute.xlu0 0
        %1015 = vperm.xlu0 %1014, %v1011
        %v1016 = vpop.permute.xlu0 %1015
        %1019 = vset.pattern.permute.xlu0 0
        %1020 = vperm.xlu0 %1019, %v1012
        %v1021 = vpop.permute.xlu0 %1020
        %vm1023 = vcmask 261120
        %v1025 = vsel %vm1023, %v1009, 0
        %v1028 = vsel %vm1023, %v1010, 0
        %1030 = vmatpush.msra.mxu0 0.0
        %1031 = vmatpush.msra.mxu0 0.0
        %1032 = vmatpush.msra.mxu0 0.0
        %1033 = vmatpush.msra.mxu0 0.0
        %1034 = vmatpush.msra.mxu0 0.0
        %1035 = vmatpush.msra.mxu0 0.0
        %1036 = vmatpush.msra.mxu0 0.0
        %1037 = vmatpush.msra.mxu0 0.0
        %1038 = vmatpush.msra.mxu0 0.0
        %1039 = vmatpush.msra.mxu0 0.0
        %1040 = vmatpush.msra.mxu0 0.0
        %1041 = vmatpush.msra.mxu0 0.0
        %1042 = vmatpush.msra.mxu0 %v1008
        %1043 = vmatpush.msra.mxu0 %v1007
        %1044 = vmatpush.msra.mxu0 %v1006
        %1045 = vmatpush.msra.mxu0 %v1005
        %1046 = vmatmul.f32.gmra.mxu0 %v1025
        %v1047 = vpop.f32.mrf.mxu0
        %v1048 = vadd.f32 %v1016, %v1047
        %1049 = vmatmul.f32.gmra.mxu0 %v1028
        %v1050 = vpop.f32.mrf.mxu0
        %v1051 = vadd.f32 %v1021, %v1050
        %1052 = vdwg.mxu0
        %v1053 = vld [vmem:[%s18] sm:$0xff]
        %v1054 = vld [vmem:[%s18 + $0x8] sm:$0xff]
        %v1055 = vld [vmem:[%s18 + $0x10] sm:$0xff]
        %v1056 = vld [vmem:[%s18 + $0x18] sm:$0xff]
        %vm1057 = vcmask 130048
        %v1059 = vsel %vm1057, %v1053, 0
        %v1062 = vsel %vm1057, %v1054, 0
        %v1065 = vsel %vm1057, %v1055, 0
        %v1068 = vsel %vm1057, %v1056, 0
        %1070 = vmatpush.msra.mxu0 0.0
        %1071 = vmatpush.msra.mxu0 0.0
        %1072 = vmatpush.msra.mxu0 0.0
        %1073 = vmatpush.msra.mxu0 0.0
        %1074 = vmatpush.msra.mxu0 0.0
        %1075 = vmatpush.msra.mxu0 0.0
        %1076 = vmatpush.msra.mxu0 0.0
        %1077 = vmatpush.msra.mxu0 0.0
        %1078 = vmatpush.msra.mxu0 0.0
        %1079 = vmatpush.msra.mxu0 0.0
        %1080 = vmatpush.msra.mxu0 0.0
        %1081 = vmatpush.msra.mxu0 0.0
        %1082 = vmatpush.msra.mxu0 0.0
        %1083 = vmatpush.msra.mxu0 0.0
        %1084 = vmatpush.msra.mxu0 %v1051
        %1085 = vmatpush.msra.mxu0 %v1048
        %1086 = vmatmul.f32.gmra.mxu0 %v1059
        %v1087 = vpop.f32.mrf.mxu0
        %v1088 = vadd.f32 0.0, %v1087
        %1089 = vmatmul.f32.gmra.mxu0 %v1062
        %v1090 = vpop.f32.mrf.mxu0
        %v1091 = vadd.f32 0.0, %v1090
        %1092 = vmatmul.f32.gmra.mxu0 %v1065
        %v1093 = vpop.f32.mrf.mxu0
        %v1094 = vadd.f32 0.0, %v1093
        %1095 = vmatmul.f32.gmra.mxu0 %v1068
        %v1096 = vpop.f32.mrf.mxu0
        %v1097 = vadd.f32 0.0, %v1096
        %1098 = vdwg.mxu0
        %v1099 = vld [vmem:[%s803] sm:$0xf]
        %v1100 = vld [vmem:[%s807] sm:$0xf]
        %v1101 = vld [vmem:[%s9] sm:$0xff]
        %v1102 = vld [vmem:[%s10] sm:$0xff]
        %v1103 = vld [vmem:[%s17] sm:$0xff]
        %v1104 = vld [vmem:[%s17 + $0x8] sm:$0xff]
        %v1105 = vld [vmem:[%s17 + $0x10] sm:$0xff]
        %v1106 = vld [vmem:[%s17 + $0x18] sm:$0xff]
        %v1107 = vld [vmem:[%s19] sm:$0xff]
        %v1108 = vld [vmem:[%s19 + $0x8] sm:$0xff]
        %v1109 = vld [vmem:[%s19 + $0x10] sm:$0xff]
        %v1110 = vld [vmem:[%s19 + $0x18] sm:$0xff]
        %v1111 = vld [vmem:[%s20] sm:$0xff]
        %v1112 = vld [vmem:[%s20 + $0x8] sm:$0xff]
        %v1113 = vld [vmem:[%s20 + $0x10] sm:$0xff]
        %v1114 = vld [vmem:[%s20 + $0x18] sm:$0x1]
        %v1115 = vld [vmem:[%s21] sm:$0xff]
        %v1116 = vld [vmem:[%s21 + $0x8] sm:$0xff]
        %v1117 = vld [vmem:[%s21 + $0x10] sm:$0xff]
        %v1118 = vld [vmem:[%s21 + $0x18] sm:$0x1]
        %v1119 = vadd.s32 %v810, 8
        %v1120 = vadd.s32 %v810, 1
        %v1121 = vadd.s32 %v1119, 1
        %v1122 = vcvt.s32.f32 %v1120
        %v1123 = vcvt.s32.f32 %v1121
        %v1124 = vlaneseq
        %v1125 = vand.u32 %v1124, 127
        %vm1126 = vcmp.lt.s32.totalorder %v810, %v1125
        %v1127 = vsel %vm1126, 1, 0
        %v1128 = vcvt.s32.f32 %v1127
        %v1129 = vand.u32 %v1125, 15
        %v1130 = vadd.s32 %v1129, 1
        %v1131 = vcvt.s32.f32 %v1130
        %1133 = vset.pattern.permute.xlu0 0
        %1134 = vperm.xlu0 %1133, %v1103
        %v1135 = vpop.permute.xlu0 %1134
        %1138 = vset.pattern.permute.xlu0 0
        %1139 = vperm.xlu0 %1138, %v1104
        %v1140 = vpop.permute.xlu0 %1139
        %1143 = vset.pattern.permute.xlu0 0
        %1144 = vperm.xlu0 %1143, %v1105
        %v1145 = vpop.permute.xlu0 %1144
        %1148 = vset.pattern.permute.xlu0 0
        %1149 = vperm.xlu0 %1148, %v1106
        %v1150 = vpop.permute.xlu0 %1149
        %v1152 = vperm.slane %v1099, 0
        %v1153 = vmul.f32 %v1135, %v1152
        %v1154 = vmul.f32 %v1140, %v1152
        %v1155 = vmul.f32 %v1145, %v1152
        %v1156 = vmul.f32 %v1150, %v1152
        %1157 = vset.pattern.permute.xlu0 1
        %1158 = vperm.xlu0 %1157, %v1103
        %v1159 = vpop.permute.xlu0 %1158
        %1161 = vset.pattern.permute.xlu0 1
        %1162 = vperm.xlu0 %1161, %v1104
        %v1163 = vpop.permute.xlu0 %1162
        %1165 = vset.pattern.permute.xlu0 1
        %1166 = vperm.xlu0 %1165, %v1105
        %v1167 = vpop.permute.xlu0 %1166
        %1169 = vset.pattern.permute.xlu0 1
        %1170 = vperm.xlu0 %1169, %v1106
        %v1171 = vpop.permute.xlu0 %1170
        %v1173 = vperm.slane %v1100, 0
        %v1174 = vmul.f32 %v1159, %v1173
        %v1175 = vmul.f32 %v1163, %v1173
        %v1176 = vmul.f32 %v1167, %v1173
        %v1177 = vmul.f32 %v1171, %v1173
        %v1178 = vadd.f32 %v1153, %v1174
        %v1179 = vadd.f32 %v1154, %v1175
        %v1180 = vadd.f32 %v1155, %v1176
        %v1181 = vadd.f32 %v1156, %v1177
        %v1182 = vmul.f32 %v1099, 0.007874016
        %1183 = vset.pattern.permute.xlu0 2
        %1184 = vperm.xlu0 %1183, %v1103
        %v1185 = vpop.permute.xlu0 %1184
        %1187 = vset.pattern.permute.xlu0 2
        %1188 = vperm.xlu0 %1187, %v1104
        %v1189 = vpop.permute.xlu0 %1188
        %1191 = vset.pattern.permute.xlu0 2
        %1192 = vperm.xlu0 %1191, %v1105
        %v1193 = vpop.permute.xlu0 %1192
        %1195 = vset.pattern.permute.xlu0 2
        %1196 = vperm.xlu0 %1195, %v1106
        %v1197 = vpop.permute.xlu0 %1196
        %v1199 = vperm.slane %v1182, 0
        %v1200 = vmul.f32 %v1185, %v1199
        %v1201 = vmul.f32 %v1189, %v1199
        %v1202 = vmul.f32 %v1193, %v1199
        %v1203 = vmul.f32 %v1197, %v1199
        %v1204 = vadd.f32 %v1178, %v1200
        %v1205 = vadd.f32 %v1179, %v1201
        %v1206 = vadd.f32 %v1180, %v1202
        %v1207 = vadd.f32 %v1181, %v1203
        %v1208 = vadd.f32 %v1204, %v1088
        %v1209 = vadd.f32 %v1205, %v1091
        %v1210 = vadd.f32 %v1206, %v1094
        %v1211 = vadd.f32 %v1207, %v1097
        %1213 = vset.pattern.permute.xlu0 0
        %1214 = vperm.xlu0 %1213, %v1107
        %v1215 = vpop.permute.xlu0 %1214
        %1218 = vset.pattern.permute.xlu0 0
        %1219 = vperm.xlu0 %1218, %v1108
        %v1220 = vpop.permute.xlu0 %1219
        %1223 = vset.pattern.permute.xlu0 0
        %1224 = vperm.xlu0 %1223, %v1109
        %v1225 = vpop.permute.xlu0 %1224
        %1228 = vset.pattern.permute.xlu0 0
        %1229 = vperm.xlu0 %1228, %v1110
        %v1230 = vpop.permute.xlu0 %1229
        %v1232 = vadd.f32 %v1208, %v1215
        %v1233 = vadd.f32 %v1209, %v1220
        %v1234 = vadd.f32 %v1210, %v1225
        %v1235 = vadd.f32 %v1211, %v1230
        %v1236 = vmax.f32 %v1232, 0.0
        %v1237 = vmax.f32 %v1233, 0.0
        %v1238 = vmax.f32 %v1234, 0.0
        %v1239 = vmax.f32 %v1235, 0.0
        %1241 = vset.pattern.permute.xlu0 0
        %1242 = vperm.xlu0 %1241, %v1115
        %v1243 = vpop.permute.xlu0 %1242
        %1246 = vset.pattern.permute.xlu0 0
        %1247 = vperm.xlu0 %1246, %v1116
        %v1248 = vpop.permute.xlu0 %1247
        %1251 = vset.pattern.permute.xlu0 0
        %1252 = vperm.xlu0 %1251, %v1117
        %v1253 = vpop.permute.xlu0 %1252
        %1256 = vset.pattern.permute.xlu0 0
        %1257 = vperm.xlu0 %1256, %v1118
        %v1258 = vpop.permute.xlu0 %1257
        %v1261 = vsel %vm1023, %v1111, 0
        %v1264 = vsel %vm1023, %v1112, 0
        %v1267 = vsel %vm1023, %v1113, 0
        %v1270 = vsel %vm1023, %v1114, 0
        %1272 = vmatpush.msra.mxu0 0.0
        %1273 = vmatpush.msra.mxu0 0.0
        %1274 = vmatpush.msra.mxu0 0.0
        %1275 = vmatpush.msra.mxu0 0.0
        %1276 = vmatpush.msra.mxu0 0.0
        %1277 = vmatpush.msra.mxu0 0.0
        %1278 = vmatpush.msra.mxu0 0.0
        %1279 = vmatpush.msra.mxu0 0.0
        %1280 = vmatpush.msra.mxu0 0.0
        %1281 = vmatpush.msra.mxu0 0.0
        %1282 = vmatpush.msra.mxu0 0.0
        %1283 = vmatpush.msra.mxu0 0.0
        %1284 = vmatpush.msra.mxu0 %v1239
        %1285 = vmatpush.msra.mxu0 %v1238
        %1286 = vmatpush.msra.mxu0 %v1237
        %1287 = vmatpush.msra.mxu0 %v1236
        %1288 = vmatmul.f32.gmra.mxu0 %v1261
        %v1289 = vpop.f32.mrf.mxu0
        %v1290 = vadd.f32 %v1243, %v1289
        %1291 = vmatmul.f32.gmra.mxu0 %v1264
        %v1292 = vpop.f32.mrf.mxu0
        %v1293 = vadd.f32 %v1248, %v1292
        %1294 = vmatmul.f32.gmra.mxu0 %v1267
        %v1295 = vpop.f32.mrf.mxu0
        %v1296 = vadd.f32 %v1253, %v1295
        %1297 = vmatmul.f32.gmra.mxu0 %v1270
        %v1298 = vpop.f32.mrf.mxu0
        %v1299 = vadd.f32 %v1258, %v1298
        %1300 = vdwg.mxu0
        %v1301 = vsub.f32 0.0, %v1290
        %v1302 = vmul.f32 %v1301, 1.442695
        %v1303 = vpow.pop %v1302
        %v1304 = vadd.f32 %v1303, 1.0
        %v1305 = vrcp.pop %v1304
        %v1306 = vmul.f32 %v1304, %v1305
        %v1307 = vsub.f32 1.0, %v1306
        %v1308 = vmul.f32 %v1305, %v1307
        %v1309 = vadd.f32 %v1305, %v1308
        %vm1310 = vweird.f32 %v1304
        %vm1311 = vweird.f32 %v1305
        %vm1312 = vmor %vm1310, %vm1311
        %v1313 = vsel %vm1312, %v1305, %v1309
        %v1314 = vand.u32 2147483647, %v1304
        %vm1315 = vcmp.eq.f32.partialorder %v1314, 8.507059e+37
        %v1316 = vand.u32 %v1304, 2147483648
        %v1317 = vor.u32 1.1754944e-38, %v1316
        %v1318 = vsel %vm1315, %v1317, %v1313
        %v1319 = vmul.f32 1.0, %v1318
        %v1320 = vmax.f32 %v1319, 1e-20
        %v1321 = vlog2.pop %v1320
        %v1322 = vmul.f32 %v1321, 0.6931472
        %v1323 = vmul.f32 %v1322, 2.3025851
        %v1324 = vmul.f32 %v1323, 1.442695
        %v1325 = vpow.pop %v1324
        %v1326 = vmul.f32 %v1325, 2.0
        %v1327 = vadd.f32 %v1326, 1e-07
        %v1328 = vsub.f32 0.0, %v1293
        %v1329 = vsub.f32 0.0, %v1296
        %v1330 = vmul.f32 %v1328, 1.442695
        %v1331 = vpow.pop %v1330
        %v1332 = vmul.f32 %v1329, 1.442695
        %v1333 = vpow.pop %v1332
        %v1334 = vadd.f32 %v1331, 1.0
        %v1335 = vadd.f32 %v1333, 1.0
        %v1336 = vrcp.pop %v1334
        %v1337 = vmul.f32 %v1334, %v1336
        %v1338 = vsub.f32 1.0, %v1337
        %v1339 = vmul.f32 %v1336, %v1338
        %v1340 = vadd.f32 %v1336, %v1339
        %vm1341 = vweird.f32 %v1334
        %vm1342 = vweird.f32 %v1336
        %vm1343 = vmor %vm1341, %vm1342
        %v1344 = vsel %vm1343, %v1336, %v1340
        %v1345 = vand.u32 2147483647, %v1334
        %vm1346 = vcmp.eq.f32.partialorder %v1345, 8.507059e+37
        %v1347 = vand.u32 %v1334, 2147483648
        %v1348 = vor.u32 1.1754944e-38, %v1347
        %v1349 = vsel %vm1346, %v1348, %v1344
        %v1350 = vmul.f32 1.0, %v1349
        %v1351 = vrcp.pop %v1335
        %v1352 = vmul.f32 %v1335, %v1351
        %v1353 = vsub.f32 1.0, %v1352
        %v1354 = vmul.f32 %v1351, %v1353
        %v1355 = vadd.f32 %v1351, %v1354
        %vm1356 = vweird.f32 %v1335
        %vm1357 = vweird.f32 %v1351
        %vm1358 = vmor %vm1356, %vm1357
        %v1359 = vsel %vm1358, %v1351, %v1355
        %v1360 = vand.u32 2147483647, %v1335
        %vm1361 = vcmp.eq.f32.partialorder %v1360, 8.507059e+37
        %v1362 = vand.u32 %v1335, 2147483648
        %v1363 = vor.u32 1.1754944e-38, %v1362
        %v1364 = vsel %vm1361, %v1363, %v1359
        %v1365 = vmul.f32 1.0, %v1364
        %v1366 = vmax.f32 %v1350, 1e-20
        %v1367 = vmax.f32 %v1365, 1e-20
        %v1368 = vlog2.pop %v1366
        %v1369 = vmul.f32 %v1368, 0.6931472
        %v1370 = vlog2.pop %v1367
        %v1371 = vmul.f32 %v1370, 0.6931472
        %v1372 = vmul.f32 %v1369, 2.3025851
        %v1373 = vmul.f32 %v1371, 2.3025851
        %v1374 = vmul.f32 %v1372, 1.442695
        %v1375 = vpow.pop %v1374
        %v1376 = vmul.f32 %v1373, 1.442695
        %v1377 = vpow.pop %v1376
        %v1378 = vmul.f32 %v1375, 2.0
        %v1379 = vmul.f32 %v1377, 2.0
        %v1380 = vadd.f32 %v1378, 1e-07
        %v1381 = vadd.f32 %v1379, 1e-07
        %v1382 = vsub.f32 0.0, %v1299
        %v1383 = vmul.f32 %v1382, 1.442695
        %v1384 = vpow.pop %v1383
        %v1385 = vadd.f32 %v1384, 1.0
        %v1386 = vrcp.pop %v1385
        %v1387 = vmul.f32 %v1385, %v1386
        %v1388 = vsub.f32 1.0, %v1387
        %v1389 = vmul.f32 %v1386, %v1388
        %v1390 = vadd.f32 %v1386, %v1389
        %vm1391 = vweird.f32 %v1385
        %vm1392 = vweird.f32 %v1386
        %vm1393 = vmor %vm1391, %vm1392
        %v1394 = vsel %vm1393, %v1386, %v1390
        %v1395 = vand.u32 2147483647, %v1385
        %vm1396 = vcmp.eq.f32.partialorder %v1395, 8.507059e+37
        %v1397 = vand.u32 %v1385, 2147483648
        %v1398 = vor.u32 1.1754944e-38, %v1397
        %v1399 = vsel %vm1396, %v1398, %v1394
        %v1400 = vmul.f32 1.0, %v1399
        %v1401 = vmax.f32 %v1400, 1e-20
        %v1402 = vlog2.pop %v1401
        %v1403 = vmul.f32 %v1402, 0.6931472
        %v1404 = vmul.f32 %v1403, 2.3025851
        %v1405 = vmul.f32 %v1404, 1.442695
        %v1406 = vpow.pop %v1405
        %v1407 = vmul.f32 %v1406, 2.0
        %v1408 = vadd.f32 %v1407, 1e-07
        %v1409 = vmul.f32 %v1381, 0.05
        %v1410 = vmul.f32 %v1408, 0.05
        %v1411 = vsub.f32 %v1099, 69.0
        %1413 = vset.pattern.permute.xlu0 0
        %1414 = vperm.xlu0 %1413, %v854
        %v1415 = vpop.permute.xlu0 %1414
        %v1417 = vperm.slane %v1415, 0
        %v1418 = vmul.f32 %v1417, %v1411
        %v1419 = vrcp.pop 12.0
        %v1420 = vmul.f32 12.0, %v1419
        %v1421 = vsub.f32 1.0, %v1420
        %v1422 = vmul.f32 %v1419, %v1421
        %v1423 = vadd.f32 %v1419, %v1422
        %vm1424 = vweird.f32 %v1419
        %v1425 = vsel %vm1424, %v1419, %v1423
        %v1426 = vmul.f32 %v1418, %v1425
        %1427 = vset.pattern.permute.xlu0 1
        %1428 = vperm.xlu0 %1427, %v854
        %v1429 = vpop.permute.xlu0 %1428
        %v1431 = vperm.slane %v1429, 0
        %v1432 = vadd.f32 %v1426, %v1431
        %1434 = vset.pattern.permute.xlu0 0
        %1435 = vperm.xlu0 %1434, %v834
        %v1436 = vpop.permute.xlu0 %1435
        %v1438 = vadd.f32 %v1432, %v1436
        %v1439 = vmul.f32 %v1438, 1.442695
        %v1440 = vpow.pop %v1439
        %1442 = vrot.lane.b32.xlu0 %v843, 2
        %v1443 = vpop.permute.xlu0 %1442
        %v1445 = vmul.f32 %v854, %v1443
        %1447 = vset.pattern.permute.xlu0 2
        %1448 = vperm.xlu0 %1447, %v1445
        %v1449 = vpop.permute.xlu0 %1448
        %v1451 = vperm.slane %v1449, 0
        %v1452 = vadd.f32 %v1411, %v1451
        %v1453 = vmul.f32 %v1452, 0.6931472
        %v1454 = vmul.f32 %v1453, %v1425
        %v1455 = vmul.f32 %v1454, 1.442695
        %v1456 = vpow.pop %v1455
        %v1457 = vmul.f32 %v1456, 440.0
        %v1458 = vperm.slane %v1440, 0
        %v1459 = vmul.f32 %v1458, %v1122
        %v1460 = vmul.f32 %v1458, %v1123
        %v1461 = vmul.f32 %v1459, %v1122
        %v1462 = vmul.f32 %v1460, %v1123
        %v1463 = vadd.f32 %v1461, 1.0
        %v1464 = vadd.f32 %v1462, 1.0
        %v1465 = vrsqrt.pop %v1463
        %v1466 = vmul.f32 %v1465, %v1463
        %v1467 = vmul.f32 %v1466, %v1465
        %v1468 = vmul.f32 0.5, %v1467
        %v1469 = vsub.f32 1.5, %v1468
        %v1470 = vmul.f32 %v1465, %v1469
        %v1471 = vmul.f32 %v1463, %v1470
        %vm1472 = vcmp.eq.f32.partialorder %v1463, inf
        %v1473 = vsel %vm1472, %v1463, %v1471
        %vm1474 = vcmp.eq.f32.partialorder %v1463, 0.0
        %v1475 = vand.u32 %v1463, 2147483648
        %v1476 = vsel %vm1474, %v1475, %v1473
        %v1477 = vrsqrt.pop %v1464
        %v1478 = vmul.f32 %v1477, %v1464
        %v1479 = vmul.f32 %v1478, %v1477
        %v1480 = vmul.f32 0.5, %v1479
        %v1481 = vsub.f32 1.5, %v1480
        %v1482 = vmul.f32 %v1477, %v1481
        %v1483 = vmul.f32 %v1464, %v1482
        %vm1484 = vcmp.eq.f32.partialorder %v1464, inf
        %v1485 = vsel %vm1484, %v1464, %v1483
        %vm1486 = vcmp.eq.f32.partialorder %v1464, 0.0
        %v1487 = vand.u32 %v1464, 2147483648
        %v1488 = vsel %vm1486, %v1487, %v1485
        %v1489 = vmul.f32 %v1122, %v1476
        %v1490 = vmul.f32 %v1123, %v1488
        %v1491 = vperm.slane %v1457, 0
        %v1492 = vmul.f32 %v1491, %v1489
        %v1493 = vmul.f32 %v1491, %v1490
        %vm1494 = vcmp.lt.f32.partialorder %v1492, 8000.0
        %vm1495 = vcmp.lt.f32.partialorder %v1493, 8000.0
        %vm1499 = vcmask 1046528
        %v1500 = vrot.slane %v1327, 1
        %v1501 = vrot.slane %v1380, 1
        %v1502 = vsel %vm1499, %v1500, %v1501
        %v1503 = vrot.slane %v1381, 1
        %v1504 = vsel %vm1499, %v1501, %v1503
        %v1507 = vsel %vm1494, %v1502, 0.0
        %v1508 = vsel %vm1495, %v1504, 0.0
        %v1509 = vsel %vm865, %v1507, 0.0
        %v1510 = vsel %vm865, %v1508, 0.0
        %v1511 = vadd.f32 %v1509, %v1510
        %v1512 = vrot.slane %v1511, 4
        %v1513 = vadd.f32 %v1511, %v1512
        %v1514 = vrot.slane %v1513, 2
        %v1515 = vadd.f32 %v1513, %v1514
        %v1516 = vrot.slane %v1515, 1
        %v1517 = vadd.f32 %v1515, %v1516
        %v1518 = vadd.f32 %v1517, 1e-07
        %v1519 = vrcp.pop %v1518
        %v1520 = vmul.f32 %v1518, %v1519
        %v1521 = vsub.f32 1.0, %v1520
        %v1522 = vmul.f32 %v1519, %v1521
        %v1523 = vadd.f32 %v1519, %v1522
        %vm1524 = vweird.f32 %v1518
        %vm1525 = vweird.f32 %v1519
        %vm1526 = vmor %vm1524, %vm1525
        %v1527 = vsel %vm1526, %v1519, %v1523
        %v1528 = vand.u32 2147483647, %v1518
        %vm1529 = vcmp.eq.f32.partialorder %v1528, 8.507059e+37
        %v1530 = vand.u32 %v1518, 2147483648
        %v1531 = vor.u32 1.1754944e-38, %v1530
        %v1532 = vsel %vm1529, %v1531, %v1527
        %v1533 = vmul.f32 %v1507, %v1532
        %v1534 = vmul.f32 %v1508, %v1532
        %v1535 = vperm.slane %v1327, 0
        %v1536 = vmul.f32 %v1535, %v1533
        %v1537 = vmul.f32 %v1535, %v1534
        %v1538 = vmul.f32 %v1492, 0.0062831854
        %v1539 = vmul.f32 %v1493, 0.0062831854
        %v1541 = vsel %vm865, %v1538, 0
        %v1544 = vsel %vm865, %v1539, 0
        %1546 = vmatpush.msra.mxu0 0.0
        %1547 = vmatpush.msra.mxu0 0.0
        %1548 = vmatpush.msra.mxu0 0.0
        %1549 = vmatpush.msra.mxu0 0.0
        %1550 = vmatpush.msra.mxu0 0.0
        %1551 = vmatpush.msra.mxu0 0.0
        %1552 = vmatpush.msra.mxu0 0.0
        %1553 = vmatpush.msra.mxu0 0.0
        %1554 = vmatpush.msra.mxu0 0.0
        %1555 = vmatpush.msra.mxu0 0.0
        %1556 = vmatpush.msra.mxu0 0.0
        %1557 = vmatpush.msra.mxu0 0.0
        %1558 = vmatpush.msra.mxu0 0.0
        %1559 = vmatpush.msra.mxu0 0.0
        %1560 = vmatpush.msra.mxu0 0.0
        %1561 = vmatpush.msra.mxu0 %v1128
        %1562 = vmatmul.f32.gmra.mxu0 %v1541
        %v1563 = vpop.f32.mrf.mxu0
        %v1564 = vadd.f32 0.0, %v1563
        %1565 = vmatmul.f32.gmra.mxu0 %v1544
        %v1566 = vpop.f32.mrf.mxu0
        %v1567 = vadd.f32 0.0, %v1566
        %1568 = vdwg.mxu0
        %v1570 = vsel %vm865, %v1536, 0
        %v1573 = vsel %vm865, %v1537, 0
        %1575 = vmatpush.msra.mxu0 0.0
        %1576 = vmatpush.msra.mxu0 0.0
        %1577 = vmatpush.msra.mxu0 0.0
        %1578 = vmatpush.msra.mxu0 0.0
        %1579 = vmatpush.msra.mxu0 0.0
        %1580 = vmatpush.msra.mxu0 0.0
        %1581 = vmatpush.msra.mxu0 0.0
        %1582 = vmatpush.msra.mxu0 0.0
        %1583 = vmatpush.msra.mxu0 0.0
        %1584 = vmatpush.msra.mxu0 0.0
        %1585 = vmatpush.msra.mxu0 0.0
        %1586 = vmatpush.msra.mxu0 0.0
        %1587 = vmatpush.msra.mxu0 0.0
        %1588 = vmatpush.msra.mxu0 0.0
        %1589 = vmatpush.msra.mxu0 0.0
        %1590 = vmatpush.msra.mxu0 %v1101
        %1591 = vmatmul.f32.gmra.mxu0 %v1570
        %v1592 = vpop.f32.mrf.mxu0
        %v1593 = vadd.f32 0.0, %v1592
        %1594 = vmatmul.f32.gmra.mxu0 %v1573
        %v1595 = vpop.f32.mrf.mxu0
        %v1596 = vadd.f32 0.0, %v1595
        %1597 = vdwg.mxu0
        %v1599 = vsel %vm865, %v1492, 0
        %v1602 = vsel %vm865, %v1493, 0
        %1604 = vmatpush.msra.mxu0 0.0
        %1605 = vmatpush.msra.mxu0 0.0
        %1606 = vmatpush.msra.mxu0 0.0
        %1607 = vmatpush.msra.mxu0 0.0
        %1608 = vmatpush.msra.mxu0 0.0
        %1609 = vmatpush.msra.mxu0 0.0
        %1610 = vmatpush.msra.mxu0 0.0
        %1611 = vmatpush.msra.mxu0 0.0
        %1612 = vmatpush.msra.mxu0 0.0
        %1613 = vmatpush.msra.mxu0 0.0
        %1614 = vmatpush.msra.mxu0 0.0
        %1615 = vmatpush.msra.mxu0 0.0
        %1616 = vmatpush.msra.mxu0 0.0
        %1617 = vmatpush.msra.mxu0 0.0
        %1618 = vmatpush.msra.mxu0 0.0
        %1619 = vmatpush.msra.mxu0 %v1101
        %1620 = vmatmul.f32.gmra.mxu0 %v1599
        %v1621 = vpop.f32.mrf.mxu0
        %v1622 = vadd.f32 0.0, %v1621
        %1623 = vmatmul.f32.gmra.mxu0 %v1602
        %v1624 = vpop.f32.mrf.mxu0
        %v1625 = vadd.f32 0.0, %v1624
        %1626 = vdwg.mxu0
        %v1627 = vmul.f32 %v1622, 0.0003926991
        %v1628 = vmul.f32 %v1625, 0.0003926991
        %v1629 = vmul.f32 %v1627, %v1131
        %v1630 = vmul.f32 %v1628, %v1131
        %v1632 = vsel %vm865, %v1564, 0
        %v1635 = vsel %vm865, %v1567, 0
        %1637 = vmatpush.msra.mxu0 0.0
        %1638 = vmatpush.msra.mxu0 0.0
        %1639 = vmatpush.msra.mxu0 0.0
        %1640 = vmatpush.msra.mxu0 0.0
        %1641 = vmatpush.msra.mxu0 0.0
        %1642 = vmatpush.msra.mxu0 0.0
        %1643 = vmatpush.msra.mxu0 0.0
        %1644 = vmatpush.msra.mxu0 0.0
        %1645 = vmatpush.msra.mxu0 0.0
        %1646 = vmatpush.msra.mxu0 0.0
        %1647 = vmatpush.msra.mxu0 0.0
        %1648 = vmatpush.msra.mxu0 0.0
        %1649 = vmatpush.msra.mxu0 0.0
        %1650 = vmatpush.msra.mxu0 0.0
        %1651 = vmatpush.msra.mxu0 0.0
        %1652 = vmatpush.msra.mxu0 %v1101
        %1653 = vmatmul.f32.gmra.mxu0 %v1632
        %v1654 = vpop.f32.mrf.mxu0
        %v1655 = vadd.f32 %v1629, %v1654
        %1656 = vmatmul.f32.gmra.mxu0 %v1635
        %v1657 = vpop.f32.mrf.mxu0
        %v1658 = vadd.f32 %v1630, %v1657
        %1659 = vdwg.mxu0
        %v1660 = vmul.f32 %v1655, 0.15915494
        %v1661 = vmul.f32 %v1658, 0.15915494
        %v1662 = vfloor.f32 %v1660
        %v1663 = vfloor.f32 %v1661
        %v1664 = vmul.f32 %v1662, 6.2831855
        %v1665 = vmul.f32 %v1663, 6.2831855
        %v1666 = vsub.f32 %v1655, %v1664
        %v1667 = vsub.f32 %v1658, %v1665
        %v1668 = vand.u32 2147483647, %v1666
        %vm1669 = vcmp.le.f32.partialorder %v1668, 0.7853982
        %vm1670 = vcmp.lt.s32.totalorder %v1666, 0
        %v1671 = vand.u32 %v1666, 2139095040
        %v1672 = vshrl.u32 %v1671, 23
        %v1673 = vsub.s32 %v1672, 127
        %v1674 = vand.u32 2147483647, %v1666
        %v1675 = vand.u32 %v1674, 8388607
        %v1676 = vor.u32 %v1675, 8388608
        %v1677 = vsub.s32 0, %v1676
        %v1678 = vadd.s32 %v1673, 1
        %vm1679 = vcmp.gt.s32.totalorder %v1678, 0
        %v1680 = vsel %vm1679, %v1678, 0
        %v1681 = vshrl.u32 %v1680, 5
        %v1682 = vand.u32 %v1680, 31
        %v1683 = vsub.s32 32, %v1682
        %v1684 = vshrl.u32 683565275, %v1683
        %v1685 = vshll.u32 683565275, %v1682
        %v1686 = vshrl.u32 2475754826, %v1683
        %v1687 = vor.u32 %v1685, %v1686
        %v1688 = vshll.u32 2475754826, %v1682
        %v1689 = vshrl.u32 2131351028, %v1683
        %v1690 = vor.u32 %v1688, %v1689
        %v1691 = vshll.u32 2131351028, %v1682
        %v1692 = vshrl.u32 2102212464, %v1683
        %v1693 = vor.u32 %v1691, %v1692
        %v1694 = vshll.u32 2102212464, %v1682
        %v1695 = vshrl.u32 920167782, %v1683
        %v1696 = vor.u32 %v1694, %v1695
        %v1697 = vshll.u32 920167782, %v1682
        %v1698 = vshrl.u32 1326507024, %v1683
        %v1699 = vor.u32 %v1697, %v1698
        %vm1700 = vcmp.lt.s32.totalorder %v1681, 1
        %vm1701 = vcmp.lt.s32.totalorder %v1681, 2
        %vm1702 = vcmp.lt.s32.totalorder %v1681, 3
        %vm1703 = vcmp.lt.s32.totalorder %v1681, 4
        %v1704 = vsel %vm1700, %v1684, %v1687
        %v1705 = vsel %vm1703, %v1693, 2102212464
        %v1706 = vsel %vm1702, %v1690, %v1705
        %v1707 = vsel %vm1701, %v1704, %v1706
        %v1708 = vsel %vm1700, %v1687, %v1690
        %v1709 = vsel %vm1703, %v1696, 920167782
        %v1710 = vsel %vm1702, %v1693, %v1709
        %v1711 = vsel %vm1701, %v1708, %v1710
        %v1712 = vsel %vm1700, %v1690, %v1693
        %v1713 = vsel %vm1703, %v1699, 1326507024
        %v1714 = vsel %vm1702, %v1696, %v1713
        %v1715 = vsel %vm1701, %v1712, %v1714
        %v1716 = vshll.u32 %v1676, 8
        %v1717 = vand.u32 %v1716, 65535
        %v1718 = vshrl.u32 %v1716, 16
        %v1719 = vand.u32 %v1715, 65535
        %v1720 = vshrl.u32 %v1715, 16
        %v1721 = vmul.u32 %v1717, %v1719
        %v1722 = vmul.u32 %v1717, %v1720
        %v1723 = vmul.u32 %v1718, %v1719
        %v1724 = vmul.u32 %v1718, %v1720
        %v1725 = vshll.u32 %v1722, 16
        %v1726 = vshrl.u32 %v1722, 16
        %v1727 = vshll.u32 %v1723, 16
        %v1728 = vshrl.u32 %v1723, 16
        %vm1729 = vc.u32 %v1721, %v1725
        %v1730 = vsel %vm1729, 1, 0
        %v1731 = vadd.s32 %v1721, %v1725
        %v1732 = vadd.s32 %v1724, %v1730
        %vm1733 = vc.u32 %v1731, %v1727
        %v1734 = vsel %vm1733, 1, 0
        %v1735 = vadd.s32 %v1731, %v1727
        %v1736 = vadd.s32 %v1732, %v1734
        %v1737 = vadd.s32 %v1736, %v1726
        %v1738 = vadd.s32 %v1737, %v1728
        %v1739 = vand.u32 %v1716, 65535
        %v1740 = vshrl.u32 %v1716, 16
        %v1741 = vand.u32 %v1711, 65535
        %v1742 = vshrl.u32 %v1711, 16
        %v1743 = vmul.u32 %v1739, %v1741
        %v1744 = vmul.u32 %v1739, %v1742
        %v1745 = vmul.u32 %v1740, %v1741
        %v1746 = vmul.u32 %v1740, %v1742
        %v1747 = vshll.u32 %v1744, 16
        %v1748 = vshrl.u32 %v1744, 16
        %v1749 = vshll.u32 %v1745, 16
        %v1750 = vshrl.u32 %v1745, 16
        %vm1751 = vc.u32 %v1743, %v1747
        %v1752 = vsel %vm1751, 1, 0
        %v1753 = vadd.s32 %v1743, %v1747
        %v1754 = vadd.s32 %v1746, %v1752
        %vm1755 = vc.u32 %v1753, %v1749
        %v1756 = vsel %vm1755, 1, 0
        %v1757 = vadd.s32 %v1753, %v1749
        %v1758 = vadd.s32 %v1754, %v1756
        %v1759 = vadd.s32 %v1758, %v1748
        %v1760 = vadd.s32 %v1759, %v1750
        %v1761 = vmul.u32 %v1716, %v1707
        %v1762 = vadd.s32 %v1738, %v1757
        %vm1763 = vc.u32 %v1738, %v1757
        %v1764 = vadd.s32 %v1760, 1
        %v1765 = vsel %vm1763, %v1764, %v1760
        %v1766 = vadd.s32 %v1761, %v1765
        %v1767 = vadd.s32 %v1766, 536870912
        %v1768 = vshrl.u32 %v1767, 30
        %v1769 = vshll.u32 %v1768, 30
        %v1770 = vsub.s32 %v1766, %v1769
        %vm1771 = vcmp.lt.s32.totalorder %v1770, 0
        %v1772 = vsub.s32 0, %v1770
        %v1773 = vsel %vm1771, %v1772, %v1770
        %v1774 = vclz %v1773
        %v1775 = vsub.s32 %v1774, 2
        %vm1776 = vcmp.gt.s32.totalorder 0, %v1775
        %v1777 = vsel %vm1776, 0, %v1775
        %v1778 = vsub.s32 32, %v1777
        %v1779 = vshll.u32 %v1770, %v1777
        %v1780 = vshrl.u32 %v1762, %v1778
        %v1781 = vor.u32 %v1779, %v1780
        %v1782 = vsub.s32 4294967266, %v1777
        %v1783 = vadd.s32 %v1782, 127
        %v1784 = vshll.u32 %v1783, 23
        %v1785 = vor.u32 4788187, %v1784
        %v1786 = vand.u32 2147483647, %v1785
        %v1788 = vcvt.s32.f32 %v1781
        %v1789 = vmul.f32 %v1788, %v1786
        %v1790 = vxor.u32 %v1789, 2147483648
        %v1791 = vsel %vm1670, %v1790, %v1789
        %v1792 = vsub.s32 4, %v1768
        %v1793 = vsel %vm1670, %v1792, %v1768
        %v1794 = vsel %vm1669, %v1666, %v1791
        %v1795 = vsel %vm1669, 0, %v1793
        %v1796 = vmul.f32 %v1794, %v1794
        %v1797 = vmul.f32 %v1796, -0.001358992
        %v1798 = vadd.f32 %v1797, 0.041655596
        %v1799 = vmul.f32 %v1796, %v1798
        %v1800 = vadd.f32 %v1799, -0.4999988
        %v1801 = vmul.f32 %v1796, %v1800
        %v1802 = vadd.f32 1.0, %v1801
        %v1803 = vmul.f32 %v1794, %v1794
        %v1804 = vmul.f32 %v1803, -0.00019511016
        %v1805 = vadd.f32 %v1804, 0.008332121
        %v1806 = vmul.f32 %v1803, %v1805
        %v1807 = vadd.f32 %v1806, -0.16666654
        %v1808 = vmul.f32 %v1803, %v1807
        %v1809 = vadd.f32 %v1808, 1.0
        %v1810 = vmul.f32 %v1809, %v1794
        %vm1811 = vweird.f32 %v1666
        %v1812 = vadd.s32 %v1795, 3
        %v1813 = vand.u32 %v1812, 3
        %vm1814 = vcmp.lt.s32.totalorder %v1813, 2
        %vm1815 = vcmp.eq.s32.totalorder %v1813, 0
        %v1816 = vxor.u32 %v1810, 2147483648
        %v1817 = vsel %vm1815, %v1802, %v1816
        %vm1818 = vcmp.eq.s32.totalorder %v1813, 2
        %v1819 = vxor.u32 %v1802, 2147483648
        %v1820 = vsel %vm1818, %v1819, %v1810
        %v1821 = vsel %vm1814, %v1817, %v1820
        %v1822 = vsel %vm1811, nan, %v1821
        %v1823 = vand.u32 2147483647, %v1667
        %vm1824 = vcmp.le.f32.partialorder %v1823, 0.7853982
        %vm1825 = vcmp.lt.s32.totalorder %v1667, 0
        %v1826 = vand.u32 %v1667, 2139095040
        %v1827 = vshrl.u32 %v1826, 23
        %v1828 = vsub.s32 %v1827, 127
        %v1829 = vand.u32 2147483647, %v1667
        %v1830 = vand.u32 %v1829, 8388607
        %v1831 = vor.u32 %v1830, 8388608
        %v1832 = vsub.s32 0, %v1831
        %v1833 = vadd.s32 %v1828, 1
        %vm1834 = vcmp.gt.s32.totalorder %v1833, 0
        %v1835 = vsel %vm1834, %v1833, 0
        %v1836 = vshrl.u32 %v1835, 5
        %v1837 = vand.u32 %v1835, 31
        %v1838 = vsub.s32 32, %v1837
        %v1839 = vshrl.u32 683565275, %v1838
        %v1840 = vshll.u32 683565275, %v1837
        %v1841 = vshrl.u32 2475754826, %v1838
        %v1842 = vor.u32 %v1840, %v1841
        %v1843 = vshll.u32 2475754826, %v1837
        %v1844 = vshrl.u32 2131351028, %v1838
        %v1845 = vor.u32 %v1843, %v1844
        %v1846 = vshll.u32 2131351028, %v1837
        %v1847 = vshrl.u32 2102212464, %v1838
        %v1848 = vor.u32 %v1846, %v1847
        %v1849 = vshll.u32 2102212464, %v1837
        %v1850 = vshrl.u32 920167782, %v1838
        %v1851 = vor.u32 %v1849, %v1850
        %v1852 = vshll.u32 920167782, %v1837
        %v1853 = vshrl.u32 1326507024, %v1838
        %v1854 = vor.u32 %v1852, %v1853
        %vm1855 = vcmp.lt.s32.totalorder %v1836, 1
        %vm1856 = vcmp.lt.s32.totalorder %v1836, 2
        %vm1857 = vcmp.lt.s32.totalorder %v1836, 3
        %vm1858 = vcmp.lt.s32.totalorder %v1836, 4
        %v1859 = vsel %vm1855, %v1839, %v1842
        %v1860 = vsel %vm1858, %v1848, 2102212464
        %v1861 = vsel %vm1857, %v1845, %v1860
        %v1862 = vsel %vm1856, %v1859, %v1861
        %v1863 = vsel %vm1855, %v1842, %v1845
        %v1864 = vsel %vm1858, %v1851, 920167782
        %v1865 = vsel %vm1857, %v1848, %v1864
        %v1866 = vsel %vm1856, %v1863, %v1865
        %v1867 = vsel %vm1855, %v1845, %v1848
        %v1868 = vsel %vm1858, %v1854, 1326507024
        %v1869 = vsel %vm1857, %v1851, %v1868
        %v1870 = vsel %vm1856, %v1867, %v1869
        %v1871 = vshll.u32 %v1831, 8
        %v1872 = vand.u32 %v1871, 65535
        %v1873 = vshrl.u32 %v1871, 16
        %v1874 = vand.u32 %v1870, 65535
        %v1875 = vshrl.u32 %v1870, 16
        %v1876 = vmul.u32 %v1872, %v1874
        %v1877 = vmul.u32 %v1872, %v1875
        %v1878 = vmul.u32 %v1873, %v1874
        %v1879 = vmul.u32 %v1873, %v1875
        %v1880 = vshll.u32 %v1877, 16
        %v1881 = vshrl.u32 %v1877, 16
        %v1882 = vshll.u32 %v1878, 16
        %v1883 = vshrl.u32 %v1878, 16
        %vm1884 = vc.u32 %v1876, %v1880
        %v1885 = vsel %vm1884, 1, 0
        %v1886 = vadd.s32 %v1876, %v1880
        %v1887 = vadd.s32 %v1879, %v1885
        %vm1888 = vc.u32 %v1886, %v1882
        %v1889 = vsel %vm1888, 1, 0
        %v1890 = vadd.s32 %v1886, %v1882
        %v1891 = vadd.s32 %v1887, %v1889
        %v1892 = vadd.s32 %v1891, %v1881
        %v1893 = vadd.s32 %v1892, %v1883
        %v1894 = vand.u32 %v1871, 65535
        %v1895 = vshrl.u32 %v1871, 16
        %v1896 = vand.u32 %v1866, 65535
        %v1897 = vshrl.u32 %v1866, 16
        %v1898 = vmul.u32 %v1894, %v1896
        %v1899 = vmul.u32 %v1894, %v1897
        %v1900 = vmul.u32 %v1895, %v1896
        %v1901 = vmul.u32 %v1895, %v1897
        %v1902 = vshll.u32 %v1899, 16
        %v1903 = vshrl.u32 %v1899, 16
        %v1904 = vshll.u32 %v1900, 16
        %v1905 = vshrl.u32 %v1900, 16
        %vm1906 = vc.u32 %v1898, %v1902
        %v1907 = vsel %vm1906, 1, 0
        %v1908 = vadd.s32 %v1898, %v1902
        %v1909 = vadd.s32 %v1901, %v1907
        %vm1910 = vc.u32 %v1908, %v1904
        %v1911 = vsel %vm1910, 1, 0
        %v1912 = vadd.s32 %v1908, %v1904
        %v1913 = vadd.s32 %v1909, %v1911
        %v1914 = vadd.s32 %v1913, %v1903
        %v1915 = vadd.s32 %v1914, %v1905
        %v1916 = vmul.u32 %v1871, %v1862
        %v1917 = vadd.s32 %v1893, %v1912
        %vm1918 = vc.u32 %v1893, %v1912
        %v1919 = vadd.s32 %v1915, 1
        %v1920 = vsel %vm1918, %v1919, %v1915
        %v1921 = vadd.s32 %v1916, %v1920
        %v1922 = vadd.s32 %v1921, 536870912
        %v1923 = vshrl.u32 %v1922, 30
        %v1924 = vshll.u32 %v1923, 30
        %v1925 = vsub.s32 %v1921, %v1924
        %vm1926 = vcmp.lt.s32.totalorder %v1925, 0
        %v1927 = vsub.s32 0, %v1925
        %v1928 = vsel %vm1926, %v1927, %v1925
        %v1929 = vclz %v1928
        %v1930 = vsub.s32 %v1929, 2
        %vm1931 = vcmp.gt.s32.totalorder 0, %v1930
        %v1932 = vsel %vm1931, 0, %v1930
        %v1933 = vsub.s32 32, %v1932
        %v1934 = vshll.u32 %v1925, %v1932
        %v1935 = vshrl.u32 %v1917, %v1933
        %v1936 = vor.u32 %v1934, %v1935
        %v1937 = vsub.s32 4294967266, %v1932
        %v1938 = vadd.s32 %v1937, 127
        %v1939 = vshll.u32 %v1938, 23
        %v1940 = vor.u32 4788187, %v1939
        %v1941 = vand.u32 2147483647, %v1940
        %v1943 = vcvt.s32.f32 %v1936
        %v1944 = vmul.f32 %v1943, %v1941
        %v1945 = vxor.u32 %v1944, 2147483648
        %v1946 = vsel %vm1825, %v1945, %v1944
        %v1947 = vsub.s32 4, %v1923
        %v1948 = vsel %vm1825, %v1947, %v1923
        %v1949 = vsel %vm1824, %v1667, %v1946
        %v1950 = vsel %vm1824, 0, %v1948
        %v1951 = vmul.f32 %v1949, %v1949
        %v1952 = vmul.f32 %v1951, -0.001358992
        %v1953 = vadd.f32 %v1952, 0.041655596
        %v1954 = vmul.f32 %v1951, %v1953
        %v1955 = vadd.f32 %v1954, -0.4999988
        %v1956 = vmul.f32 %v1951, %v1955
        %v1957 = vadd.f32 1.0, %v1956
        %v1958 = vmul.f32 %v1949, %v1949
        %v1959 = vmul.f32 %v1958, -0.00019511016
        %v1960 = vadd.f32 %v1959, 0.008332121
        %v1961 = vmul.f32 %v1958, %v1960
        %v1962 = vadd.f32 %v1961, -0.16666654
        %v1963 = vmul.f32 %v1958, %v1962
        %v1964 = vadd.f32 %v1963, 1.0
        %v1965 = vmul.f32 %v1964, %v1949
        %vm1966 = vweird.f32 %v1667
        %v1967 = vadd.s32 %v1950, 3
        %v1968 = vand.u32 %v1967, 3
        %vm1969 = vcmp.lt.s32.totalorder %v1968, 2
        %vm1970 = vcmp.eq.s32.totalorder %v1968, 0
        %v1971 = vxor.u32 %v1965, 2147483648
        %v1972 = vsel %vm1970, %v1957, %v1971
        %vm1973 = vcmp.eq.s32.totalorder %v1968, 2
        %v1974 = vxor.u32 %v1957, 2147483648
        %v1975 = vsel %vm1973, %v1974, %v1965
        %v1976 = vsel %vm1969, %v1972, %v1975
        %v1977 = vsel %vm1966, nan, %v1976
        %v1978 = vmul.f32 %v1593, %v1822
        %v1979 = vmul.f32 %v1596, %v1977
        %v1980 = vadd.f32 %v1978, %v1979
        %v1981 = vrot.slane %v1980, 4
        %v1982 = vadd.f32 %v1980, %v1981
        %v1983 = vrot.slane %v1982, 2
        %v1984 = vadd.f32 %v1982, %v1983
        %v1985 = vrot.slane %v1984, 1
        %v1986 = vadd.f32 %v1984, %v1985
        %v1989 = vrot.slane %v1409, 1
        %v1990 = vrot.slane %v1410, 1
        %v1991 = vsel %vm1499, %v1989, %v1990
        %v1992 = vsel %vm865, %v1991, 0
        %1994 = vmatpush.msra.mxu0 0.0
        %1995 = vmatpush.msra.mxu0 0.0
        %1996 = vmatpush.msra.mxu0 0.0
        %1997 = vmatpush.msra.mxu0 0.0
        %1998 = vmatpush.msra.mxu0 0.0
        %1999 = vmatpush.msra.mxu0 0.0
        %2000 = vmatpush.msra.mxu0 0.0
        %2001 = vmatpush.msra.mxu0 0.0
        %2002 = vmatpush.msra.mxu0 0.0
        %2003 = vmatpush.msra.mxu0 0.0
        %2004 = vmatpush.msra.mxu0 0.0
        %2005 = vmatpush.msra.mxu0 0.0
        %2006 = vmatpush.msra.mxu0 0.0
        %2007 = vmatpush.msra.mxu0 0.0
        %2008 = vmatpush.msra.mxu0 0.0
        %2009 = vmatpush.msra.mxu0 %v1101
        %2010 = vmatmul.f32.gmra.mxu0 %v1992
        %v2011 = vpop.f32.mrf.mxu0
        %v2012 = vadd.f32 0.0, %v2011
        %2013 = vdwg.mxu0
        %v2014 = vmul.f32 %v2012, %v1102
        %v2015 = vrot.slane %v2014, 4
        %v2016 = vadd.f32 %v2014, %v2015
        %v2017 = vrot.slane %v2016, 2
        %v2018 = vadd.f32 %v2016, %v2017
        %v2019 = vrot.slane %v2018, 1
        %v2020 = vadd.f32 %v2018, %v2019
        %v2021 = vadd.f32 %v1986, 0.0
        %v2022 = vadd.f32 %v2021, %v2020
        %v2023 = vperm.slane %v1099, 1
        %v2024 = vmul.f32 %v1135, %v2023
        %v2025 = vmul.f32 %v1140, %v2023
        %v2026 = vmul.f32 %v1145, %v2023
        %v2027 = vmul.f32 %v1150, %v2023
        %v2028 = vperm.slane %v1100, 1
        %v2029 = vmul.f32 %v1159, %v2028
        %v2030 = vmul.f32 %v1163, %v2028
        %v2031 = vmul.f32 %v1167, %v2028
        %v2032 = vmul.f32 %v1171, %v2028
        %v2033 = vadd.f32 %v2024, %v2029
        %v2034 = vadd.f32 %v2025, %v2030
        %v2035 = vadd.f32 %v2026, %v2031
        %v2036 = vadd.f32 %v2027, %v2032
        %v2037 = vperm.slane %v1182, 1
        %v2038 = vmul.f32 %v1185, %v2037
        %v2039 = vmul.f32 %v1189, %v2037
        %v2040 = vmul.f32 %v1193, %v2037
        %v2041 = vmul.f32 %v1197, %v2037
        %v2042 = vadd.f32 %v2033, %v2038
        %v2043 = vadd.f32 %v2034, %v2039
        %v2044 = vadd.f32 %v2035, %v2040
        %v2045 = vadd.f32 %v2036, %v2041
        %v2046 = vadd.f32 %v2042, %v1088
        %v2047 = vadd.f32 %v2043, %v1091
        %v2048 = vadd.f32 %v2044, %v1094
        %v2049 = vadd.f32 %v2045, %v1097
        %v2050 = vadd.f32 %v2046, %v1215
        %v2051 = vadd.f32 %v2047, %v1220
        %v2052 = vadd.f32 %v2048, %v1225
        %v2053 = vadd.f32 %v2049, %v1230
        %v2054 = vmax.f32 %v2050, 0.0
        %v2055 = vmax.f32 %v2051, 0.0
        %v2056 = vmax.f32 %v2052, 0.0
        %v2057 = vmax.f32 %v2053, 0.0
        %2058 = vmatpush.msra.mxu0 0.0
        %2059 = vmatpush.msra.mxu0 0.0
        %2060 = vmatpush.msra.mxu0 0.0
        %2061 = vmatpush.msra.mxu0 0.0
        %2062 = vmatpush.msra.mxu0 0.0
        %2063 = vmatpush.msra.mxu0 0.0
        %2064 = vmatpush.msra.mxu0 0.0
        %2065 = vmatpush.msra.mxu0 0.0
        %2066 = vmatpush.msra.mxu0 0.0
        %2067 = vmatpush.msra.mxu0 0.0
        %2068 = vmatpush.msra.mxu0 0.0
        %2069 = vmatpush.msra.mxu0 0.0
        %2070 = vmatpush.msra.mxu0 %v2057
        %2071 = vmatpush.msra.mxu0 %v2056
        %2072 = vmatpush.msra.mxu0 %v2055
        %2073 = vmatpush.msra.mxu0 %v2054
        %2074 = vmatmul.f32.gmra.mxu0 %v1261
        %v2075 = vpop.f32.mrf.mxu0
        %v2076 = vadd.f32 %v1243, %v2075
        %2077 = vmatmul.f32.gmra.mxu0 %v1264
        %v2078 = vpop.f32.mrf.mxu0
        %v2079 = vadd.f32 %v1248, %v2078
        %2080 = vmatmul.f32.gmra.mxu0 %v1267
        %v2081 = vpop.f32.mrf.mxu0
        %v2082 = vadd.f32 %v1253, %v2081
        %2083 = vmatmul.f32.gmra.mxu0 %v1270
        %v2084 = vpop.f32.mrf.mxu0
        %v2085 = vadd.f32 %v1258, %v2084
        %2086 = vdwg.mxu0
        %v2087 = vsub.f32 0.0, %v2076
        %v2088 = vmul.f32 %v2087, 1.442695
        %v2089 = vpow.pop %v2088
        %v2090 = vadd.f32 %v2089, 1.0
        %v2091 = vrcp.pop %v2090
        %v2092 = vmul.f32 %v2090, %v2091
        %v2093 = vsub.f32 1.0, %v2092
        %v2094 = vmul.f32 %v2091, %v2093
        %v2095 = vadd.f32 %v2091, %v2094
        %vm2096 = vweird.f32 %v2090
        %vm2097 = vweird.f32 %v2091
        %vm2098 = vmor %vm2096, %vm2097
        %v2099 = vsel %vm2098, %v2091, %v2095
        %v2100 = vand.u32 2147483647, %v2090
        %vm2101 = vcmp.eq.f32.partialorder %v2100, 8.507059e+37
        %v2102 = vand.u32 %v2090, 2147483648
        %v2103 = vor.u32 1.1754944e-38, %v2102
        %v2104 = vsel %vm2101, %v2103, %v2099
        %v2105 = vmul.f32 1.0, %v2104
        %v2106 = vmax.f32 %v2105, 1e-20
        %v2107 = vlog2.pop %v2106
        %v2108 = vmul.f32 %v2107, 0.6931472
        %v2109 = vmul.f32 %v2108, 2.3025851
        %v2110 = vmul.f32 %v2109, 1.442695
        %v2111 = vpow.pop %v2110
        %v2112 = vmul.f32 %v2111, 2.0
        %v2113 = vadd.f32 %v2112, 1e-07
        %v2114 = vsub.f32 0.0, %v2079
        %v2115 = vsub.f32 0.0, %v2082
        %v2116 = vmul.f32 %v2114, 1.442695
        %v2117 = vpow.pop %v2116
        %v2118 = vmul.f32 %v2115, 1.442695
        %v2119 = vpow.pop %v2118
        %v2120 = vadd.f32 %v2117, 1.0
        %v2121 = vadd.f32 %v2119, 1.0
        %v2122 = vrcp.pop %v2120
        %v2123 = vmul.f32 %v2120, %v2122
        %v2124 = vsub.f32 1.0, %v2123
        %v2125 = vmul.f32 %v2122, %v2124
        %v2126 = vadd.f32 %v2122, %v2125
        %vm2127 = vweird.f32 %v2120
        %vm2128 = vweird.f32 %v2122
        %vm2129 = vmor %vm2127, %vm2128
        %v2130 = vsel %vm2129, %v2122, %v2126
        %v2131 = vand.u32 2147483647, %v2120
        %vm2132 = vcmp.eq.f32.partialorder %v2131, 8.507059e+37
        %v2133 = vand.u32 %v2120, 2147483648
        %v2134 = vor.u32 1.1754944e-38, %v2133
        %v2135 = vsel %vm2132, %v2134, %v2130
        %v2136 = vmul.f32 1.0, %v2135
        %v2137 = vrcp.pop %v2121
        %v2138 = vmul.f32 %v2121, %v2137
        %v2139 = vsub.f32 1.0, %v2138
        %v2140 = vmul.f32 %v2137, %v2139
        %v2141 = vadd.f32 %v2137, %v2140
        %vm2142 = vweird.f32 %v2121
        %vm2143 = vweird.f32 %v2137
        %vm2144 = vmor %vm2142, %vm2143
        %v2145 = vsel %vm2144, %v2137, %v2141
        %v2146 = vand.u32 2147483647, %v2121
        %vm2147 = vcmp.eq.f32.partialorder %v2146, 8.507059e+37
        %v2148 = vand.u32 %v2121, 2147483648
        %v2149 = vor.u32 1.1754944e-38, %v2148
        %v2150 = vsel %vm2147, %v2149, %v2145
        %v2151 = vmul.f32 1.0, %v2150
        %v2152 = vmax.f32 %v2136, 1e-20
        %v2153 = vmax.f32 %v2151, 1e-20
        %v2154 = vlog2.pop %v2152
        %v2155 = vmul.f32 %v2154, 0.6931472
        %v2156 = vlog2.pop %v2153
        %v2157 = vmul.f32 %v2156, 0.6931472
        %v2158 = vmul.f32 %v2155, 2.3025851
        %v2159 = vmul.f32 %v2157, 2.3025851
        %v2160 = vmul.f32 %v2158, 1.442695
        %v2161 = vpow.pop %v2160
        %v2162 = vmul.f32 %v2159, 1.442695
        %v2163 = vpow.pop %v2162
        %v2164 = vmul.f32 %v2161, 2.0
        %v2165 = vmul.f32 %v2163, 2.0
        %v2166 = vadd.f32 %v2164, 1e-07
        %v2167 = vadd.f32 %v2165, 1e-07
        %v2168 = vsub.f32 0.0, %v2085
        %v2169 = vmul.f32 %v2168, 1.442695
        %v2170 = vpow.pop %v2169
        %v2171 = vadd.f32 %v2170, 1.0
        %v2172 = vrcp.pop %v2171
        %v2173 = vmul.f32 %v2171, %v2172
        %v2174 = vsub.f32 1.0, %v2173
        %v2175 = vmul.f32 %v2172, %v2174
        %v2176 = vadd.f32 %v2172, %v2175
        %vm2177 = vweird.f32 %v2171
        %vm2178 = vweird.f32 %v2172
        %vm2179 = vmor %vm2177, %vm2178
        %v2180 = vsel %vm2179, %v2172, %v2176
        %v2181 = vand.u32 2147483647, %v2171
        %vm2182 = vcmp.eq.f32.partialorder %v2181, 8.507059e+37
        %v2183 = vand.u32 %v2171, 2147483648
        %v2184 = vor.u32 1.1754944e-38, %v2183
        %v2185 = vsel %vm2182, %v2184, %v2180
        %v2186 = vmul.f32 1.0, %v2185
        %v2187 = vmax.f32 %v2186, 1e-20
        %v2188 = vlog2.pop %v2187
        %v2189 = vmul.f32 %v2188, 0.6931472
        %v2190 = vmul.f32 %v2189, 2.3025851
        %v2191 = vmul.f32 %v2190, 1.442695
        %v2192 = vpow.pop %v2191
        %v2193 = vmul.f32 %v2192, 2.0
        %v2194 = vadd.f32 %v2193, 1e-07
        %v2195 = vmul.f32 %v2167, 0.05
        %v2196 = vmul.f32 %v2194, 0.05
        %v2197 = vperm.slane %v1440, 1
        %v2198 = vmul.f32 %v2197, %v1122
        %v2199 = vmul.f32 %v2197, %v1123
        %v2200 = vmul.f32 %v2198, %v1122
        %v2201 = vmul.f32 %v2199, %v1123
        %v2202 = vadd.f32 %v2200, 1.0
        %v2203 = vadd.f32 %v2201, 1.0
        %v2204 = vrsqrt.pop %v2202
        %v2205 = vmul.f32 %v2204, %v2202
        %v2206 = vmul.f32 %v2205, %v2204
        %v2207 = vmul.f32 0.5, %v2206
        %v2208 = vsub.f32 1.5, %v2207
        %v2209 = vmul.f32 %v2204, %v2208
        %v2210 = vmul.f32 %v2202, %v2209
        %vm2211 = vcmp.eq.f32.partialorder %v2202, inf
        %v2212 = vsel %vm2211, %v2202, %v2210
        %vm2213 = vcmp.eq.f32.partialorder %v2202, 0.0
        %v2214 = vand.u32 %v2202, 2147483648
        %v2215 = vsel %vm2213, %v2214, %v2212
        %v2216 = vrsqrt.pop %v2203
        %v2217 = vmul.f32 %v2216, %v2203
        %v2218 = vmul.f32 %v2217, %v2216
        %v2219 = vmul.f32 0.5, %v2218
        %v2220 = vsub.f32 1.5, %v2219
        %v2221 = vmul.f32 %v2216, %v2220
        %v2222 = vmul.f32 %v2203, %v2221
        %vm2223 = vcmp.eq.f32.partialorder %v2203, inf
        %v2224 = vsel %vm2223, %v2203, %v2222
        %vm2225 = vcmp.eq.f32.partialorder %v2203, 0.0
        %v2226 = vand.u32 %v2203, 2147483648
        %v2227 = vsel %vm2225, %v2226, %v2224
        %v2228 = vmul.f32 %v1122, %v2215
        %v2229 = vmul.f32 %v1123, %v2227
        %v2230 = vperm.slane %v1457, 1
        %v2231 = vmul.f32 %v2230, %v2228
        %v2232 = vmul.f32 %v2230, %v2229
        %vm2233 = vcmp.lt.f32.partialorder %v2231, 8000.0
        %vm2234 = vcmp.lt.f32.partialorder %v2232, 8000.0
        %v2238 = vrot.slane %v2113, 1
        %v2239 = vrot.slane %v2166, 1
        %v2240 = vsel %vm1499, %v2238, %v2239
        %v2241 = vrot.slane %v2167, 1
        %v2242 = vsel %vm1499, %v2239, %v2241
        %v2245 = vsel %vm2233, %v2240, 0.0
        %v2246 = vsel %vm2234, %v2242, 0.0
        %v2247 = vsel %vm865, %v2245, 0.0
        %v2248 = vsel %vm865, %v2246, 0.0
        %v2249 = vadd.f32 %v2247, %v2248
        %v2250 = vrot.slane %v2249, 4
        %v2251 = vadd.f32 %v2249, %v2250
        %v2252 = vrot.slane %v2251, 2
        %v2253 = vadd.f32 %v2251, %v2252
        %v2254 = vrot.slane %v2253, 1
        %v2255 = vadd.f32 %v2253, %v2254
        %v2256 = vadd.f32 %v2255, 1e-07
        %v2257 = vrcp.pop %v2256
        %v2258 = vmul.f32 %v2256, %v2257
        %v2259 = vsub.f32 1.0, %v2258
        %v2260 = vmul.f32 %v2257, %v2259
        %v2261 = vadd.f32 %v2257, %v2260
        %vm2262 = vweird.f32 %v2256
        %vm2263 = vweird.f32 %v2257
        %vm2264 = vmor %vm2262, %vm2263
        %v2265 = vsel %vm2264, %v2257, %v2261
        %v2266 = vand.u32 2147483647, %v2256
        %vm2267 = vcmp.eq.f32.partialorder %v2266, 8.507059e+37
        %v2268 = vand.u32 %v2256, 2147483648
        %v2269 = vor.u32 1.1754944e-38, %v2268
        %v2270 = vsel %vm2267, %v2269, %v2265
        %v2271 = vmul.f32 %v2245, %v2270
        %v2272 = vmul.f32 %v2246, %v2270
        %v2273 = vperm.slane %v2113, 0
        %v2274 = vmul.f32 %v2273, %v2271
        %v2275 = vmul.f32 %v2273, %v2272
        %v2276 = vmul.f32 %v2231, 0.0062831854
        %v2277 = vmul.f32 %v2232, 0.0062831854
        %v2279 = vsel %vm865, %v2276, 0
        %v2282 = vsel %vm865, %v2277, 0
        %2284 = vmatpush.msra.mxu0 0.0
        %2285 = vmatpush.msra.mxu0 0.0
        %2286 = vmatpush.msra.mxu0 0.0
        %2287 = vmatpush.msra.mxu0 0.0
        %2288 = vmatpush.msra.mxu0 0.0
        %2289 = vmatpush.msra.mxu0 0.0
        %2290 = vmatpush.msra.mxu0 0.0
        %2291 = vmatpush.msra.mxu0 0.0
        %2292 = vmatpush.msra.mxu0 0.0
        %2293 = vmatpush.msra.mxu0 0.0
        %2294 = vmatpush.msra.mxu0 0.0
        %2295 = vmatpush.msra.mxu0 0.0
        %2296 = vmatpush.msra.mxu0 0.0
        %2297 = vmatpush.msra.mxu0 0.0
        %2298 = vmatpush.msra.mxu0 0.0
        %2299 = vmatpush.msra.mxu0 %v1128
        %2300 = vmatmul.f32.gmra.mxu0 %v2279
        %v2301 = vpop.f32.mrf.mxu0
        %v2302 = vadd.f32 0.0, %v2301
        %2303 = vmatmul.f32.gmra.mxu0 %v2282
        %v2304 = vpop.f32.mrf.mxu0
        %v2305 = vadd.f32 0.0, %v2304
        %2306 = vdwg.mxu0
        %v2308 = vsel %vm865, %v2274, 0
        %v2311 = vsel %vm865, %v2275, 0
        %2313 = vmatpush.msra.mxu0 0.0
        %2314 = vmatpush.msra.mxu0 0.0
        %2315 = vmatpush.msra.mxu0 0.0
        %2316 = vmatpush.msra.mxu0 0.0
        %2317 = vmatpush.msra.mxu0 0.0
        %2318 = vmatpush.msra.mxu0 0.0
        %2319 = vmatpush.msra.mxu0 0.0
        %2320 = vmatpush.msra.mxu0 0.0
        %2321 = vmatpush.msra.mxu0 0.0
        %2322 = vmatpush.msra.mxu0 0.0
        %2323 = vmatpush.msra.mxu0 0.0
        %2324 = vmatpush.msra.mxu0 0.0
        %2325 = vmatpush.msra.mxu0 0.0
        %2326 = vmatpush.msra.mxu0 0.0
        %2327 = vmatpush.msra.mxu0 0.0
        %2328 = vmatpush.msra.mxu0 %v1101
        %2329 = vmatmul.f32.gmra.mxu0 %v2308
        %v2330 = vpop.f32.mrf.mxu0
        %v2331 = vadd.f32 0.0, %v2330
        %2332 = vmatmul.f32.gmra.mxu0 %v2311
        %v2333 = vpop.f32.mrf.mxu0
        %v2334 = vadd.f32 0.0, %v2333
        %2335 = vdwg.mxu0
        %v2337 = vsel %vm865, %v2231, 0
        %v2340 = vsel %vm865, %v2232, 0
        %2342 = vmatpush.msra.mxu0 0.0
        %2343 = vmatpush.msra.mxu0 0.0
        %2344 = vmatpush.msra.mxu0 0.0
        %2345 = vmatpush.msra.mxu0 0.0
        %2346 = vmatpush.msra.mxu0 0.0
        %2347 = vmatpush.msra.mxu0 0.0
        %2348 = vmatpush.msra.mxu0 0.0
        %2349 = vmatpush.msra.mxu0 0.0
        %2350 = vmatpush.msra.mxu0 0.0
        %2351 = vmatpush.msra.mxu0 0.0
        %2352 = vmatpush.msra.mxu0 0.0
        %2353 = vmatpush.msra.mxu0 0.0
        %2354 = vmatpush.msra.mxu0 0.0
        %2355 = vmatpush.msra.mxu0 0.0
        %2356 = vmatpush.msra.mxu0 0.0
        %2357 = vmatpush.msra.mxu0 %v1101
        %2358 = vmatmul.f32.gmra.mxu0 %v2337
        %v2359 = vpop.f32.mrf.mxu0
        %v2360 = vadd.f32 0.0, %v2359
        %2361 = vmatmul.f32.gmra.mxu0 %v2340
        %v2362 = vpop.f32.mrf.mxu0
        %v2363 = vadd.f32 0.0, %v2362
        %2364 = vdwg.mxu0
        %v2365 = vmul.f32 %v2360, 0.0003926991
        %v2366 = vmul.f32 %v2363, 0.0003926991
        %v2367 = vmul.f32 %v2365, %v1131
        %v2368 = vmul.f32 %v2366, %v1131
        %v2370 = vsel %vm865, %v2302, 0
        %v2373 = vsel %vm865, %v2305, 0
        %2375 = vmatpush.msra.mxu0 0.0
        %2376 = vmatpush.msra.mxu0 0.0
        %2377 = vmatpush.msra.mxu0 0.0
        %2378 = vmatpush.msra.mxu0 0.0
        %2379 = vmatpush.msra.mxu0 0.0
        %2380 = vmatpush.msra.mxu0 0.0
        %2381 = vmatpush.msra.mxu0 0.0
        %2382 = vmatpush.msra.mxu0 0.0
        %2383 = vmatpush.msra.mxu0 0.0
        %2384 = vmatpush.msra.mxu0 0.0
        %2385 = vmatpush.msra.mxu0 0.0
        %2386 = vmatpush.msra.mxu0 0.0
        %2387 = vmatpush.msra.mxu0 0.0
        %2388 = vmatpush.msra.mxu0 0.0
        %2389 = vmatpush.msra.mxu0 0.0
        %2390 = vmatpush.msra.mxu0 %v1101
        %2391 = vmatmul.f32.gmra.mxu0 %v2370
        %v2392 = vpop.f32.mrf.mxu0
        %v2393 = vadd.f32 %v2367, %v2392
        %2394 = vmatmul.f32.gmra.mxu0 %v2373
        %v2395 = vpop.f32.mrf.mxu0
        %v2396 = vadd.f32 %v2368, %v2395
        %2397 = vdwg.mxu0
        %v2398 = vmul.f32 %v2393, 0.15915494
        %v2399 = vmul.f32 %v2396, 0.15915494
        %v2400 = vfloor.f32 %v2398
        %v2401 = vfloor.f32 %v2399
        %v2402 = vmul.f32 %v2400, 6.2831855
        %v2403 = vmul.f32 %v2401, 6.2831855
        %v2404 = vsub.f32 %v2393, %v2402
        %v2405 = vsub.f32 %v2396, %v2403
        %v2406 = vand.u32 2147483647, %v2404
        %vm2407 = vcmp.le.f32.partialorder %v2406, 0.7853982
        %vm2408 = vcmp.lt.s32.totalorder %v2404, 0
        %v2409 = vand.u32 %v2404, 2139095040
        %v2410 = vshrl.u32 %v2409, 23
        %v2411 = vsub.s32 %v2410, 127
        %v2412 = vand.u32 2147483647, %v2404
        %v2413 = vand.u32 %v2412, 8388607
        %v2414 = vor.u32 %v2413, 8388608
        %v2415 = vsub.s32 0, %v2414
        %v2416 = vadd.s32 %v2411, 1
        %vm2417 = vcmp.gt.s32.totalorder %v2416, 0
        %v2418 = vsel %vm2417, %v2416, 0
        %v2419 = vshrl.u32 %v2418, 5
        %v2420 = vand.u32 %v2418, 31
        %v2421 = vsub.s32 32, %v2420
        %v2422 = vshrl.u32 683565275, %v2421
        %v2423 = vshll.u32 683565275, %v2420
        %v2424 = vshrl.u32 2475754826, %v2421
        %v2425 = vor.u32 %v2423, %v2424
        %v2426 = vshll.u32 2475754826, %v2420
        %v2427 = vshrl.u32 2131351028, %v2421
        %v2428 = vor.u32 %v2426, %v2427
        %v2429 = vshll.u32 2131351028, %v2420
        %v2430 = vshrl.u32 2102212464, %v2421
        %v2431 = vor.u32 %v2429, %v2430
        %v2432 = vshll.u32 2102212464, %v2420
        %v2433 = vshrl.u32 920167782, %v2421
        %v2434 = vor.u32 %v2432, %v2433
        %v2435 = vshll.u32 920167782, %v2420
        %v2436 = vshrl.u32 1326507024, %v2421
        %v2437 = vor.u32 %v2435, %v2436
        %vm2438 = vcmp.lt.s32.totalorder %v2419, 1
        %vm2439 = vcmp.lt.s32.totalorder %v2419, 2
        %vm2440 = vcmp.lt.s32.totalorder %v2419, 3
        %vm2441 = vcmp.lt.s32.totalorder %v2419, 4
        %v2442 = vsel %vm2438, %v2422, %v2425
        %v2443 = vsel %vm2441, %v2431, 2102212464
        %v2444 = vsel %vm2440, %v2428, %v2443
        %v2445 = vsel %vm2439, %v2442, %v2444
        %v2446 = vsel %vm2438, %v2425, %v2428
        %v2447 = vsel %vm2441, %v2434, 920167782
        %v2448 = vsel %vm2440, %v2431, %v2447
        %v2449 = vsel %vm2439, %v2446, %v2448
        %v2450 = vsel %vm2438, %v2428, %v2431
        %v2451 = vsel %vm2441, %v2437, 1326507024
        %v2452 = vsel %vm2440, %v2434, %v2451
        %v2453 = vsel %vm2439, %v2450, %v2452
        %v2454 = vshll.u32 %v2414, 8
        %v2455 = vand.u32 %v2454, 65535
        %v2456 = vshrl.u32 %v2454, 16
        %v2457 = vand.u32 %v2453, 65535
        %v2458 = vshrl.u32 %v2453, 16
        %v2459 = vmul.u32 %v2455, %v2457
        %v2460 = vmul.u32 %v2455, %v2458
        %v2461 = vmul.u32 %v2456, %v2457
        %v2462 = vmul.u32 %v2456, %v2458
        %v2463 = vshll.u32 %v2460, 16
        %v2464 = vshrl.u32 %v2460, 16
        %v2465 = vshll.u32 %v2461, 16
        %v2466 = vshrl.u32 %v2461, 16
        %vm2467 = vc.u32 %v2459, %v2463
        %v2468 = vsel %vm2467, 1, 0
        %v2469 = vadd.s32 %v2459, %v2463
        %v2470 = vadd.s32 %v2462, %v2468
        %vm2471 = vc.u32 %v2469, %v2465
        %v2472 = vsel %vm2471, 1, 0
        %v2473 = vadd.s32 %v2469, %v2465
        %v2474 = vadd.s32 %v2470, %v2472
        %v2475 = vadd.s32 %v2474, %v2464
        %v2476 = vadd.s32 %v2475, %v2466
        %v2477 = vand.u32 %v2454, 65535
        %v2478 = vshrl.u32 %v2454, 16
        %v2479 = vand.u32 %v2449, 65535
        %v2480 = vshrl.u32 %v2449, 16
        %v2481 = vmul.u32 %v2477, %v2479
        %v2482 = vmul.u32 %v2477, %v2480
        %v2483 = vmul.u32 %v2478, %v2479
        %v2484 = vmul.u32 %v2478, %v2480
        %v2485 = vshll.u32 %v2482, 16
        %v2486 = vshrl.u32 %v2482, 16
        %v2487 = vshll.u32 %v2483, 16
        %v2488 = vshrl.u32 %v2483, 16
        %vm2489 = vc.u32 %v2481, %v2485
        %v2490 = vsel %vm2489, 1, 0
        %v2491 = vadd.s32 %v2481, %v2485
        %v2492 = vadd.s32 %v2484, %v2490
        %vm2493 = vc.u32 %v2491, %v2487
        %v2494 = vsel %vm2493, 1, 0
        %v2495 = vadd.s32 %v2491, %v2487
        %v2496 = vadd.s32 %v2492, %v2494
        %v2497 = vadd.s32 %v2496, %v2486
        %v2498 = vadd.s32 %v2497, %v2488
        %v2499 = vmul.u32 %v2454, %v2445
        %v2500 = vadd.s32 %v2476, %v2495
        %vm2501 = vc.u32 %v2476, %v2495
        %v2502 = vadd.s32 %v2498, 1
        %v2503 = vsel %vm2501, %v2502, %v2498
        %v2504 = vadd.s32 %v2499, %v2503
        %v2505 = vadd.s32 %v2504, 536870912
        %v2506 = vshrl.u32 %v2505, 30
        %v2507 = vshll.u32 %v2506, 30
        %v2508 = vsub.s32 %v2504, %v2507
        %vm2509 = vcmp.lt.s32.totalorder %v2508, 0
        %v2510 = vsub.s32 0, %v2508
        %v2511 = vsel %vm2509, %v2510, %v2508
        %v2512 = vclz %v2511
        %v2513 = vsub.s32 %v2512, 2
        %vm2514 = vcmp.gt.s32.totalorder 0, %v2513
        %v2515 = vsel %vm2514, 0, %v2513
        %v2516 = vsub.s32 32, %v2515
        %v2517 = vshll.u32 %v2508, %v2515
        %v2518 = vshrl.u32 %v2500, %v2516
        %v2519 = vor.u32 %v2517, %v2518
        %v2520 = vsub.s32 4294967266, %v2515
        %v2521 = vadd.s32 %v2520, 127
        %v2522 = vshll.u32 %v2521, 23
        %v2523 = vor.u32 4788187, %v2522
        %v2524 = vand.u32 2147483647, %v2523
        %v2526 = vcvt.s32.f32 %v2519
        %v2527 = vmul.f32 %v2526, %v2524
        %v2528 = vxor.u32 %v2527, 2147483648
        %v2529 = vsel %vm2408, %v2528, %v2527
        %v2530 = vsub.s32 4, %v2506
        %v2531 = vsel %vm2408, %v2530, %v2506
        %v2532 = vsel %vm2407, %v2404, %v2529
        %v2533 = vsel %vm2407, 0, %v2531
        %v2534 = vmul.f32 %v2532, %v2532
        %v2535 = vmul.f32 %v2534, -0.001358992
        %v2536 = vadd.f32 %v2535, 0.041655596
        %v2537 = vmul.f32 %v2534, %v2536
        %v2538 = vadd.f32 %v2537, -0.4999988
        %v2539 = vmul.f32 %v2534, %v2538
        %v2540 = vadd.f32 1.0, %v2539
        %v2541 = vmul.f32 %v2532, %v2532
        %v2542 = vmul.f32 %v2541, -0.00019511016
        %v2543 = vadd.f32 %v2542, 0.008332121
        %v2544 = vmul.f32 %v2541, %v2543
        %v2545 = vadd.f32 %v2544, -0.16666654
        %v2546 = vmul.f32 %v2541, %v2545
        %v2547 = vadd.f32 %v2546, 1.0
        %v2548 = vmul.f32 %v2547, %v2532
        %vm2549 = vweird.f32 %v2404
        %v2550 = vadd.s32 %v2533, 3
        %v2551 = vand.u32 %v2550, 3
        %vm2552 = vcmp.lt.s32.totalorder %v2551, 2
        %vm2553 = vcmp.eq.s32.totalorder %v2551, 0
        %v2554 = vxor.u32 %v2548, 2147483648
        %v2555 = vsel %vm2553, %v2540, %v2554
        %vm2556 = vcmp.eq.s32.totalorder %v2551, 2
        %v2557 = vxor.u32 %v2540, 2147483648
        %v2558 = vsel %vm2556, %v2557, %v2548
        %v2559 = vsel %vm2552, %v2555, %v2558
        %v2560 = vsel %vm2549, nan, %v2559
        %v2561 = vand.u32 2147483647, %v2405
        %vm2562 = vcmp.le.f32.partialorder %v2561, 0.7853982
        %vm2563 = vcmp.lt.s32.totalorder %v2405, 0
        %v2564 = vand.u32 %v2405, 2139095040
        %v2565 = vshrl.u32 %v2564, 23
        %v2566 = vsub.s32 %v2565, 127
        %v2567 = vand.u32 2147483647, %v2405
        %v2568 = vand.u32 %v2567, 8388607
        %v2569 = vor.u32 %v2568, 8388608
        %v2570 = vsub.s32 0, %v2569
        %v2571 = vadd.s32 %v2566, 1
        %vm2572 = vcmp.gt.s32.totalorder %v2571, 0
        %v2573 = vsel %vm2572, %v2571, 0
        %v2574 = vshrl.u32 %v2573, 5
        %v2575 = vand.u32 %v2573, 31
        %v2576 = vsub.s32 32, %v2575
        %v2577 = vshrl.u32 683565275, %v2576
        %v2578 = vshll.u32 683565275, %v2575
        %v2579 = vshrl.u32 2475754826, %v2576
        %v2580 = vor.u32 %v2578, %v2579
        %v2581 = vshll.u32 2475754826, %v2575
        %v2582 = vshrl.u32 2131351028, %v2576
        %v2583 = vor.u32 %v2581, %v2582
        %v2584 = vshll.u32 2131351028, %v2575
        %v2585 = vshrl.u32 2102212464, %v2576
        %v2586 = vor.u32 %v2584, %v2585
        %v2587 = vshll.u32 2102212464, %v2575
        %v2588 = vshrl.u32 920167782, %v2576
        %v2589 = vor.u32 %v2587, %v2588
        %v2590 = vshll.u32 920167782, %v2575
        %v2591 = vshrl.u32 1326507024, %v2576
        %v2592 = vor.u32 %v2590, %v2591
        %vm2593 = vcmp.lt.s32.totalorder %v2574, 1
        %vm2594 = vcmp.lt.s32.totalorder %v2574, 2
        %vm2595 = vcmp.lt.s32.totalorder %v2574, 3
        %vm2596 = vcmp.lt.s32.totalorder %v2574, 4
        %v2597 = vsel %vm2593, %v2577, %v2580
        %v2598 = vsel %vm2596, %v2586, 2102212464
        %v2599 = vsel %vm2595, %v2583, %v2598
        %v2600 = vsel %vm2594, %v2597, %v2599
        %v2601 = vsel %vm2593, %v2580, %v2583
        %v2602 = vsel %vm2596, %v2589, 920167782
        %v2603 = vsel %vm2595, %v2586, %v2602
        %v2604 = vsel %vm2594, %v2601, %v2603
        %v2605 = vsel %vm2593, %v2583, %v2586
        %v2606 = vsel %vm2596, %v2592, 1326507024
        %v2607 = vsel %vm2595, %v2589, %v2606
        %v2608 = vsel %vm2594, %v2605, %v2607
        %v2609 = vshll.u32 %v2569, 8
        %v2610 = vand.u32 %v2609, 65535
        %v2611 = vshrl.u32 %v2609, 16
        %v2612 = vand.u32 %v2608, 65535
        %v2613 = vshrl.u32 %v2608, 16
        %v2614 = vmul.u32 %v2610, %v2612
        %v2615 = vmul.u32 %v2610, %v2613
        %v2616 = vmul.u32 %v2611, %v2612
        %v2617 = vmul.u32 %v2611, %v2613
        %v2618 = vshll.u32 %v2615, 16
        %v2619 = vshrl.u32 %v2615, 16
        %v2620 = vshll.u32 %v2616, 16
        %v2621 = vshrl.u32 %v2616, 16
        %vm2622 = vc.u32 %v2614, %v2618
        %v2623 = vsel %vm2622, 1, 0
        %v2624 = vadd.s32 %v2614, %v2618
        %v2625 = vadd.s32 %v2617, %v2623
        %vm2626 = vc.u32 %v2624, %v2620
        %v2627 = vsel %vm2626, 1, 0
        %v2628 = vadd.s32 %v2624, %v2620
        %v2629 = vadd.s32 %v2625, %v2627
        %v2630 = vadd.s32 %v2629, %v2619
        %v2631 = vadd.s32 %v2630, %v2621
        %v2632 = vand.u32 %v2609, 65535
        %v2633 = vshrl.u32 %v2609, 16
        %v2634 = vand.u32 %v2604, 65535
        %v2635 = vshrl.u32 %v2604, 16
        %v2636 = vmul.u32 %v2632, %v2634
        %v2637 = vmul.u32 %v2632, %v2635
        %v2638 = vmul.u32 %v2633, %v2634
        %v2639 = vmul.u32 %v2633, %v2635
        %v2640 = vshll.u32 %v2637, 16
        %v2641 = vshrl.u32 %v2637, 16
        %v2642 = vshll.u32 %v2638, 16
        %v2643 = vshrl.u32 %v2638, 16
        %vm2644 = vc.u32 %v2636, %v2640
        %v2645 = vsel %vm2644, 1, 0
        %v2646 = vadd.s32 %v2636, %v2640
        %v2647 = vadd.s32 %v2639, %v2645
        %vm2648 = vc.u32 %v2646, %v2642
        %v2649 = vsel %vm2648, 1, 0
        %v2650 = vadd.s32 %v2646, %v2642
        %v2651 = vadd.s32 %v2647, %v2649
        %v2652 = vadd.s32 %v2651, %v2641
        %v2653 = vadd.s32 %v2652, %v2643
        %v2654 = vmul.u32 %v2609, %v2600
        %v2655 = vadd.s32 %v2631, %v2650
        %vm2656 = vc.u32 %v2631, %v2650
        %v2657 = vadd.s32 %v2653, 1
        %v2658 = vsel %vm2656, %v2657, %v2653
        %v2659 = vadd.s32 %v2654, %v2658
        %v2660 = vadd.s32 %v2659, 536870912
        %v2661 = vshrl.u32 %v2660, 30
        %v2662 = vshll.u32 %v2661, 30
        %v2663 = vsub.s32 %v2659, %v2662
        %vm2664 = vcmp.lt.s32.totalorder %v2663, 0
        %v2665 = vsub.s32 0, %v2663
        %v2666 = vsel %vm2664, %v2665, %v2663
        %v2667 = vclz %v2666
        %v2668 = vsub.s32 %v2667, 2
        %vm2669 = vcmp.gt.s32.totalorder 0, %v2668
        %v2670 = vsel %vm2669, 0, %v2668
        %v2671 = vsub.s32 32, %v2670
        %v2672 = vshll.u32 %v2663, %v2670
        %v2673 = vshrl.u32 %v2655, %v2671
        %v2674 = vor.u32 %v2672, %v2673
        %v2675 = vsub.s32 4294967266, %v2670
        %v2676 = vadd.s32 %v2675, 127
        %v2677 = vshll.u32 %v2676, 23
        %v2678 = vor.u32 4788187, %v2677
        %v2679 = vand.u32 2147483647, %v2678
        %v2681 = vcvt.s32.f32 %v2674
        %v2682 = vmul.f32 %v2681, %v2679
        %v2683 = vxor.u32 %v2682, 2147483648
        %v2684 = vsel %vm2563, %v2683, %v2682
        %v2685 = vsub.s32 4, %v2661
        %v2686 = vsel %vm2563, %v2685, %v2661
        %v2687 = vsel %vm2562, %v2405, %v2684
        %v2688 = vsel %vm2562, 0, %v2686
        %v2689 = vmul.f32 %v2687, %v2687
        %v2690 = vmul.f32 %v2689, -0.001358992
        %v2691 = vadd.f32 %v2690, 0.041655596
        %v2692 = vmul.f32 %v2689, %v2691
        %v2693 = vadd.f32 %v2692, -0.4999988
        %v2694 = vmul.f32 %v2689, %v2693
        %v2695 = vadd.f32 1.0, %v2694
        %v2696 = vmul.f32 %v2687, %v2687
        %v2697 = vmul.f32 %v2696, -0.00019511016
        %v2698 = vadd.f32 %v2697, 0.008332121
        %v2699 = vmul.f32 %v2696, %v2698
        %v2700 = vadd.f32 %v2699, -0.16666654
        %v2701 = vmul.f32 %v2696, %v2700
        %v2702 = vadd.f32 %v2701, 1.0
        %v2703 = vmul.f32 %v2702, %v2687
        %vm2704 = vweird.f32 %v2405
        %v2705 = vadd.s32 %v2688, 3
        %v2706 = vand.u32 %v2705, 3
        %vm2707 = vcmp.lt.s32.totalorder %v2706, 2
        %vm2708 = vcmp.eq.s32.totalorder %v2706, 0
        %v2709 = vxor.u32 %v2703, 2147483648
        %v2710 = vsel %vm2708, %v2695, %v2709
        %vm2711 = vcmp.eq.s32.totalorder %v2706, 2
        %v2712 = vxor.u32 %v2695, 2147483648
        %v2713 = vsel %vm2711, %v2712, %v2703
        %v2714 = vsel %vm2707, %v2710, %v2713
        %v2715 = vsel %vm2704, nan, %v2714
        %v2716 = vmul.f32 %v2331, %v2560
        %v2717 = vmul.f32 %v2334, %v2715
        %v2718 = vadd.f32 %v2716, %v2717
        %v2719 = vrot.slane %v2718, 4
        %v2720 = vadd.f32 %v2718, %v2719
        %v2721 = vrot.slane %v2720, 2
        %v2722 = vadd.f32 %v2720, %v2721
        %v2723 = vrot.slane %v2722, 1
        %v2724 = vadd.f32 %v2722, %v2723
        %v2727 = vrot.slane %v2195, 1
        %v2728 = vrot.slane %v2196, 1
        %v2729 = vsel %vm1499, %v2727, %v2728
        %v2730 = vsel %vm865, %v2729, 0
        %2732 = vmatpush.msra.mxu0 0.0
        %2733 = vmatpush.msra.mxu0 0.0
        %2734 = vmatpush.msra.mxu0 0.0
        %2735 = vmatpush.msra.mxu0 0.0
        %2736 = vmatpush.msra.mxu0 0.0
        %2737 = vmatpush.msra.mxu0 0.0
        %2738 = vmatpush.msra.mxu0 0.0
        %2739 = vmatpush.msra.mxu0 0.0
        %2740 = vmatpush.msra.mxu0 0.0
        %2741 = vmatpush.msra.mxu0 0.0
        %2742 = vmatpush.msra.mxu0 0.0
        %2743 = vmatpush.msra.mxu0 0.0
        %2744 = vmatpush.msra.mxu0 0.0
        %2745 = vmatpush.msra.mxu0 0.0
        %2746 = vmatpush.msra.mxu0 0.0
        %2747 = vmatpush.msra.mxu0 %v1101
        %2748 = vmatmul.f32.gmra.mxu0 %v2730
        %v2749 = vpop.f32.mrf.mxu0
        %v2750 = vadd.f32 0.0, %v2749
        %2751 = vdwg.mxu0
        %v2752 = vmul.f32 %v2750, %v1102
        %v2753 = vrot.slane %v2752, 4
        %v2754 = vadd.f32 %v2752, %v2753
        %v2755 = vrot.slane %v2754, 2
        %v2756 = vadd.f32 %v2754, %v2755
        %v2757 = vrot.slane %v2756, 1
        %v2758 = vadd.f32 %v2756, %v2757
        %v2759 = vadd.f32 %v2022, %v2724
        %v2760 = vadd.f32 %v2759, %v2758
        %v2761 = vperm.slane %v1099, 2
        %v2762 = vmul.f32 %v1135, %v2761
        %v2763 = vmul.f32 %v1140, %v2761
        %v2764 = vmul.f32 %v1145, %v2761
        %v2765 = vmul.f32 %v1150, %v2761
        %v2766 = vperm.slane %v1100, 2
        %v2767 = vmul.f32 %v1159, %v2766
        %v2768 = vmul.f32 %v1163, %v2766
        %v2769 = vmul.f32 %v1167, %v2766
        %v2770 = vmul.f32 %v1171, %v2766
        %v2771 = vadd.f32 %v2762, %v2767
        %v2772 = vadd.f32 %v2763, %v2768
        %v2773 = vadd.f32 %v2764, %v2769
        %v2774 = vadd.f32 %v2765, %v2770
        %v2775 = vperm.slane %v1182, 2
        %v2776 = vmul.f32 %v1185, %v2775
        %v2777 = vmul.f32 %v1189, %v2775
        %v2778 = vmul.f32 %v1193, %v2775
        %v2779 = vmul.f32 %v1197, %v2775
        %v2780 = vadd.f32 %v2771, %v2776
        %v2781 = vadd.f32 %v2772, %v2777
        %v2782 = vadd.f32 %v2773, %v2778
        %v2783 = vadd.f32 %v2774, %v2779
        %v2784 = vadd.f32 %v2780, %v1088
        %v2785 = vadd.f32 %v2781, %v1091
        %v2786 = vadd.f32 %v2782, %v1094
        %v2787 = vadd.f32 %v2783, %v1097
        %v2788 = vadd.f32 %v2784, %v1215
        %v2789 = vadd.f32 %v2785, %v1220
        %v2790 = vadd.f32 %v2786, %v1225
        %v2791 = vadd.f32 %v2787, %v1230
        %v2792 = vmax.f32 %v2788, 0.0
        %v2793 = vmax.f32 %v2789, 0.0
        %v2794 = vmax.f32 %v2790, 0.0
        %v2795 = vmax.f32 %v2791, 0.0
        %2796 = vmatpush.msra.mxu0 0.0
        %2797 = vmatpush.msra.mxu0 0.0
        %2798 = vmatpush.msra.mxu0 0.0
        %2799 = vmatpush.msra.mxu0 0.0
        %2800 = vmatpush.msra.mxu0 0.0
        %2801 = vmatpush.msra.mxu0 0.0
        %2802 = vmatpush.msra.mxu0 0.0
        %2803 = vmatpush.msra.mxu0 0.0
        %2804 = vmatpush.msra.mxu0 0.0
        %2805 = vmatpush.msra.mxu0 0.0
        %2806 = vmatpush.msra.mxu0 0.0
        %2807 = vmatpush.msra.mxu0 0.0
        %2808 = vmatpush.msra.mxu0 %v2795
        %2809 = vmatpush.msra.mxu0 %v2794
        %2810 = vmatpush.msra.mxu0 %v2793
        %2811 = vmatpush.msra.mxu0 %v2792
        %2812 = vmatmul.f32.gmra.mxu0 %v1261
        %v2813 = vpop.f32.mrf.mxu0
        %v2814 = vadd.f32 %v1243, %v2813
        %2815 = vmatmul.f32.gmra.mxu0 %v1264
        %v2816 = vpop.f32.mrf.mxu0
        %v2817 = vadd.f32 %v1248, %v2816
        %2818 = vmatmul.f32.gmra.mxu0 %v1267
        %v2819 = vpop.f32.mrf.mxu0
        %v2820 = vadd.f32 %v1253, %v2819
        %2821 = vmatmul.f32.gmra.mxu0 %v1270
        %v2822 = vpop.f32.mrf.mxu0
        %v2823 = vadd.f32 %v1258, %v2822
        %2824 = vdwg.mxu0
        %v2825 = vsub.f32 0.0, %v2814
        %v2826 = vmul.f32 %v2825, 1.442695
        %v2827 = vpow.pop %v2826
        %v2828 = vadd.f32 %v2827, 1.0
        %v2829 = vrcp.pop %v2828
        %v2830 = vmul.f32 %v2828, %v2829
        %v2831 = vsub.f32 1.0, %v2830
        %v2832 = vmul.f32 %v2829, %v2831
        %v2833 = vadd.f32 %v2829, %v2832
        %vm2834 = vweird.f32 %v2828
        %vm2835 = vweird.f32 %v2829
        %vm2836 = vmor %vm2834, %vm2835
        %v2837 = vsel %vm2836, %v2829, %v2833
        %v2838 = vand.u32 2147483647, %v2828
        %vm2839 = vcmp.eq.f32.partialorder %v2838, 8.507059e+37
        %v2840 = vand.u32 %v2828, 2147483648
        %v2841 = vor.u32 1.1754944e-38, %v2840
        %v2842 = vsel %vm2839, %v2841, %v2837
        %v2843 = vmul.f32 1.0, %v2842
        %v2844 = vmax.f32 %v2843, 1e-20
        %v2845 = vlog2.pop %v2844
        %v2846 = vmul.f32 %v2845, 0.6931472
        %v2847 = vmul.f32 %v2846, 2.3025851
        %v2848 = vmul.f32 %v2847, 1.442695
        %v2849 = vpow.pop %v2848
        %v2850 = vmul.f32 %v2849, 2.0
        %v2851 = vadd.f32 %v2850, 1e-07
        %v2852 = vsub.f32 0.0, %v2817
        %v2853 = vsub.f32 0.0, %v2820
        %v2854 = vmul.f32 %v2852, 1.442695
        %v2855 = vpow.pop %v2854
        %v2856 = vmul.f32 %v2853, 1.442695
        %v2857 = vpow.pop %v2856
        %v2858 = vadd.f32 %v2855, 1.0
        %v2859 = vadd.f32 %v2857, 1.0
        %v2860 = vrcp.pop %v2858
        %v2861 = vmul.f32 %v2858, %v2860
        %v2862 = vsub.f32 1.0, %v2861
        %v2863 = vmul.f32 %v2860, %v2862
        %v2864 = vadd.f32 %v2860, %v2863
        %vm2865 = vweird.f32 %v2858
        %vm2866 = vweird.f32 %v2860
        %vm2867 = vmor %vm2865, %vm2866
        %v2868 = vsel %vm2867, %v2860, %v2864
        %v2869 = vand.u32 2147483647, %v2858
        %vm2870 = vcmp.eq.f32.partialorder %v2869, 8.507059e+37
        %v2871 = vand.u32 %v2858, 2147483648
        %v2872 = vor.u32 1.1754944e-38, %v2871
        %v2873 = vsel %vm2870, %v2872, %v2868
        %v2874 = vmul.f32 1.0, %v2873
        %v2875 = vrcp.pop %v2859
        %v2876 = vmul.f32 %v2859, %v2875
        %v2877 = vsub.f32 1.0, %v2876
        %v2878 = vmul.f32 %v2875, %v2877
        %v2879 = vadd.f32 %v2875, %v2878
        %vm2880 = vweird.f32 %v2859
        %vm2881 = vweird.f32 %v2875
        %vm2882 = vmor %vm2880, %vm2881
        %v2883 = vsel %vm2882, %v2875, %v2879
        %v2884 = vand.u32 2147483647, %v2859
        %vm2885 = vcmp.eq.f32.partialorder %v2884, 8.507059e+37
        %v2886 = vand.u32 %v2859, 2147483648
        %v2887 = vor.u32 1.1754944e-38, %v2886
        %v2888 = vsel %vm2885, %v2887, %v2883
        %v2889 = vmul.f32 1.0, %v2888
        %v2890 = vmax.f32 %v2874, 1e-20
        %v2891 = vmax.f32 %v2889, 1e-20
        %v2892 = vlog2.pop %v2890
        %v2893 = vmul.f32 %v2892, 0.6931472
        %v2894 = vlog2.pop %v2891
        %v2895 = vmul.f32 %v2894, 0.6931472
        %v2896 = vmul.f32 %v2893, 2.3025851
        %v2897 = vmul.f32 %v2895, 2.3025851
        %v2898 = vmul.f32 %v2896, 1.442695
        %v2899 = vpow.pop %v2898
        %v2900 = vmul.f32 %v2897, 1.442695
        %v2901 = vpow.pop %v2900
        %v2902 = vmul.f32 %v2899, 2.0
        %v2903 = vmul.f32 %v2901, 2.0
        %v2904 = vadd.f32 %v2902, 1e-07
        %v2905 = vadd.f32 %v2903, 1e-07
        %v2906 = vsub.f32 0.0, %v2823
        %v2907 = vmul.f32 %v2906, 1.442695
        %v2908 = vpow.pop %v2907
        %v2909 = vadd.f32 %v2908, 1.0
        %v2910 = vrcp.pop %v2909
        %v2911 = vmul.f32 %v2909, %v2910
        %v2912 = vsub.f32 1.0, %v2911
        %v2913 = vmul.f32 %v2910, %v2912
        %v2914 = vadd.f32 %v2910, %v2913
        %vm2915 = vweird.f32 %v2909
        %vm2916 = vweird.f32 %v2910
        %vm2917 = vmor %vm2915, %vm2916
        %v2918 = vsel %vm2917, %v2910, %v2914
        %v2919 = vand.u32 2147483647, %v2909
        %vm2920 = vcmp.eq.f32.partialorder %v2919, 8.507059e+37
        %v2921 = vand.u32 %v2909, 2147483648
        %v2922 = vor.u32 1.1754944e-38, %v2921
        %v2923 = vsel %vm2920, %v2922, %v2918
        %v2924 = vmul.f32 1.0, %v2923
        %v2925 = vmax.f32 %v2924, 1e-20
        %v2926 = vlog2.pop %v2925
        %v2927 = vmul.f32 %v2926, 0.6931472
        %v2928 = vmul.f32 %v2927, 2.3025851
        %v2929 = vmul.f32 %v2928, 1.442695
        %v2930 = vpow.pop %v2929
        %v2931 = vmul.f32 %v2930, 2.0
        %v2932 = vadd.f32 %v2931, 1e-07
        %v2933 = vmul.f32 %v2905, 0.05
        %v2934 = vmul.f32 %v2932, 0.05
        %v2935 = vperm.slane %v1440, 2
        %v2936 = vmul.f32 %v2935, %v1122
        %v2937 = vmul.f32 %v2935, %v1123
        %v2938 = vmul.f32 %v2936, %v1122
        %v2939 = vmul.f32 %v2937, %v1123
        %v2940 = vadd.f32 %v2938, 1.0
        %v2941 = vadd.f32 %v2939, 1.0
        %v2942 = vrsqrt.pop %v2940
        %v2943 = vmul.f32 %v2942, %v2940
        %v2944 = vmul.f32 %v2943, %v2942
        %v2945 = vmul.f32 0.5, %v2944
        %v2946 = vsub.f32 1.5, %v2945
        %v2947 = vmul.f32 %v2942, %v2946
        %v2948 = vmul.f32 %v2940, %v2947
        %vm2949 = vcmp.eq.f32.partialorder %v2940, inf
        %v2950 = vsel %vm2949, %v2940, %v2948
        %vm2951 = vcmp.eq.f32.partialorder %v2940, 0.0
        %v2952 = vand.u32 %v2940, 2147483648
        %v2953 = vsel %vm2951, %v2952, %v2950
        %v2954 = vrsqrt.pop %v2941
        %v2955 = vmul.f32 %v2954, %v2941
        %v2956 = vmul.f32 %v2955, %v2954
        %v2957 = vmul.f32 0.5, %v2956
        %v2958 = vsub.f32 1.5, %v2957
        %v2959 = vmul.f32 %v2954, %v2958
        %v2960 = vmul.f32 %v2941, %v2959
        %vm2961 = vcmp.eq.f32.partialorder %v2941, inf
        %v2962 = vsel %vm2961, %v2941, %v2960
        %vm2963 = vcmp.eq.f32.partialorder %v2941, 0.0
        %v2964 = vand.u32 %v2941, 2147483648
        %v2965 = vsel %vm2963, %v2964, %v2962
        %v2966 = vmul.f32 %v1122, %v2953
        %v2967 = vmul.f32 %v1123, %v2965
        %v2968 = vperm.slane %v1457, 2
        %v2969 = vmul.f32 %v2968, %v2966
        %v2970 = vmul.f32 %v2968, %v2967
        %vm2971 = vcmp.lt.f32.partialorder %v2969, 8000.0
        %vm2972 = vcmp.lt.f32.partialorder %v2970, 8000.0
        %v2976 = vrot.slane %v2851, 1
        %v2977 = vrot.slane %v2904, 1
        %v2978 = vsel %vm1499, %v2976, %v2977
        %v2979 = vrot.slane %v2905, 1
        %v2980 = vsel %vm1499, %v2977, %v2979
        %v2983 = vsel %vm2971, %v2978, 0.0
        %v2984 = vsel %vm2972, %v2980, 0.0
        %v2985 = vsel %vm865, %v2983, 0.0
        %v2986 = vsel %vm865, %v2984, 0.0
        %v2987 = vadd.f32 %v2985, %v2986
        %v2988 = vrot.slane %v2987, 4
        %v2989 = vadd.f32 %v2987, %v2988
        %v2990 = vrot.slane %v2989, 2
        %v2991 = vadd.f32 %v2989, %v2990
        %v2992 = vrot.slane %v2991, 1
        %v2993 = vadd.f32 %v2991, %v2992
        %v2994 = vadd.f32 %v2993, 1e-07
        %v2995 = vrcp.pop %v2994
        %v2996 = vmul.f32 %v2994, %v2995
        %v2997 = vsub.f32 1.0, %v2996
        %v2998 = vmul.f32 %v2995, %v2997
        %v2999 = vadd.f32 %v2995, %v2998
        %vm3000 = vweird.f32 %v2994
        %vm3001 = vweird.f32 %v2995
        %vm3002 = vmor %vm3000, %vm3001
        %v3003 = vsel %vm3002, %v2995, %v2999
        %v3004 = vand.u32 2147483647, %v2994
        %vm3005 = vcmp.eq.f32.partialorder %v3004, 8.507059e+37
        %v3006 = vand.u32 %v2994, 2147483648
        %v3007 = vor.u32 1.1754944e-38, %v3006
        %v3008 = vsel %vm3005, %v3007, %v3003
        %v3009 = vmul.f32 %v2983, %v3008
        %v3010 = vmul.f32 %v2984, %v3008
        %v3011 = vperm.slane %v2851, 0
        %v3012 = vmul.f32 %v3011, %v3009
        %v3013 = vmul.f32 %v3011, %v3010
        %v3014 = vmul.f32 %v2969, 0.0062831854
        %v3015 = vmul.f32 %v2970, 0.0062831854
        %v3017 = vsel %vm865, %v3014, 0
        %v3020 = vsel %vm865, %v3015, 0
        %3022 = vmatpush.msra.mxu0 0.0
        %3023 = vmatpush.msra.mxu0 0.0
        %3024 = vmatpush.msra.mxu0 0.0
        %3025 = vmatpush.msra.mxu0 0.0
        %3026 = vmatpush.msra.mxu0 0.0
        %3027 = vmatpush.msra.mxu0 0.0
        %3028 = vmatpush.msra.mxu0 0.0
        %3029 = vmatpush.msra.mxu0 0.0
        %3030 = vmatpush.msra.mxu0 0.0
        %3031 = vmatpush.msra.mxu0 0.0
        %3032 = vmatpush.msra.mxu0 0.0
        %3033 = vmatpush.msra.mxu0 0.0
        %3034 = vmatpush.msra.mxu0 0.0
        %3035 = vmatpush.msra.mxu0 0.0
        %3036 = vmatpush.msra.mxu0 0.0
        %3037 = vmatpush.msra.mxu0 %v1128
        %3038 = vmatmul.f32.gmra.mxu0 %v3017
        %v3039 = vpop.f32.mrf.mxu0
        %v3040 = vadd.f32 0.0, %v3039
        %3041 = vmatmul.f32.gmra.mxu0 %v3020
        %v3042 = vpop.f32.mrf.mxu0
        %v3043 = vadd.f32 0.0, %v3042
        %3044 = vdwg.mxu0
        %v3046 = vsel %vm865, %v3012, 0
        %v3049 = vsel %vm865, %v3013, 0
        %3051 = vmatpush.msra.mxu0 0.0
        %3052 = vmatpush.msra.mxu0 0.0
        %3053 = vmatpush.msra.mxu0 0.0
        %3054 = vmatpush.msra.mxu0 0.0
        %3055 = vmatpush.msra.mxu0 0.0
        %3056 = vmatpush.msra.mxu0 0.0
        %3057 = vmatpush.msra.mxu0 0.0
        %3058 = vmatpush.msra.mxu0 0.0
        %3059 = vmatpush.msra.mxu0 0.0
        %3060 = vmatpush.msra.mxu0 0.0
        %3061 = vmatpush.msra.mxu0 0.0
        %3062 = vmatpush.msra.mxu0 0.0
        %3063 = vmatpush.msra.mxu0 0.0
        %3064 = vmatpush.msra.mxu0 0.0
        %3065 = vmatpush.msra.mxu0 0.0
        %3066 = vmatpush.msra.mxu0 %v1101
        %3067 = vmatmul.f32.gmra.mxu0 %v3046
        %v3068 = vpop.f32.mrf.mxu0
        %v3069 = vadd.f32 0.0, %v3068
        %3070 = vmatmul.f32.gmra.mxu0 %v3049
        %v3071 = vpop.f32.mrf.mxu0
        %v3072 = vadd.f32 0.0, %v3071
        %3073 = vdwg.mxu0
        %v3075 = vsel %vm865, %v2969, 0
        %v3078 = vsel %vm865, %v2970, 0
        %3080 = vmatpush.msra.mxu0 0.0
        %3081 = vmatpush.msra.mxu0 0.0
        %3082 = vmatpush.msra.mxu0 0.0
        %3083 = vmatpush.msra.mxu0 0.0
        %3084 = vmatpush.msra.mxu0 0.0
        %3085 = vmatpush.msra.mxu0 0.0
        %3086 = vmatpush.msra.mxu0 0.0
        %3087 = vmatpush.msra.mxu0 0.0
        %3088 = vmatpush.msra.mxu0 0.0
        %3089 = vmatpush.msra.mxu0 0.0
        %3090 = vmatpush.msra.mxu0 0.0
        %3091 = vmatpush.msra.mxu0 0.0
        %3092 = vmatpush.msra.mxu0 0.0
        %3093 = vmatpush.msra.mxu0 0.0
        %3094 = vmatpush.msra.mxu0 0.0
        %3095 = vmatpush.msra.mxu0 %v1101
        %3096 = vmatmul.f32.gmra.mxu0 %v3075
        %v3097 = vpop.f32.mrf.mxu0
        %v3098 = vadd.f32 0.0, %v3097
        %3099 = vmatmul.f32.gmra.mxu0 %v3078
        %v3100 = vpop.f32.mrf.mxu0
        %v3101 = vadd.f32 0.0, %v3100
        %3102 = vdwg.mxu0
        %v3103 = vmul.f32 %v3098, 0.0003926991
        %v3104 = vmul.f32 %v3101, 0.0003926991
        %v3105 = vmul.f32 %v3103, %v1131
        %v3106 = vmul.f32 %v3104, %v1131
        %v3108 = vsel %vm865, %v3040, 0
        %v3111 = vsel %vm865, %v3043, 0
        %3113 = vmatpush.msra.mxu0 0.0
        %3114 = vmatpush.msra.mxu0 0.0
        %3115 = vmatpush.msra.mxu0 0.0
        %3116 = vmatpush.msra.mxu0 0.0
        %3117 = vmatpush.msra.mxu0 0.0
        %3118 = vmatpush.msra.mxu0 0.0
        %3119 = vmatpush.msra.mxu0 0.0
        %3120 = vmatpush.msra.mxu0 0.0
        %3121 = vmatpush.msra.mxu0 0.0
        %3122 = vmatpush.msra.mxu0 0.0
        %3123 = vmatpush.msra.mxu0 0.0
        %3124 = vmatpush.msra.mxu0 0.0
        %3125 = vmatpush.msra.mxu0 0.0
        %3126 = vmatpush.msra.mxu0 0.0
        %3127 = vmatpush.msra.mxu0 0.0
        %3128 = vmatpush.msra.mxu0 %v1101
        %3129 = vmatmul.f32.gmra.mxu0 %v3108
        %v3130 = vpop.f32.mrf.mxu0
        %v3131 = vadd.f32 %v3105, %v3130
        %3132 = vmatmul.f32.gmra.mxu0 %v3111
        %v3133 = vpop.f32.mrf.mxu0
        %v3134 = vadd.f32 %v3106, %v3133
        %3135 = vdwg.mxu0
        %v3136 = vmul.f32 %v3131, 0.15915494
        %v3137 = vmul.f32 %v3134, 0.15915494
        %v3138 = vfloor.f32 %v3136
        %v3139 = vfloor.f32 %v3137
        %v3140 = vmul.f32 %v3138, 6.2831855
        %v3141 = vmul.f32 %v3139, 6.2831855
        %v3142 = vsub.f32 %v3131, %v3140
        %v3143 = vsub.f32 %v3134, %v3141
        %v3144 = vand.u32 2147483647, %v3142
        %vm3145 = vcmp.le.f32.partialorder %v3144, 0.7853982
        %vm3146 = vcmp.lt.s32.totalorder %v3142, 0
        %v3147 = vand.u32 %v3142, 2139095040
        %v3148 = vshrl.u32 %v3147, 23
        %v3149 = vsub.s32 %v3148, 127
        %v3150 = vand.u32 2147483647, %v3142
        %v3151 = vand.u32 %v3150, 8388607
        %v3152 = vor.u32 %v3151, 8388608
        %v3153 = vsub.s32 0, %v3152
        %v3154 = vadd.s32 %v3149, 1
        %vm3155 = vcmp.gt.s32.totalorder %v3154, 0
        %v3156 = vsel %vm3155, %v3154, 0
        %v3157 = vshrl.u32 %v3156, 5
        %v3158 = vand.u32 %v3156, 31
        %v3159 = vsub.s32 32, %v3158
        %v3160 = vshrl.u32 683565275, %v3159
        %v3161 = vshll.u32 683565275, %v3158
        %v3162 = vshrl.u32 2475754826, %v3159
        %v3163 = vor.u32 %v3161, %v3162
        %v3164 = vshll.u32 2475754826, %v3158
        %v3165 = vshrl.u32 2131351028, %v3159
        %v3166 = vor.u32 %v3164, %v3165
        %v3167 = vshll.u32 2131351028, %v3158
        %v3168 = vshrl.u32 2102212464, %v3159
        %v3169 = vor.u32 %v3167, %v3168
        %v3170 = vshll.u32 2102212464, %v3158
        %v3171 = vshrl.u32 920167782, %v3159
        %v3172 = vor.u32 %v3170, %v3171
        %v3173 = vshll.u32 920167782, %v3158
        %v3174 = vshrl.u32 1326507024, %v3159
        %v3175 = vor.u32 %v3173, %v3174
        %vm3176 = vcmp.lt.s32.totalorder %v3157, 1
        %vm3177 = vcmp.lt.s32.totalorder %v3157, 2
        %vm3178 = vcmp.lt.s32.totalorder %v3157, 3
        %vm3179 = vcmp.lt.s32.totalorder %v3157, 4
        %v3180 = vsel %vm3176, %v3160, %v3163
        %v3181 = vsel %vm3179, %v3169, 2102212464
        %v3182 = vsel %vm3178, %v3166, %v3181
        %v3183 = vsel %vm3177, %v3180, %v3182
        %v3184 = vsel %vm3176, %v3163, %v3166
        %v3185 = vsel %vm3179, %v3172, 920167782
        %v3186 = vsel %vm3178, %v3169, %v3185
        %v3187 = vsel %vm3177, %v3184, %v3186
        %v3188 = vsel %vm3176, %v3166, %v3169
        %v3189 = vsel %vm3179, %v3175, 1326507024
        %v3190 = vsel %vm3178, %v3172, %v3189
        %v3191 = vsel %vm3177, %v3188, %v3190
        %v3192 = vshll.u32 %v3152, 8
        %v3193 = vand.u32 %v3192, 65535
        %v3194 = vshrl.u32 %v3192, 16
        %v3195 = vand.u32 %v3191, 65535
        %v3196 = vshrl.u32 %v3191, 16
        %v3197 = vmul.u32 %v3193, %v3195
        %v3198 = vmul.u32 %v3193, %v3196
        %v3199 = vmul.u32 %v3194, %v3195
        %v3200 = vmul.u32 %v3194, %v3196
        %v3201 = vshll.u32 %v3198, 16
        %v3202 = vshrl.u32 %v3198, 16
        %v3203 = vshll.u32 %v3199, 16
        %v3204 = vshrl.u32 %v3199, 16
        %vm3205 = vc.u32 %v3197, %v3201
        %v3206 = vsel %vm3205, 1, 0
        %v3207 = vadd.s32 %v3197, %v3201
        %v3208 = vadd.s32 %v3200, %v3206
        %vm3209 = vc.u32 %v3207, %v3203
        %v3210 = vsel %vm3209, 1, 0
        %v3211 = vadd.s32 %v3207, %v3203
        %v3212 = vadd.s32 %v3208, %v3210
        %v3213 = vadd.s32 %v3212, %v3202
        %v3214 = vadd.s32 %v3213, %v3204
        %v3215 = vand.u32 %v3192, 65535
        %v3216 = vshrl.u32 %v3192, 16
        %v3217 = vand.u32 %v3187, 65535
        %v3218 = vshrl.u32 %v3187, 16
        %v3219 = vmul.u32 %v3215, %v3217
        %v3220 = vmul.u32 %v3215, %v3218
        %v3221 = vmul.u32 %v3216, %v3217
        %v3222 = vmul.u32 %v3216, %v3218
        %v3223 = vshll.u32 %v3220, 16
        %v3224 = vshrl.u32 %v3220, 16
        %v3225 = vshll.u32 %v3221, 16
        %v3226 = vshrl.u32 %v3221, 16
        %vm3227 = vc.u32 %v3219, %v3223
        %v3228 = vsel %vm3227, 1, 0
        %v3229 = vadd.s32 %v3219, %v3223
        %v3230 = vadd.s32 %v3222, %v3228
        %vm3231 = vc.u32 %v3229, %v3225
        %v3232 = vsel %vm3231, 1, 0
        %v3233 = vadd.s32 %v3229, %v3225
        %v3234 = vadd.s32 %v3230, %v3232
        %v3235 = vadd.s32 %v3234, %v3224
        %v3236 = vadd.s32 %v3235, %v3226
        %v3237 = vmul.u32 %v3192, %v3183
        %v3238 = vadd.s32 %v3214, %v3233
        %vm3239 = vc.u32 %v3214, %v3233
        %v3240 = vadd.s32 %v3236, 1
        %v3241 = vsel %vm3239, %v3240, %v3236
        %v3242 = vadd.s32 %v3237, %v3241
        %v3243 = vadd.s32 %v3242, 536870912
        %v3244 = vshrl.u32 %v3243, 30
        %v3245 = vshll.u32 %v3244, 30
        %v3246 = vsub.s32 %v3242, %v3245
        %vm3247 = vcmp.lt.s32.totalorder %v3246, 0
        %v3248 = vsub.s32 0, %v3246
        %v3249 = vsel %vm3247, %v3248, %v3246
        %v3250 = vclz %v3249
        %v3251 = vsub.s32 %v3250, 2
        %vm3252 = vcmp.gt.s32.totalorder 0, %v3251
        %v3253 = vsel %vm3252, 0, %v3251
        %v3254 = vsub.s32 32, %v3253
        %v3255 = vshll.u32 %v3246, %v3253
        %v3256 = vshrl.u32 %v3238, %v3254
        %v3257 = vor.u32 %v3255, %v3256
        %v3258 = vsub.s32 4294967266, %v3253
        %v3259 = vadd.s32 %v3258, 127
        %v3260 = vshll.u32 %v3259, 23
        %v3261 = vor.u32 4788187, %v3260
        %v3262 = vand.u32 2147483647, %v3261
        %v3264 = vcvt.s32.f32 %v3257
        %v3265 = vmul.f32 %v3264, %v3262
        %v3266 = vxor.u32 %v3265, 2147483648
        %v3267 = vsel %vm3146, %v3266, %v3265
        %v3268 = vsub.s32 4, %v3244
        %v3269 = vsel %vm3146, %v3268, %v3244
        %v3270 = vsel %vm3145, %v3142, %v3267
        %v3271 = vsel %vm3145, 0, %v3269
        %v3272 = vmul.f32 %v3270, %v3270
        %v3273 = vmul.f32 %v3272, -0.001358992
        %v3274 = vadd.f32 %v3273, 0.041655596
        %v3275 = vmul.f32 %v3272, %v3274
        %v3276 = vadd.f32 %v3275, -0.4999988
        %v3277 = vmul.f32 %v3272, %v3276
        %v3278 = vadd.f32 1.0, %v3277
        %v3279 = vmul.f32 %v3270, %v3270
        %v3280 = vmul.f32 %v3279, -0.00019511016
        %v3281 = vadd.f32 %v3280, 0.008332121
        %v3282 = vmul.f32 %v3279, %v3281
        %v3283 = vadd.f32 %v3282, -0.16666654
        %v3284 = vmul.f32 %v3279, %v3283
        %v3285 = vadd.f32 %v3284, 1.0
        %v3286 = vmul.f32 %v3285, %v3270
        %vm3287 = vweird.f32 %v3142
        %v3288 = vadd.s32 %v3271, 3
        %v3289 = vand.u32 %v3288, 3
        %vm3290 = vcmp.lt.s32.totalorder %v3289, 2
        %vm3291 = vcmp.eq.s32.totalorder %v3289, 0
        %v3292 = vxor.u32 %v3286, 2147483648
        %v3293 = vsel %vm3291, %v3278, %v3292
        %vm3294 = vcmp.eq.s32.totalorder %v3289, 2
        %v3295 = vxor.u32 %v3278, 2147483648
        %v3296 = vsel %vm3294, %v3295, %v3286
        %v3297 = vsel %vm3290, %v3293, %v3296
        %v3298 = vsel %vm3287, nan, %v3297
        %v3299 = vand.u32 2147483647, %v3143
        %vm3300 = vcmp.le.f32.partialorder %v3299, 0.7853982
        %vm3301 = vcmp.lt.s32.totalorder %v3143, 0
        %v3302 = vand.u32 %v3143, 2139095040
        %v3303 = vshrl.u32 %v3302, 23
        %v3304 = vsub.s32 %v3303, 127
        %v3305 = vand.u32 2147483647, %v3143
        %v3306 = vand.u32 %v3305, 8388607
        %v3307 = vor.u32 %v3306, 8388608
        %v3308 = vsub.s32 0, %v3307
        %v3309 = vadd.s32 %v3304, 1
        %vm3310 = vcmp.gt.s32.totalorder %v3309, 0
        %v3311 = vsel %vm3310, %v3309, 0
        %v3312 = vshrl.u32 %v3311, 5
        %v3313 = vand.u32 %v3311, 31
        %v3314 = vsub.s32 32, %v3313
        %v3315 = vshrl.u32 683565275, %v3314
        %v3316 = vshll.u32 683565275, %v3313
        %v3317 = vshrl.u32 2475754826, %v3314
        %v3318 = vor.u32 %v3316, %v3317
        %v3319 = vshll.u32 2475754826, %v3313
        %v3320 = vshrl.u32 2131351028, %v3314
        %v3321 = vor.u32 %v3319, %v3320
        %v3322 = vshll.u32 2131351028, %v3313
        %v3323 = vshrl.u32 2102212464, %v3314
        %v3324 = vor.u32 %v3322, %v3323
        %v3325 = vshll.u32 2102212464, %v3313
        %v3326 = vshrl.u32 920167782, %v3314
        %v3327 = vor.u32 %v3325, %v3326
        %v3328 = vshll.u32 920167782, %v3313
        %v3329 = vshrl.u32 1326507024, %v3314
        %v3330 = vor.u32 %v3328, %v3329
        %vm3331 = vcmp.lt.s32.totalorder %v3312, 1
        %vm3332 = vcmp.lt.s32.totalorder %v3312, 2
        %vm3333 = vcmp.lt.s32.totalorder %v3312, 3
        %vm3334 = vcmp.lt.s32.totalorder %v3312, 4
        %v3335 = vsel %vm3331, %v3315, %v3318
        %v3336 = vsel %vm3334, %v3324, 2102212464
        %v3337 = vsel %vm3333, %v3321, %v3336
        %v3338 = vsel %vm3332, %v3335, %v3337
        %v3339 = vsel %vm3331, %v3318, %v3321
        %v3340 = vsel %vm3334, %v3327, 920167782
        %v3341 = vsel %vm3333, %v3324, %v3340
        %v3342 = vsel %vm3332, %v3339, %v3341
        %v3343 = vsel %vm3331, %v3321, %v3324
        %v3344 = vsel %vm3334, %v3330, 1326507024
        %v3345 = vsel %vm3333, %v3327, %v3344
        %v3346 = vsel %vm3332, %v3343, %v3345
        %v3347 = vshll.u32 %v3307, 8
        %v3348 = vand.u32 %v3347, 65535
        %v3349 = vshrl.u32 %v3347, 16
        %v3350 = vand.u32 %v3346, 65535
        %v3351 = vshrl.u32 %v3346, 16
        %v3352 = vmul.u32 %v3348, %v3350
        %v3353 = vmul.u32 %v3348, %v3351
        %v3354 = vmul.u32 %v3349, %v3350
        %v3355 = vmul.u32 %v3349, %v3351
        %v3356 = vshll.u32 %v3353, 16
        %v3357 = vshrl.u32 %v3353, 16
        %v3358 = vshll.u32 %v3354, 16
        %v3359 = vshrl.u32 %v3354, 16
        %vm3360 = vc.u32 %v3352, %v3356
        %v3361 = vsel %vm3360, 1, 0
        %v3362 = vadd.s32 %v3352, %v3356
        %v3363 = vadd.s32 %v3355, %v3361
        %vm3364 = vc.u32 %v3362, %v3358
        %v3365 = vsel %vm3364, 1, 0
        %v3366 = vadd.s32 %v3362, %v3358
        %v3367 = vadd.s32 %v3363, %v3365
        %v3368 = vadd.s32 %v3367, %v3357
        %v3369 = vadd.s32 %v3368, %v3359
        %v3370 = vand.u32 %v3347, 65535
        %v3371 = vshrl.u32 %v3347, 16
        %v3372 = vand.u32 %v3342, 65535
        %v3373 = vshrl.u32 %v3342, 16
        %v3374 = vmul.u32 %v3370, %v3372
        %v3375 = vmul.u32 %v3370, %v3373
        %v3376 = vmul.u32 %v3371, %v3372
        %v3377 = vmul.u32 %v3371, %v3373
        %v3378 = vshll.u32 %v3375, 16
        %v3379 = vshrl.u32 %v3375, 16
        %v3380 = vshll.u32 %v3376, 16
        %v3381 = vshrl.u32 %v3376, 16
        %vm3382 = vc.u32 %v3374, %v3378
        %v3383 = vsel %vm3382, 1, 0
        %v3384 = vadd.s32 %v3374, %v3378
        %v3385 = vadd.s32 %v3377, %v3383
        %vm3386 = vc.u32 %v3384, %v3380
        %v3387 = vsel %vm3386, 1, 0
        %v3388 = vadd.s32 %v3384, %v3380
        %v3389 = vadd.s32 %v3385, %v3387
        %v3390 = vadd.s32 %v3389, %v3379
        %v3391 = vadd.s32 %v3390, %v3381
        %v3392 = vmul.u32 %v3347, %v3338
        %v3393 = vadd.s32 %v3369, %v3388
        %vm3394 = vc.u32 %v3369, %v3388
        %v3395 = vadd.s32 %v3391, 1
        %v3396 = vsel %vm3394, %v3395, %v3391
        %v3397 = vadd.s32 %v3392, %v3396
        %v3398 = vadd.s32 %v3397, 536870912
        %v3399 = vshrl.u32 %v3398, 30
        %v3400 = vshll.u32 %v3399, 30
        %v3401 = vsub.s32 %v3397, %v3400
        %vm3402 = vcmp.lt.s32.totalorder %v3401, 0
        %v3403 = vsub.s32 0, %v3401
        %v3404 = vsel %vm3402, %v3403, %v3401
        %v3405 = vclz %v3404
        %v3406 = vsub.s32 %v3405, 2
        %vm3407 = vcmp.gt.s32.totalorder 0, %v3406
        %v3408 = vsel %vm3407, 0, %v3406
        %v3409 = vsub.s32 32, %v3408
        %v3410 = vshll.u32 %v3401, %v3408
        %v3411 = vshrl.u32 %v3393, %v3409
        %v3412 = vor.u32 %v3410, %v3411
        %v3413 = vsub.s32 4294967266, %v3408
        %v3414 = vadd.s32 %v3413, 127
        %v3415 = vshll.u32 %v3414, 23
        %v3416 = vor.u32 4788187, %v3415
        %v3417 = vand.u32 2147483647, %v3416
        %v3419 = vcvt.s32.f32 %v3412
        %v3420 = vmul.f32 %v3419, %v3417
        %v3421 = vxor.u32 %v3420, 2147483648
        %v3422 = vsel %vm3301, %v3421, %v3420
        %v3423 = vsub.s32 4, %v3399
        %v3424 = vsel %vm3301, %v3423, %v3399
        %v3425 = vsel %vm3300, %v3143, %v3422
        %v3426 = vsel %vm3300, 0, %v3424
        %v3427 = vmul.f32 %v3425, %v3425
        %v3428 = vmul.f32 %v3427, -0.001358992
        %v3429 = vadd.f32 %v3428, 0.041655596
        %v3430 = vmul.f32 %v3427, %v3429
        %v3431 = vadd.f32 %v3430, -0.4999988
        %v3432 = vmul.f32 %v3427, %v3431
        %v3433 = vadd.f32 1.0, %v3432
        %v3434 = vmul.f32 %v3425, %v3425
        %v3435 = vmul.f32 %v3434, -0.00019511016
        %v3436 = vadd.f32 %v3435, 0.008332121
        %v3437 = vmul.f32 %v3434, %v3436
        %v3438 = vadd.f32 %v3437, -0.16666654
        %v3439 = vmul.f32 %v3434, %v3438
        %v3440 = vadd.f32 %v3439, 1.0
        %v3441 = vmul.f32 %v3440, %v3425
        %vm3442 = vweird.f32 %v3143
        %v3443 = vadd.s32 %v3426, 3
        %v3444 = vand.u32 %v3443, 3
        %vm3445 = vcmp.lt.s32.totalorder %v3444, 2
        %vm3446 = vcmp.eq.s32.totalorder %v3444, 0
        %v3447 = vxor.u32 %v3441, 2147483648
        %v3448 = vsel %vm3446, %v3433, %v3447
        %vm3449 = vcmp.eq.s32.totalorder %v3444, 2
        %v3450 = vxor.u32 %v3433, 2147483648
        %v3451 = vsel %vm3449, %v3450, %v3441
        %v3452 = vsel %vm3445, %v3448, %v3451
        %v3453 = vsel %vm3442, nan, %v3452
        %v3454 = vmul.f32 %v3069, %v3298
        %v3455 = vmul.f32 %v3072, %v3453
        %v3456 = vadd.f32 %v3454, %v3455
        %v3457 = vrot.slane %v3456, 4
        %v3458 = vadd.f32 %v3456, %v3457
        %v3459 = vrot.slane %v3458, 2
        %v3460 = vadd.f32 %v3458, %v3459
        %v3461 = vrot.slane %v3460, 1
        %v3462 = vadd.f32 %v3460, %v3461
        %v3465 = vrot.slane %v2933, 1
        %v3466 = vrot.slane %v2934, 1
        %v3467 = vsel %vm1499, %v3465, %v3466
        %v3468 = vsel %vm865, %v3467, 0
        %3470 = vmatpush.msra.mxu0 0.0
        %3471 = vmatpush.msra.mxu0 0.0
        %3472 = vmatpush.msra.mxu0 0.0
        %3473 = vmatpush.msra.mxu0 0.0
        %3474 = vmatpush.msra.mxu0 0.0
        %3475 = vmatpush.msra.mxu0 0.0
        %3476 = vmatpush.msra.mxu0 0.0
        %3477 = vmatpush.msra.mxu0 0.0
        %3478 = vmatpush.msra.mxu0 0.0
        %3479 = vmatpush.msra.mxu0 0.0
        %3480 = vmatpush.msra.mxu0 0.0
        %3481 = vmatpush.msra.mxu0 0.0
        %3482 = vmatpush.msra.mxu0 0.0
        %3483 = vmatpush.msra.mxu0 0.0
        %3484 = vmatpush.msra.mxu0 0.0
        %3485 = vmatpush.msra.mxu0 %v1101
        %3486 = vmatmul.f32.gmra.mxu0 %v3468
        %v3487 = vpop.f32.mrf.mxu0
        %v3488 = vadd.f32 0.0, %v3487
        %3489 = vdwg.mxu0
        %v3490 = vmul.f32 %v3488, %v1102
        %v3491 = vrot.slane %v3490, 4
        %v3492 = vadd.f32 %v3490, %v3491
        %v3493 = vrot.slane %v3492, 2
        %v3494 = vadd.f32 %v3492, %v3493
        %v3495 = vrot.slane %v3494, 1
        %v3496 = vadd.f32 %v3494, %v3495
        %v3497 = vadd.f32 %v2760, %v3462
        %v3498 = vadd.f32 %v3497, %v3496
        %v3499 = vperm.slane %v1099, 3
        %v3500 = vmul.f32 %v1135, %v3499
        %v3501 = vmul.f32 %v1140, %v3499
        %v3502 = vmul.f32 %v1145, %v3499
        %v3503 = vmul.f32 %v1150, %v3499
        %v3504 = vperm.slane %v1100, 3
        %v3505 = vmul.f32 %v1159, %v3504
        %v3506 = vmul.f32 %v1163, %v3504
        %v3507 = vmul.f32 %v1167, %v3504
        %v3508 = vmul.f32 %v1171, %v3504
        %v3509 = vadd.f32 %v3500, %v3505
        %v3510 = vadd.f32 %v3501, %v3506
        %v3511 = vadd.f32 %v3502, %v3507
        %v3512 = vadd.f32 %v3503, %v3508
        %v3513 = vperm.slane %v1182, 3
        %v3514 = vmul.f32 %v1185, %v3513
        %v3515 = vmul.f32 %v1189, %v3513
        %v3516 = vmul.f32 %v1193, %v3513
        %v3517 = vmul.f32 %v1197, %v3513
        %v3518 = vadd.f32 %v3509, %v3514
        %v3519 = vadd.f32 %v3510, %v3515
        %v3520 = vadd.f32 %v3511, %v3516
        %v3521 = vadd.f32 %v3512, %v3517
        %v3522 = vadd.f32 %v3518, %v1088
        %v3523 = vadd.f32 %v3519, %v1091
        %v3524 = vadd.f32 %v3520, %v1094
        %v3525 = vadd.f32 %v3521, %v1097
        %v3526 = vadd.f32 %v3522, %v1215
        %v3527 = vadd.f32 %v3523, %v1220
        %v3528 = vadd.f32 %v3524, %v1225
        %v3529 = vadd.f32 %v3525, %v1230
        %v3530 = vmax.f32 %v3526, 0.0
        %v3531 = vmax.f32 %v3527, 0.0
        %v3532 = vmax.f32 %v3528, 0.0
        %v3533 = vmax.f32 %v3529, 0.0
        %3534 = vmatpush.msra.mxu0 0.0
        %3535 = vmatpush.msra.mxu0 0.0
        %3536 = vmatpush.msra.mxu0 0.0
        %3537 = vmatpush.msra.mxu0 0.0
        %3538 = vmatpush.msra.mxu0 0.0
        %3539 = vmatpush.msra.mxu0 0.0
        %3540 = vmatpush.msra.mxu0 0.0
        %3541 = vmatpush.msra.mxu0 0.0
        %3542 = vmatpush.msra.mxu0 0.0
        %3543 = vmatpush.msra.mxu0 0.0
        %3544 = vmatpush.msra.mxu0 0.0
        %3545 = vmatpush.msra.mxu0 0.0
        %3546 = vmatpush.msra.mxu0 %v3533
        %3547 = vmatpush.msra.mxu0 %v3532
        %3548 = vmatpush.msra.mxu0 %v3531
        %3549 = vmatpush.msra.mxu0 %v3530
        %3550 = vmatmul.f32.gmra.mxu0 %v1261
        %v3551 = vpop.f32.mrf.mxu0
        %v3552 = vadd.f32 %v1243, %v3551
        %3553 = vmatmul.f32.gmra.mxu0 %v1264
        %v3554 = vpop.f32.mrf.mxu0
        %v3555 = vadd.f32 %v1248, %v3554
        %3556 = vmatmul.f32.gmra.mxu0 %v1267
        %v3557 = vpop.f32.mrf.mxu0
        %v3558 = vadd.f32 %v1253, %v3557
        %3559 = vmatmul.f32.gmra.mxu0 %v1270
        %v3560 = vpop.f32.mrf.mxu0
        %v3561 = vadd.f32 %v1258, %v3560
        %3562 = vdwg.mxu0
        %v3563 = vsub.f32 0.0, %v3552
        %v3564 = vmul.f32 %v3563, 1.442695
        %v3565 = vpow.pop %v3564
        %v3566 = vadd.f32 %v3565, 1.0
        %v3567 = vrcp.pop %v3566
        %v3568 = vmul.f32 %v3566, %v3567
        %v3569 = vsub.f32 1.0, %v3568
        %v3570 = vmul.f32 %v3567, %v3569
        %v3571 = vadd.f32 %v3567, %v3570
        %vm3572 = vweird.f32 %v3566
        %vm3573 = vweird.f32 %v3567
        %vm3574 = vmor %vm3572, %vm3573
        %v3575 = vsel %vm3574, %v3567, %v3571
        %v3576 = vand.u32 2147483647, %v3566
        %vm3577 = vcmp.eq.f32.partialorder %v3576, 8.507059e+37
        %v3578 = vand.u32 %v3566, 2147483648
        %v3579 = vor.u32 1.1754944e-38, %v3578
        %v3580 = vsel %vm3577, %v3579, %v3575
        %v3581 = vmul.f32 1.0, %v3580
        %v3582 = vmax.f32 %v3581, 1e-20
        %v3583 = vlog2.pop %v3582
        %v3584 = vmul.f32 %v3583, 0.6931472
        %v3585 = vmul.f32 %v3584, 2.3025851
        %v3586 = vmul.f32 %v3585, 1.442695
        %v3587 = vpow.pop %v3586
        %v3588 = vmul.f32 %v3587, 2.0
        %v3589 = vadd.f32 %v3588, 1e-07
        %v3590 = vsub.f32 0.0, %v3555
        %v3591 = vsub.f32 0.0, %v3558
        %v3592 = vmul.f32 %v3590, 1.442695
        %v3593 = vpow.pop %v3592
        %v3594 = vmul.f32 %v3591, 1.442695
        %v3595 = vpow.pop %v3594
        %v3596 = vadd.f32 %v3593, 1.0
        %v3597 = vadd.f32 %v3595, 1.0
        %v3598 = vrcp.pop %v3596
        %v3599 = vmul.f32 %v3596, %v3598
        %v3600 = vsub.f32 1.0, %v3599
        %v3601 = vmul.f32 %v3598, %v3600
        %v3602 = vadd.f32 %v3598, %v3601
        %vm3603 = vweird.f32 %v3596
        %vm3604 = vweird.f32 %v3598
        %vm3605 = vmor %vm3603, %vm3604
        %v3606 = vsel %vm3605, %v3598, %v3602
        %v3607 = vand.u32 2147483647, %v3596
        %vm3608 = vcmp.eq.f32.partialorder %v3607, 8.507059e+37
        %v3609 = vand.u32 %v3596, 2147483648
        %v3610 = vor.u32 1.1754944e-38, %v3609
        %v3611 = vsel %vm3608, %v3610, %v3606
        %v3612 = vmul.f32 1.0, %v3611
        %v3613 = vrcp.pop %v3597
        %v3614 = vmul.f32 %v3597, %v3613
        %v3615 = vsub.f32 1.0, %v3614
        %v3616 = vmul.f32 %v3613, %v3615
        %v3617 = vadd.f32 %v3613, %v3616
        %vm3618 = vweird.f32 %v3597
        %vm3619 = vweird.f32 %v3613
        %vm3620 = vmor %vm3618, %vm3619
        %v3621 = vsel %vm3620, %v3613, %v3617
        %v3622 = vand.u32 2147483647, %v3597
        %vm3623 = vcmp.eq.f32.partialorder %v3622, 8.507059e+37
        %v3624 = vand.u32 %v3597, 2147483648
        %v3625 = vor.u32 1.1754944e-38, %v3624
        %v3626 = vsel %vm3623, %v3625, %v3621
        %v3627 = vmul.f32 1.0, %v3626
        %v3628 = vmax.f32 %v3612, 1e-20
        %v3629 = vmax.f32 %v3627, 1e-20
        %v3630 = vlog2.pop %v3628
        %v3631 = vmul.f32 %v3630, 0.6931472
        %v3632 = vlog2.pop %v3629
        %v3633 = vmul.f32 %v3632, 0.6931472
        %v3634 = vmul.f32 %v3631, 2.3025851
        %v3635 = vmul.f32 %v3633, 2.3025851
        %v3636 = vmul.f32 %v3634, 1.442695
        %v3637 = vpow.pop %v3636
        %v3638 = vmul.f32 %v3635, 1.442695
        %v3639 = vpow.pop %v3638
        %v3640 = vmul.f32 %v3637, 2.0
        %v3641 = vmul.f32 %v3639, 2.0
        %v3642 = vadd.f32 %v3640, 1e-07
        %v3643 = vadd.f32 %v3641, 1e-07
        %v3644 = vsub.f32 0.0, %v3561
        %v3645 = vmul.f32 %v3644, 1.442695
        %v3646 = vpow.pop %v3645
        %v3647 = vadd.f32 %v3646, 1.0
        %v3648 = vrcp.pop %v3647
        %v3649 = vmul.f32 %v3647, %v3648
        %v3650 = vsub.f32 1.0, %v3649
        %v3651 = vmul.f32 %v3648, %v3650
        %v3652 = vadd.f32 %v3648, %v3651
        %vm3653 = vweird.f32 %v3647
        %vm3654 = vweird.f32 %v3648
        %vm3655 = vmor %vm3653, %vm3654
        %v3656 = vsel %vm3655, %v3648, %v3652
        %v3657 = vand.u32 2147483647, %v3647
        %vm3658 = vcmp.eq.f32.partialorder %v3657, 8.507059e+37
        %v3659 = vand.u32 %v3647, 2147483648
        %v3660 = vor.u32 1.1754944e-38, %v3659
        %v3661 = vsel %vm3658, %v3660, %v3656
        %v3662 = vmul.f32 1.0, %v3661
        %v3663 = vmax.f32 %v3662, 1e-20
        %v3664 = vlog2.pop %v3663
        %v3665 = vmul.f32 %v3664, 0.6931472
        %v3666 = vmul.f32 %v3665, 2.3025851
        %v3667 = vmul.f32 %v3666, 1.442695
        %v3668 = vpow.pop %v3667
        %v3669 = vmul.f32 %v3668, 2.0
        %v3670 = vadd.f32 %v3669, 1e-07
        %v3671 = vmul.f32 %v3643, 0.05
        %v3672 = vmul.f32 %v3670, 0.05
        %v3673 = vperm.slane %v1440, 3
        %v3674 = vmul.f32 %v3673, %v1122
        %v3675 = vmul.f32 %v3673, %v1123
        %v3676 = vmul.f32 %v3674, %v1122
        %v3677 = vmul.f32 %v3675, %v1123
        %v3678 = vadd.f32 %v3676, 1.0
        %v3679 = vadd.f32 %v3677, 1.0
        %v3680 = vrsqrt.pop %v3678
        %v3681 = vmul.f32 %v3680, %v3678
        %v3682 = vmul.f32 %v3681, %v3680
        %v3683 = vmul.f32 0.5, %v3682
        %v3684 = vsub.f32 1.5, %v3683
        %v3685 = vmul.f32 %v3680, %v3684
        %v3686 = vmul.f32 %v3678, %v3685
        %vm3687 = vcmp.eq.f32.partialorder %v3678, inf
        %v3688 = vsel %vm3687, %v3678, %v3686
        %vm3689 = vcmp.eq.f32.partialorder %v3678, 0.0
        %v3690 = vand.u32 %v3678, 2147483648
        %v3691 = vsel %vm3689, %v3690, %v3688
        %v3692 = vrsqrt.pop %v3679
        %v3693 = vmul.f32 %v3692, %v3679
        %v3694 = vmul.f32 %v3693, %v3692
        %v3695 = vmul.f32 0.5, %v3694
        %v3696 = vsub.f32 1.5, %v3695
        %v3697 = vmul.f32 %v3692, %v3696
        %v3698 = vmul.f32 %v3679, %v3697
        %vm3699 = vcmp.eq.f32.partialorder %v3679, inf
        %v3700 = vsel %vm3699, %v3679, %v3698
        %vm3701 = vcmp.eq.f32.partialorder %v3679, 0.0
        %v3702 = vand.u32 %v3679, 2147483648
        %v3703 = vsel %vm3701, %v3702, %v3700
        %v3704 = vmul.f32 %v1122, %v3691
        %v3705 = vmul.f32 %v1123, %v3703
        %v3706 = vperm.slane %v1457, 3
        %v3707 = vmul.f32 %v3706, %v3704
        %v3708 = vmul.f32 %v3706, %v3705
        %vm3709 = vcmp.lt.f32.partialorder %v3707, 8000.0
        %vm3710 = vcmp.lt.f32.partialorder %v3708, 8000.0
        %v3714 = vrot.slane %v3589, 1
        %v3715 = vrot.slane %v3642, 1
        %v3716 = vsel %vm1499, %v3714, %v3715
        %v3717 = vrot.slane %v3643, 1
        %v3718 = vsel %vm1499, %v3715, %v3717
        %v3721 = vsel %vm3709, %v3716, 0.0
        %v3722 = vsel %vm3710, %v3718, 0.0
        %v3723 = vsel %vm865, %v3721, 0.0
        %v3724 = vsel %vm865, %v3722, 0.0
        %v3725 = vadd.f32 %v3723, %v3724
        %v3726 = vrot.slane %v3725, 4
        %v3727 = vadd.f32 %v3725, %v3726
        %v3728 = vrot.slane %v3727, 2
        %v3729 = vadd.f32 %v3727, %v3728
        %v3730 = vrot.slane %v3729, 1
        %v3731 = vadd.f32 %v3729, %v3730
        %v3732 = vadd.f32 %v3731, 1e-07
        %v3733 = vrcp.pop %v3732
        %v3734 = vmul.f32 %v3732, %v3733
        %v3735 = vsub.f32 1.0, %v3734
        %v3736 = vmul.f32 %v3733, %v3735
        %v3737 = vadd.f32 %v3733, %v3736
        %vm3738 = vweird.f32 %v3732
        %vm3739 = vweird.f32 %v3733
        %vm3740 = vmor %vm3738, %vm3739
        %v3741 = vsel %vm3740, %v3733, %v3737
        %v3742 = vand.u32 2147483647, %v3732
        %vm3743 = vcmp.eq.f32.partialorder %v3742, 8.507059e+37
        %v3744 = vand.u32 %v3732, 2147483648
        %v3745 = vor.u32 1.1754944e-38, %v3744
        %v3746 = vsel %vm3743, %v3745, %v3741
        %v3747 = vmul.f32 %v3721, %v3746
        %v3748 = vmul.f32 %v3722, %v3746
        %v3749 = vperm.slane %v3589, 0
        %v3750 = vmul.f32 %v3749, %v3747
        %v3751 = vmul.f32 %v3749, %v3748
        %v3752 = vmul.f32 %v3707, 0.0062831854
        %v3753 = vmul.f32 %v3708, 0.0062831854
        %v3755 = vsel %vm865, %v3752, 0
        %v3758 = vsel %vm865, %v3753, 0
        %3760 = vmatpush.msra.mxu0 0.0
        %3761 = vmatpush.msra.mxu0 0.0
        %3762 = vmatpush.msra.mxu0 0.0
        %3763 = vmatpush.msra.mxu0 0.0
        %3764 = vmatpush.msra.mxu0 0.0
        %3765 = vmatpush.msra.mxu0 0.0
        %3766 = vmatpush.msra.mxu0 0.0
        %3767 = vmatpush.msra.mxu0 0.0
        %3768 = vmatpush.msra.mxu0 0.0
        %3769 = vmatpush.msra.mxu0 0.0
        %3770 = vmatpush.msra.mxu0 0.0
        %3771 = vmatpush.msra.mxu0 0.0
        %3772 = vmatpush.msra.mxu0 0.0
        %3773 = vmatpush.msra.mxu0 0.0
        %3774 = vmatpush.msra.mxu0 0.0
        %3775 = vmatpush.msra.mxu0 %v1128
        %3776 = vmatmul.f32.gmra.mxu0 %v3755
        %v3777 = vpop.f32.mrf.mxu0
        %v3778 = vadd.f32 0.0, %v3777
        %3779 = vmatmul.f32.gmra.mxu0 %v3758
        %v3780 = vpop.f32.mrf.mxu0
        %v3781 = vadd.f32 0.0, %v3780
        %3782 = vdwg.mxu0
        %v3784 = vsel %vm865, %v3750, 0
        %v3787 = vsel %vm865, %v3751, 0
        %3789 = vmatpush.msra.mxu0 0.0
        %3790 = vmatpush.msra.mxu0 0.0
        %3791 = vmatpush.msra.mxu0 0.0
        %3792 = vmatpush.msra.mxu0 0.0
        %3793 = vmatpush.msra.mxu0 0.0
        %3794 = vmatpush.msra.mxu0 0.0
        %3795 = vmatpush.msra.mxu0 0.0
        %3796 = vmatpush.msra.mxu0 0.0
        %3797 = vmatpush.msra.mxu0 0.0
        %3798 = vmatpush.msra.mxu0 0.0
        %3799 = vmatpush.msra.mxu0 0.0
        %3800 = vmatpush.msra.mxu0 0.0
        %3801 = vmatpush.msra.mxu0 0.0
        %3802 = vmatpush.msra.mxu0 0.0
        %3803 = vmatpush.msra.mxu0 0.0
        %3804 = vmatpush.msra.mxu0 %v1101
        %3805 = vmatmul.f32.gmra.mxu0 %v3784
        %v3806 = vpop.f32.mrf.mxu0
        %v3807 = vadd.f32 0.0, %v3806
        %3808 = vmatmul.f32.gmra.mxu0 %v3787
        %v3809 = vpop.f32.mrf.mxu0
        %v3810 = vadd.f32 0.0, %v3809
        %3811 = vdwg.mxu0
        %v3813 = vsel %vm865, %v3707, 0
        %v3816 = vsel %vm865, %v3708, 0
        %3818 = vmatpush.msra.mxu0 0.0
        %3819 = vmatpush.msra.mxu0 0.0
        %3820 = vmatpush.msra.mxu0 0.0
        %3821 = vmatpush.msra.mxu0 0.0
        %3822 = vmatpush.msra.mxu0 0.0
        %3823 = vmatpush.msra.mxu0 0.0
        %3824 = vmatpush.msra.mxu0 0.0
        %3825 = vmatpush.msra.mxu0 0.0
        %3826 = vmatpush.msra.mxu0 0.0
        %3827 = vmatpush.msra.mxu0 0.0
        %3828 = vmatpush.msra.mxu0 0.0
        %3829 = vmatpush.msra.mxu0 0.0
        %3830 = vmatpush.msra.mxu0 0.0
        %3831 = vmatpush.msra.mxu0 0.0
        %3832 = vmatpush.msra.mxu0 0.0
        %3833 = vmatpush.msra.mxu0 %v1101
        %3834 = vmatmul.f32.gmra.mxu0 %v3813
        %v3835 = vpop.f32.mrf.mxu0
        %v3836 = vadd.f32 0.0, %v3835
        %3837 = vmatmul.f32.gmra.mxu0 %v3816
        %v3838 = vpop.f32.mrf.mxu0
        %v3839 = vadd.f32 0.0, %v3838
        %3840 = vdwg.mxu0
        %v3841 = vmul.f32 %v3836, 0.0003926991
        %v3842 = vmul.f32 %v3839, 0.0003926991
        %v3843 = vmul.f32 %v3841, %v1131
        %v3844 = vmul.f32 %v3842, %v1131
        %v3846 = vsel %vm865, %v3778, 0
        %v3849 = vsel %vm865, %v3781, 0
        %3851 = vmatpush.msra.mxu0 0.0
        %3852 = vmatpush.msra.mxu0 0.0
        %3853 = vmatpush.msra.mxu0 0.0
        %3854 = vmatpush.msra.mxu0 0.0
        %3855 = vmatpush.msra.mxu0 0.0
        %3856 = vmatpush.msra.mxu0 0.0
        %3857 = vmatpush.msra.mxu0 0.0
        %3858 = vmatpush.msra.mxu0 0.0
        %3859 = vmatpush.msra.mxu0 0.0
        %3860 = vmatpush.msra.mxu0 0.0
        %3861 = vmatpush.msra.mxu0 0.0
        %3862 = vmatpush.msra.mxu0 0.0
        %3863 = vmatpush.msra.mxu0 0.0
        %3864 = vmatpush.msra.mxu0 0.0
        %3865 = vmatpush.msra.mxu0 0.0
        %3866 = vmatpush.msra.mxu0 %v1101
        %3867 = vmatmul.f32.gmra.mxu0 %v3846
        %v3868 = vpop.f32.mrf.mxu0
        %v3869 = vadd.f32 %v3843, %v3868
        %3870 = vmatmul.f32.gmra.mxu0 %v3849
        %v3871 = vpop.f32.mrf.mxu0
        %v3872 = vadd.f32 %v3844, %v3871
        %3873 = vdwg.mxu0
        %v3874 = vmul.f32 %v3869, 0.15915494
        %v3875 = vmul.f32 %v3872, 0.15915494
        %v3876 = vfloor.f32 %v3874
        %v3877 = vfloor.f32 %v3875
        %v3878 = vmul.f32 %v3876, 6.2831855
        %v3879 = vmul.f32 %v3877, 6.2831855
        %v3880 = vsub.f32 %v3869, %v3878
        %v3881 = vsub.f32 %v3872, %v3879
        %v3882 = vand.u32 2147483647, %v3880
        %vm3883 = vcmp.le.f32.partialorder %v3882, 0.7853982
        %vm3884 = vcmp.lt.s32.totalorder %v3880, 0
        %v3885 = vand.u32 %v3880, 2139095040
        %v3886 = vshrl.u32 %v3885, 23
        %v3887 = vsub.s32 %v3886, 127
        %v3888 = vand.u32 2147483647, %v3880
        %v3889 = vand.u32 %v3888, 8388607
        %v3890 = vor.u32 %v3889, 8388608
        %v3891 = vsub.s32 0, %v3890
        %v3892 = vadd.s32 %v3887, 1
        %vm3893 = vcmp.gt.s32.totalorder %v3892, 0
        %v3894 = vsel %vm3893, %v3892, 0
        %v3895 = vshrl.u32 %v3894, 5
        %v3896 = vand.u32 %v3894, 31
        %v3897 = vsub.s32 32, %v3896
        %v3898 = vshrl.u32 683565275, %v3897
        %v3899 = vshll.u32 683565275, %v3896
        %v3900 = vshrl.u32 2475754826, %v3897
        %v3901 = vor.u32 %v3899, %v3900
        %v3902 = vshll.u32 2475754826, %v3896
        %v3903 = vshrl.u32 2131351028, %v3897
        %v3904 = vor.u32 %v3902, %v3903
        %v3905 = vshll.u32 2131351028, %v3896
        %v3906 = vshrl.u32 2102212464, %v3897
        %v3907 = vor.u32 %v3905, %v3906
        %v3908 = vshll.u32 2102212464, %v3896
        %v3909 = vshrl.u32 920167782, %v3897
        %v3910 = vor.u32 %v3908, %v3909
        %v3911 = vshll.u32 920167782, %v3896
        %v3912 = vshrl.u32 1326507024, %v3897
        %v3913 = vor.u32 %v3911, %v3912
        %vm3914 = vcmp.lt.s32.totalorder %v3895, 1
        %vm3915 = vcmp.lt.s32.totalorder %v3895, 2
        %vm3916 = vcmp.lt.s32.totalorder %v3895, 3
        %vm3917 = vcmp.lt.s32.totalorder %v3895, 4
        %v3918 = vsel %vm3914, %v3898, %v3901
        %v3919 = vsel %vm3917, %v3907, 2102212464
        %v3920 = vsel %vm3916, %v3904, %v3919
        %v3921 = vsel %vm3915, %v3918, %v3920
        %v3922 = vsel %vm3914, %v3901, %v3904
        %v3923 = vsel %vm3917, %v3910, 920167782
        %v3924 = vsel %vm3916, %v3907, %v3923
        %v3925 = vsel %vm3915, %v3922, %v3924
        %v3926 = vsel %vm3914, %v3904, %v3907
        %v3927 = vsel %vm3917, %v3913, 1326507024
        %v3928 = vsel %vm3916, %v3910, %v3927
        %v3929 = vsel %vm3915, %v3926, %v3928
        %v3930 = vshll.u32 %v3890, 8
        %v3931 = vand.u32 %v3930, 65535
        %v3932 = vshrl.u32 %v3930, 16
        %v3933 = vand.u32 %v3929, 65535
        %v3934 = vshrl.u32 %v3929, 16
        %v3935 = vmul.u32 %v3931, %v3933
        %v3936 = vmul.u32 %v3931, %v3934
        %v3937 = vmul.u32 %v3932, %v3933
        %v3938 = vmul.u32 %v3932, %v3934
        %v3939 = vshll.u32 %v3936, 16
        %v3940 = vshrl.u32 %v3936, 16
        %v3941 = vshll.u32 %v3937, 16
        %v3942 = vshrl.u32 %v3937, 16
        %vm3943 = vc.u32 %v3935, %v3939
        %v3944 = vsel %vm3943, 1, 0
        %v3945 = vadd.s32 %v3935, %v3939
        %v3946 = vadd.s32 %v3938, %v3944
        %vm3947 = vc.u32 %v3945, %v3941
        %v3948 = vsel %vm3947, 1, 0
        %v3949 = vadd.s32 %v3945, %v3941
        %v3950 = vadd.s32 %v3946, %v3948
        %v3951 = vadd.s32 %v3950, %v3940
        %v3952 = vadd.s32 %v3951, %v3942
        %v3953 = vand.u32 %v3930, 65535
        %v3954 = vshrl.u32 %v3930, 16
        %v3955 = vand.u32 %v3925, 65535
        %v3956 = vshrl.u32 %v3925, 16
        %v3957 = vmul.u32 %v3953, %v3955
        %v3958 = vmul.u32 %v3953, %v3956
        %v3959 = vmul.u32 %v3954, %v3955
        %v3960 = vmul.u32 %v3954, %v3956
        %v3961 = vshll.u32 %v3958, 16
        %v3962 = vshrl.u32 %v3958, 16
        %v3963 = vshll.u32 %v3959, 16
        %v3964 = vshrl.u32 %v3959, 16
        %vm3965 = vc.u32 %v3957, %v3961
        %v3966 = vsel %vm3965, 1, 0
        %v3967 = vadd.s32 %v3957, %v3961
        %v3968 = vadd.s32 %v3960, %v3966
        %vm3969 = vc.u32 %v3967, %v3963
        %v3970 = vsel %vm3969, 1, 0
        %v3971 = vadd.s32 %v3967, %v3963
        %v3972 = vadd.s32 %v3968, %v3970
        %v3973 = vadd.s32 %v3972, %v3962
        %v3974 = vadd.s32 %v3973, %v3964
        %v3975 = vmul.u32 %v3930, %v3921
        %v3976 = vadd.s32 %v3952, %v3971
        %vm3977 = vc.u32 %v3952, %v3971
        %v3978 = vadd.s32 %v3974, 1
        %v3979 = vsel %vm3977, %v3978, %v3974
        %v3980 = vadd.s32 %v3975, %v3979
        %v3981 = vadd.s32 %v3980, 536870912
        %v3982 = vshrl.u32 %v3981, 30
        %v3983 = vshll.u32 %v3982, 30
        %v3984 = vsub.s32 %v3980, %v3983
        %vm3985 = vcmp.lt.s32.totalorder %v3984, 0
        %v3986 = vsub.s32 0, %v3984
        %v3987 = vsel %vm3985, %v3986, %v3984
        %v3988 = vclz %v3987
        %v3989 = vsub.s32 %v3988, 2
        %vm3990 = vcmp.gt.s32.totalorder 0, %v3989
        %v3991 = vsel %vm3990, 0, %v3989
        %v3992 = vsub.s32 32, %v3991
        %v3993 = vshll.u32 %v3984, %v3991
        %v3994 = vshrl.u32 %v3976, %v3992
        %v3995 = vor.u32 %v3993, %v3994
        %v3996 = vsub.s32 4294967266, %v3991
        %v3997 = vadd.s32 %v3996, 127
        %v3998 = vshll.u32 %v3997, 23
        %v3999 = vor.u32 4788187, %v3998
        %v4000 = vand.u32 2147483647, %v3999
        %v4002 = vcvt.s32.f32 %v3995
        %v4003 = vmul.f32 %v4002, %v4000
        %v4004 = vxor.u32 %v4003, 2147483648
        %v4005 = vsel %vm3884, %v4004, %v4003
        %v4006 = vsub.s32 4, %v3982
        %v4007 = vsel %vm3884, %v4006, %v3982
        %v4008 = vsel %vm3883, %v3880, %v4005
        %v4009 = vsel %vm3883, 0, %v4007
        %v4010 = vmul.f32 %v4008, %v4008
        %v4011 = vmul.f32 %v4010, -0.001358992
        %v4012 = vadd.f32 %v4011, 0.041655596
        %v4013 = vmul.f32 %v4010, %v4012
        %v4014 = vadd.f32 %v4013, -0.4999988
        %v4015 = vmul.f32 %v4010, %v4014
        %v4016 = vadd.f32 1.0, %v4015
        %v4017 = vmul.f32 %v4008, %v4008
        %v4018 = vmul.f32 %v4017, -0.00019511016
        %v4019 = vadd.f32 %v4018, 0.008332121
        %v4020 = vmul.f32 %v4017, %v4019
        %v4021 = vadd.f32 %v4020, -0.16666654
        %v4022 = vmul.f32 %v4017, %v4021
        %v4023 = vadd.f32 %v4022, 1.0
        %v4024 = vmul.f32 %v4023, %v4008
        %vm4025 = vweird.f32 %v3880
        %v4026 = vadd.s32 %v4009, 3
        %v4027 = vand.u32 %v4026, 3
        %vm4028 = vcmp.lt.s32.totalorder %v4027, 2
        %vm4029 = vcmp.eq.s32.totalorder %v4027, 0
        %v4030 = vxor.u32 %v4024, 2147483648
        %v4031 = vsel %vm4029, %v4016, %v4030
        %vm4032 = vcmp.eq.s32.totalorder %v4027, 2
        %v4033 = vxor.u32 %v4016, 2147483648
        %v4034 = vsel %vm4032, %v4033, %v4024
        %v4035 = vsel %vm4028, %v4031, %v4034
        %v4036 = vsel %vm4025, nan, %v4035
        %v4037 = vand.u32 2147483647, %v3881
        %vm4038 = vcmp.le.f32.partialorder %v4037, 0.7853982
        %vm4039 = vcmp.lt.s32.totalorder %v3881, 0
        %v4040 = vand.u32 %v3881, 2139095040
        %v4041 = vshrl.u32 %v4040, 23
        %v4042 = vsub.s32 %v4041, 127
        %v4043 = vand.u32 2147483647, %v3881
        %v4044 = vand.u32 %v4043, 8388607
        %v4045 = vor.u32 %v4044, 8388608
        %v4046 = vsub.s32 0, %v4045
        %v4047 = vadd.s32 %v4042, 1
        %vm4048 = vcmp.gt.s32.totalorder %v4047, 0
        %v4049 = vsel %vm4048, %v4047, 0
        %v4050 = vshrl.u32 %v4049, 5
        %v4051 = vand.u32 %v4049, 31
        %v4052 = vsub.s32 32, %v4051
        %v4053 = vshrl.u32 683565275, %v4052
        %v4054 = vshll.u32 683565275, %v4051
        %v4055 = vshrl.u32 2475754826, %v4052
        %v4056 = vor.u32 %v4054, %v4055
        %v4057 = vshll.u32 2475754826, %v4051
        %v4058 = vshrl.u32 2131351028, %v4052
        %v4059 = vor.u32 %v4057, %v4058
        %v4060 = vshll.u32 2131351028, %v4051
        %v4061 = vshrl.u32 2102212464, %v4052
        %v4062 = vor.u32 %v4060, %v4061
        %v4063 = vshll.u32 2102212464, %v4051
        %v4064 = vshrl.u32 920167782, %v4052
        %v4065 = vor.u32 %v4063, %v4064
        %v4066 = vshll.u32 920167782, %v4051
        %v4067 = vshrl.u32 1326507024, %v4052
        %v4068 = vor.u32 %v4066, %v4067
        %vm4069 = vcmp.lt.s32.totalorder %v4050, 1
        %vm4070 = vcmp.lt.s32.totalorder %v4050, 2
        %vm4071 = vcmp.lt.s32.totalorder %v4050, 3
        %vm4072 = vcmp.lt.s32.totalorder %v4050, 4
        %v4073 = vsel %vm4069, %v4053, %v4056
        %v4074 = vsel %vm4072, %v4062, 2102212464
        %v4075 = vsel %vm4071, %v4059, %v4074
        %v4076 = vsel %vm4070, %v4073, %v4075
        %v4077 = vsel %vm4069, %v4056, %v4059
        %v4078 = vsel %vm4072, %v4065, 920167782
        %v4079 = vsel %vm4071, %v4062, %v4078
        %v4080 = vsel %vm4070, %v4077, %v4079
        %v4081 = vsel %vm4069, %v4059, %v4062
        %v4082 = vsel %vm4072, %v4068, 1326507024
        %v4083 = vsel %vm4071, %v4065, %v4082
        %v4084 = vsel %vm4070, %v4081, %v4083
        %v4085 = vshll.u32 %v4045, 8
        %v4086 = vand.u32 %v4085, 65535
        %v4087 = vshrl.u32 %v4085, 16
        %v4088 = vand.u32 %v4084, 65535
        %v4089 = vshrl.u32 %v4084, 16
        %v4090 = vmul.u32 %v4086, %v4088
        %v4091 = vmul.u32 %v4086, %v4089
        %v4092 = vmul.u32 %v4087, %v4088
        %v4093 = vmul.u32 %v4087, %v4089
        %v4094 = vshll.u32 %v4091, 16
        %v4095 = vshrl.u32 %v4091, 16
        %v4096 = vshll.u32 %v4092, 16
        %v4097 = vshrl.u32 %v4092, 16
        %vm4098 = vc.u32 %v4090, %v4094
        %v4099 = vsel %vm4098, 1, 0
        %v4100 = vadd.s32 %v4090, %v4094
        %v4101 = vadd.s32 %v4093, %v4099
        %vm4102 = vc.u32 %v4100, %v4096
        %v4103 = vsel %vm4102, 1, 0
        %v4104 = vadd.s32 %v4100, %v4096
        %v4105 = vadd.s32 %v4101, %v4103
        %v4106 = vadd.s32 %v4105, %v4095
        %v4107 = vadd.s32 %v4106, %v4097
        %v4108 = vand.u32 %v4085, 65535
        %v4109 = vshrl.u32 %v4085, 16
        %v4110 = vand.u32 %v4080, 65535
        %v4111 = vshrl.u32 %v4080, 16
        %v4112 = vmul.u32 %v4108, %v4110
        %v4113 = vmul.u32 %v4108, %v4111
        %v4114 = vmul.u32 %v4109, %v4110
        %v4115 = vmul.u32 %v4109, %v4111
        %v4116 = vshll.u32 %v4113, 16
        %v4117 = vshrl.u32 %v4113, 16
        %v4118 = vshll.u32 %v4114, 16
        %v4119 = vshrl.u32 %v4114, 16
        %vm4120 = vc.u32 %v4112, %v4116
        %v4121 = vsel %vm4120, 1, 0
        %v4122 = vadd.s32 %v4112, %v4116
        %v4123 = vadd.s32 %v4115, %v4121
        %vm4124 = vc.u32 %v4122, %v4118
        %v4125 = vsel %vm4124, 1, 0
        %v4126 = vadd.s32 %v4122, %v4118
        %v4127 = vadd.s32 %v4123, %v4125
        %v4128 = vadd.s32 %v4127, %v4117
        %v4129 = vadd.s32 %v4128, %v4119
        %v4130 = vmul.u32 %v4085, %v4076
        %v4131 = vadd.s32 %v4107, %v4126
        %vm4132 = vc.u32 %v4107, %v4126
        %v4133 = vadd.s32 %v4129, 1
        %v4134 = vsel %vm4132, %v4133, %v4129
        %v4135 = vadd.s32 %v4130, %v4134
        %v4136 = vadd.s32 %v4135, 536870912
        %v4137 = vshrl.u32 %v4136, 30
        %v4138 = vshll.u32 %v4137, 30
        %v4139 = vsub.s32 %v4135, %v4138
        %vm4140 = vcmp.lt.s32.totalorder %v4139, 0
        %v4141 = vsub.s32 0, %v4139
        %v4142 = vsel %vm4140, %v4141, %v4139
        %v4143 = vclz %v4142
        %v4144 = vsub.s32 %v4143, 2
        %vm4145 = vcmp.gt.s32.totalorder 0, %v4144
        %v4146 = vsel %vm4145, 0, %v4144
        %v4147 = vsub.s32 32, %v4146
        %v4148 = vshll.u32 %v4139, %v4146
        %v4149 = vshrl.u32 %v4131, %v4147
        %v4150 = vor.u32 %v4148, %v4149
        %v4151 = vsub.s32 4294967266, %v4146
        %v4152 = vadd.s32 %v4151, 127
        %v4153 = vshll.u32 %v4152, 23
        %v4154 = vor.u32 4788187, %v4153
        %v4155 = vand.u32 2147483647, %v4154
        %v4157 = vcvt.s32.f32 %v4150
        %v4158 = vmul.f32 %v4157, %v4155
        %v4159 = vxor.u32 %v4158, 2147483648
        %v4160 = vsel %vm4039, %v4159, %v4158
        %v4161 = vsub.s32 4, %v4137
        %v4162 = vsel %vm4039, %v4161, %v4137
        %v4163 = vsel %vm4038, %v3881, %v4160
        %v4164 = vsel %vm4038, 0, %v4162
        %v4165 = vmul.f32 %v4163, %v4163
        %v4166 = vmul.f32 %v4165, -0.001358992
        %v4167 = vadd.f32 %v4166, 0.041655596
        %v4168 = vmul.f32 %v4165, %v4167
        %v4169 = vadd.f32 %v4168, -0.4999988
        %v4170 = vmul.f32 %v4165, %v4169
        %v4171 = vadd.f32 1.0, %v4170
        %v4172 = vmul.f32 %v4163, %v4163
        %v4173 = vmul.f32 %v4172, -0.00019511016
        %v4174 = vadd.f32 %v4173, 0.008332121
        %v4175 = vmul.f32 %v4172, %v4174
        %v4176 = vadd.f32 %v4175, -0.16666654
        %v4177 = vmul.f32 %v4172, %v4176
        %v4178 = vadd.f32 %v4177, 1.0
        %v4179 = vmul.f32 %v4178, %v4163
        %vm4180 = vweird.f32 %v3881
        %v4181 = vadd.s32 %v4164, 3
        %v4182 = vand.u32 %v4181, 3
        %vm4183 = vcmp.lt.s32.totalorder %v4182, 2
        %vm4184 = vcmp.eq.s32.totalorder %v4182, 0
        %v4185 = vxor.u32 %v4179, 2147483648
        %v4186 = vsel %vm4184, %v4171, %v4185
        %vm4187 = vcmp.eq.s32.totalorder %v4182, 2
        %v4188 = vxor.u32 %v4171, 2147483648
        %v4189 = vsel %vm4187, %v4188, %v4179
        %v4190 = vsel %vm4183, %v4186, %v4189
        %v4191 = vsel %vm4180, nan, %v4190
        %v4192 = vmul.f32 %v3807, %v4036
        %v4193 = vmul.f32 %v3810, %v4191
        %v4194 = vadd.f32 %v4192, %v4193
        %v4195 = vrot.slane %v4194, 4
        %v4196 = vadd.f32 %v4194, %v4195
        %v4197 = vrot.slane %v4196, 2
        %v4198 = vadd.f32 %v4196, %v4197
        %v4199 = vrot.slane %v4198, 1
        %v4200 = vadd.f32 %v4198, %v4199
        %v4203 = vrot.slane %v3671, 1
        %v4204 = vrot.slane %v3672, 1
        %v4205 = vsel %vm1499, %v4203, %v4204
        %v4206 = vsel %vm865, %v4205, 0
        %4208 = vmatpush.msra.mxu0 0.0
        %4209 = vmatpush.msra.mxu0 0.0
        %4210 = vmatpush.msra.mxu0 0.0
        %4211 = vmatpush.msra.mxu0 0.0
        %4212 = vmatpush.msra.mxu0 0.0
        %4213 = vmatpush.msra.mxu0 0.0
        %4214 = vmatpush.msra.mxu0 0.0
        %4215 = vmatpush.msra.mxu0 0.0
        %4216 = vmatpush.msra.mxu0 0.0
        %4217 = vmatpush.msra.mxu0 0.0
        %4218 = vmatpush.msra.mxu0 0.0
        %4219 = vmatpush.msra.mxu0 0.0
        %4220 = vmatpush.msra.mxu0 0.0
        %4221 = vmatpush.msra.mxu0 0.0
        %4222 = vmatpush.msra.mxu0 0.0
        %4223 = vmatpush.msra.mxu0 %v1101
        %4224 = vmatmul.f32.gmra.mxu0 %v4206
        %v4225 = vpop.f32.mrf.mxu0
        %v4226 = vadd.f32 0.0, %v4225
        %4227 = vdwg.mxu0
        %v4228 = vmul.f32 %v4226, %v1102
        %v4229 = vrot.slane %v4228, 4
        %v4230 = vadd.f32 %v4228, %v4229
        %v4231 = vrot.slane %v4230, 2
        %v4232 = vadd.f32 %v4230, %v4231
        %v4233 = vrot.slane %v4232, 1
        %v4234 = vadd.f32 %v4232, %v4233
        %v4235 = vadd.f32 %v3498, %v4200
        %v4236 = vadd.f32 %v4235, %v4234
        %4237 = vrot.lane.b32.xlu0 %v4236, 1
        %v4238 = vpop.permute.xlu0 %4237
        %vm4239 = vcmp.ge.s32.totalorder %v1125, 1
        %v4240 = vsel %vm4239, %v4238, 0.0
        %4242 = vset.pattern.permute.xlu0 1
        %4243 = vperm.xlu0 %4242, %v853
        %v4244 = vpop.permute.xlu0 %4243
        %v4246 = vmul.f32 %v4244, %v4240
        %v4247 = vadd.f32 %v4246, 0.0
        %4248 = vrot.lane.b32.xlu0 %v4236, 2
        %v4249 = vpop.permute.xlu0 %4248
        %vm4250 = vcmp.ge.s32.totalorder %v1125, 2
        %v4251 = vsel %vm4250, %v4249, 0.0
        %4252 = vset.pattern.permute.xlu0 2
        %4253 = vperm.xlu0 %4252, %v853
        %v4254 = vpop.permute.xlu0 %4253
        %v4256 = vmul.f32 %v4254, %v4251
        %v4257 = vadd.f32 %v4247, %v4256
        %4258 = vrot.lane.b32.xlu0 %v4236, 3
        %v4259 = vpop.permute.xlu0 %4258
        %vm4260 = vcmp.ge.s32.totalorder %v1125, 3
        %v4261 = vsel %vm4260, %v4259, 0.0
        %4262 = vset.pattern.permute.xlu0 3
        %4263 = vperm.xlu0 %4262, %v853
        %v4264 = vpop.permute.xlu0 %4263
        %v4266 = vmul.f32 %v4264, %v4261
        %v4267 = vadd.f32 %v4257, %v4266
        %4268 = vrot.lane.b32.xlu0 %v4236, 4
        %v4269 = vpop.permute.xlu0 %4268
        %vm4270 = vcmp.ge.s32.totalorder %v1125, 4
        %v4271 = vsel %vm4270, %v4269, 0.0
        %4272 = vset.pattern.permute.xlu0 4
        %4273 = vperm.xlu0 %4272, %v853
        %v4274 = vpop.permute.xlu0 %4273
        %v4276 = vmul.f32 %v4274, %v4271
        %v4277 = vadd.f32 %v4267, %v4276
        %4278 = vrot.lane.b32.xlu0 %v4236, 5
        %v4279 = vpop.permute.xlu0 %4278
        %vm4280 = vcmp.ge.s32.totalorder %v1125, 5
        %v4281 = vsel %vm4280, %v4279, 0.0
        %4282 = vset.pattern.permute.xlu0 5
        %4283 = vperm.xlu0 %4282, %v853
        %v4284 = vpop.permute.xlu0 %4283
        %v4286 = vmul.f32 %v4284, %v4281
        %v4287 = vadd.f32 %v4277, %v4286
        %4288 = vrot.lane.b32.xlu0 %v4236, 6
        %v4289 = vpop.permute.xlu0 %4288
        %vm4290 = vcmp.ge.s32.totalorder %v1125, 6
        %v4291 = vsel %vm4290, %v4289, 0.0
        %4292 = vset.pattern.permute.xlu0 6
        %4293 = vperm.xlu0 %4292, %v853
        %v4294 = vpop.permute.xlu0 %4293
        %v4296 = vmul.f32 %v4294, %v4291
        %v4297 = vadd.f32 %v4287, %v4296
        %4298 = vrot.lane.b32.xlu0 %v4236, 7
        %v4299 = vpop.permute.xlu0 %4298
        %vm4300 = vcmp.ge.s32.totalorder %v1125, 7
        %v4301 = vsel %vm4300, %v4299, 0.0
        %4302 = vset.pattern.permute.xlu0 7
        %4303 = vperm.xlu0 %4302, %v853
        %v4304 = vpop.permute.xlu0 %4303
        %v4306 = vmul.f32 %v4304, %v4301
        %v4307 = vadd.f32 %v4297, %v4306
        %4308 = vrot.lane.b32.xlu0 %v4236, 8
        %v4309 = vpop.permute.xlu0 %4308
        %vm4310 = vcmp.ge.s32.totalorder %v1125, 8
        %v4311 = vsel %vm4310, %v4309, 0.0
        %4312 = vset.pattern.permute.xlu0 8
        %4313 = vperm.xlu0 %4312, %v853
        %v4314 = vpop.permute.xlu0 %4313
        %v4316 = vmul.f32 %v4314, %v4311
        %v4317 = vadd.f32 %v4307, %v4316
        %4318 = vrot.lane.b32.xlu0 %v4236, 9
        %v4319 = vpop.permute.xlu0 %4318
        %vm4320 = vcmp.ge.s32.totalorder %v1125, 9
        %v4321 = vsel %vm4320, %v4319, 0.0
        %4322 = vset.pattern.permute.xlu0 9
        %4323 = vperm.xlu0 %4322, %v853
        %v4324 = vpop.permute.xlu0 %4323
        %v4326 = vmul.f32 %v4324, %v4321
        %v4327 = vadd.f32 %v4317, %v4326
        %4328 = vrot.lane.b32.xlu0 %v4236, 10
        %v4329 = vpop.permute.xlu0 %4328
        %vm4330 = vcmp.ge.s32.totalorder %v1125, 10
        %v4331 = vsel %vm4330, %v4329, 0.0
        %4332 = vset.pattern.permute.xlu0 10
        %4333 = vperm.xlu0 %4332, %v853
        %v4334 = vpop.permute.xlu0 %4333
        %v4336 = vmul.f32 %v4334, %v4331
        %v4337 = vadd.f32 %v4327, %v4336
        %4338 = vrot.lane.b32.xlu0 %v4236, 11
        %v4339 = vpop.permute.xlu0 %4338
        %vm4340 = vcmp.ge.s32.totalorder %v1125, 11
        %v4341 = vsel %vm4340, %v4339, 0.0
        %4342 = vset.pattern.permute.xlu0 11
        %4343 = vperm.xlu0 %4342, %v853
        %v4344 = vpop.permute.xlu0 %4343
        %v4346 = vmul.f32 %v4344, %v4341
        %v4347 = vadd.f32 %v4337, %v4346
        %4348 = vrot.lane.b32.xlu0 %v4236, 12
        %v4349 = vpop.permute.xlu0 %4348
        %vm4350 = vcmp.ge.s32.totalorder %v1125, 12
        %v4351 = vsel %vm4350, %v4349, 0.0
        %4352 = vset.pattern.permute.xlu0 12
        %4353 = vperm.xlu0 %4352, %v853
        %v4354 = vpop.permute.xlu0 %4353
        %v4356 = vmul.f32 %v4354, %v4351
        %v4357 = vadd.f32 %v4347, %v4356
        %4358 = vrot.lane.b32.xlu0 %v4236, 13
        %v4359 = vpop.permute.xlu0 %4358
        %vm4360 = vcmp.ge.s32.totalorder %v1125, 13
        %v4361 = vsel %vm4360, %v4359, 0.0
        %4362 = vset.pattern.permute.xlu0 13
        %4363 = vperm.xlu0 %4362, %v853
        %v4364 = vpop.permute.xlu0 %4363
        %v4366 = vmul.f32 %v4364, %v4361
        %v4367 = vadd.f32 %v4357, %v4366
        %4368 = vrot.lane.b32.xlu0 %v4236, 14
        %v4369 = vpop.permute.xlu0 %4368
        %vm4370 = vcmp.ge.s32.totalorder %v1125, 14
        %v4371 = vsel %vm4370, %v4369, 0.0
        %4372 = vset.pattern.permute.xlu0 14
        %4373 = vperm.xlu0 %4372, %v853
        %v4374 = vpop.permute.xlu0 %4373
        %v4376 = vmul.f32 %v4374, %v4371
        %v4377 = vadd.f32 %v4367, %v4376
        %4378 = vrot.lane.b32.xlu0 %v4236, 15
        %v4379 = vpop.permute.xlu0 %4378
        %vm4380 = vcmp.ge.s32.totalorder %v1125, 15
        %v4381 = vsel %vm4380, %v4379, 0.0
        %4382 = vset.pattern.permute.xlu0 15
        %4383 = vperm.xlu0 %4382, %v853
        %v4384 = vpop.permute.xlu0 %4383
        %v4386 = vmul.f32 %v4384, %v4381
        %v4387 = vadd.f32 %v4377, %v4386
        %v4388 = vadd.f32 %v4236, %v4387
        %4389 = vst [vmem:[%s779] sm:$0x1] %v4388
        %4390 = vst [vmem:[%s791] sm:$0x1] %v4236
        %vm4391 = vcmask 122880
        %4392 = vst.msk [vmem:[%s785] sm:$0x1] %vm4391, %v853
        %s4393 = sand.u32 %s541, 1
        %s4394 = scalar_lea.sflag [#allocation5], %s4393
        %s4395 = sand.u32 %s541, 1
        %s4396 = scalar_lea.vmem [#allocation4], %s4395
        %s4397 = sand.u32 %s51, 1
        %s4398 = scalar_lea.sflag [#allocation7], %s4397
        %s4399 = sand.u32 %s567, 1
        %s4400 = scalar_lea.vmem [#allocation6], %s4399
        %s4401 = sand.u32 %s51, 1
        %s4402 = scalar_lea.sflag [#allocation7], %s4401
        %s4403 = sand.u32 %s593, 1
        %s4404 = scalar_lea.vmem [#allocation8], %s4403
        // Predicated region
        $region109: #{piano_forward.1} parent=107 // pred_check
          %p4405 = pneg %p551
        $region110: #{piano_forward.1} parent=107 // pred_check_branch
          %4407 = sbr.rel (%p4405) target = $region112
        $region111: #{piano_forward.1} parent=107 // pred_region
          %4409 = vsyncadd %s4394, 0
          %s4410 = scalar_lea.hbm %s23, %s51
          %s4412 = sshll.u32 %s4396, 4
          %s4413 = int_to_ptr.vmem [resolvable:$true] %s4412
          %s4414 = sshll.u32 %s4410, 4
          %s4415 = int_to_ptr.hbm [resolvable:$true] %s4414
          %4417 = dma.vmem_to_hbm [thread:$0]  %s4413, 16, %s4415, %s4394
        $region112: #{piano_forward.1} parent=107 // pred_fallthru
          _
        // Predicated region
        $region113: #{piano_forward.1} parent=107 // pred_check
          %p4418 = pneg %p577
        $region114: #{piano_forward.1} parent=107 // pred_check_branch
          %4420 = sbr.rel (%p4418) target = $region116
        $region115: #{piano_forward.1} parent=107 // pred_region
          %4422 = vsyncadd %s4398, 0
          %s4423 = scalar_lea.hbm %s24, %s51
          %s4425 = sshll.u32 %s4400, 4
          %s4426 = int_to_ptr.vmem [resolvable:$true] %s4425
          %s4427 = sshll.u32 %s4423, 4
          %s4428 = int_to_ptr.hbm [resolvable:$true] %s4427
          %4430 = dma.vmem_to_hbm [thread:$0]  %s4426, 16, %s4428, %s4398
        $region116: #{piano_forward.1} parent=107 // pred_fallthru
          _
        // Predicated region
        $region117: #{piano_forward.1} parent=107 // pred_check
          %p4431 = pneg %p603
        $region118: #{piano_forward.1} parent=107 // pred_check_branch
          %4433 = sbr.rel (%p4431) target = $region120
        $region119: #{piano_forward.1} parent=107 // pred_region
          %4435 = vsyncadd %s4402, 0
          %s4436 = scalar_lea.hbm %s25, %s51
          %s4438 = sshll.u32 %s4404, 4
          %s4439 = int_to_ptr.vmem [resolvable:$true] %s4438
          %s4440 = sshll.u32 %s4436, 4
          %s4441 = int_to_ptr.hbm [resolvable:$true] %s4440
          %4443 = dma.vmem_to_hbm [thread:$0]  %s4439, 16, %s4441, %s4402
        $region120: #{piano_forward.1} parent=107 // pred_fallthru
          _
      $region108: #{piano_forward.1} parent=5 // pred_fallthru
        _
      %p4444 = scmp.le.s32.totalorder 2, %s46
      // Predicated region
      $region121: #{piano_forward.1} parent=5 // pred_check
        %p4445 = pneg %p4444
      $region122: #{piano_forward.1} parent=5 // pred_check_branch
        %4447 = sbr.rel (%p4445) target = $region124
      $region123: #{piano_forward.1} parent=5 // pred_region
        %s4448 = ssub.s32 %s46, 2
        // Predicated region
        $region125: #{piano_forward.1} parent=123 // pred_check
          %p4449 = pneg %p557
        $region126: #{piano_forward.1} parent=123 // pred_check_branch
          %4451 = sbr.rel (%p4449) target = $region128
        $region127: #{piano_forward.1} parent=123 // pred_region
          %s4452 = sand.u32 %s542, 1
          %s4453 = scalar_lea.sflag [#allocation5], %s4452
          %s4454 = sand.u32 %s542, 1
          %s4455 = scalar_lea.vmem [#allocation4], %s4454
          %4457 = dma.done %s4453, 16
        $region128: #{piano_forward.1} parent=123 // pred_fallthru
          _
        // Predicated region
        $region129: #{piano_forward.1} parent=123 // pred_check
          %p4458 = pneg %p583
        $region130: #{piano_forward.1} parent=123 // pred_check_branch
          %4460 = sbr.rel (%p4458) target = $region132
        $region131: #{piano_forward.1} parent=123 // pred_region
          %s4461 = sand.u32 %s52, 1
          %s4462 = scalar_lea.sflag [#allocation7], %s4461
          %s4463 = sand.u32 %s568, 1
          %s4464 = scalar_lea.vmem [#allocation6], %s4463
          %4466 = dma.done %s4462, 16
        $region132: #{piano_forward.1} parent=123 // pred_fallthru
          _
        // Predicated region
        $region133: #{piano_forward.1} parent=123 // pred_check
          %p4467 = pneg %p609
        $region134: #{piano_forward.1} parent=123 // pred_check_branch
          %4469 = sbr.rel (%p4467) target = $region136
        $region135: #{piano_forward.1} parent=123 // pred_region
          %s4470 = sand.u32 %s52, 1
          %s4471 = scalar_lea.sflag [#allocation7], %s4470
          %s4472 = sand.u32 %s594, 1
          %s4473 = scalar_lea.vmem [#allocation8], %s4472
          %4475 = dma.done %s4471, 16
        $region136: #{piano_forward.1} parent=123 // pred_fallthru
          _
      $region124: #{piano_forward.1} parent=5 // pred_fallthru
        _
    $region6: #{piano_forward.1} parent=1 // loop_footer
      %s50 = sadd.s32 1, %s46
    $region7: #{piano_forward.1} parent=1 // loop_footer_branch
      %45 = sbr.rel target = $region3
    $region8: #{piano_forward.1} parent=1 // loop_exit
      _
    %4476 = vsyncpa [#allocation5], 1
    %s4477 = scalar_lea.sflag [#allocation5], 1
    %4478 = vsyncpa %s4477, 1
    %4479 = vsyncpa [#allocation7], 1
    %s4480 = scalar_lea.sflag [#allocation7], 1
    %4481 = vsyncpa %s4480, 1

</llo_original>
